<compile_context>
chip_gen: v7x
topology: tpu7x:2x2x1
jax: 0.10.0
libtpu: 0.0.40
codegen_flags: <defaults>
</compile_context>

<pallas_src>
import functools
import math

import jax
import jax.numpy as jnp
from jax.experimental import pallas as pl
from jax.experimental.pallas import tpu as pltpu  # noqa: F401  (no TPU-specific params needed at this size)


def mha_kernel(q_ref, k_ref, v_ref,
               wq_ref, bq_ref, wk_ref, bk_ref, wv_ref, bv_ref,
               wo_ref, bo_ref,
               out_ref,
               *, batch, seq, num_heads):
    """Whole MHA forward for all (batch, head) pairs in one invocation.

    Shapes (G = batch * num_heads, d = head_size, H = hidden):
      q_ref, k_ref, v_ref : (G, S, H)   activations replicated per head
      w{q,k,v}_ref        : (G, H, d)   head-major projection weights (wq pre-scaled by 1/sqrt(d))
      b{q,k,v}_ref        : (G, 1, d)
      wo_ref              : (G, d, H)   head-major output-projection weights
      bo_ref              : (1, H)
      out_ref             : (B*S, H)
    """
    f32 = jnp.float32

    # Per-(batch, head) projections — leading-batch batched matmuls on the MXU.
    q = jnp.einsum("gsk,gkd->gsd", q_ref[...], wq_ref[...],
                   preferred_element_type=f32) + bq_ref[...]
    k = jnp.einsum("gsk,gkd->gsd", k_ref[...], wk_ref[...],
                   preferred_element_type=f32) + bk_ref[...]
    v = jnp.einsum("gsk,gkd->gsd", v_ref[...], wv_ref[...],
                   preferred_element_type=f32) + bv_ref[...]

    # Scaled dot-product attention, batched over (batch, head).
    # The 1/sqrt(d) scale is already folded into wq/bq by the wrapper.
    scores = jnp.einsum("gqd,gkd->gqk", q, k, preferred_element_type=f32)
    m = jnp.max(scores, axis=-1, keepdims=True)
    e = jnp.exp(scores - m)
    denom = jnp.sum(e, axis=-1, keepdims=True)
    attn = e * pl.reciprocal(denom, approx=True)          # EUP reciprocal, not a VALU divide
    ctx = jnp.einsum("gqk,gkd->gqd", attn, v, preferred_element_type=f32)

    # Output projection per head; summing over heads == concat(heads) @ Wo.
    out_parts = jnp.einsum("gsd,gdo->gso", ctx, wo_ref[...],
                           preferred_element_type=f32)
    bo = bo_ref[...]
    for b in range(batch):
        acc = out_parts[b * num_heads]
        for h in range(1, num_heads):
            acc = acc + out_parts[b * num_heads + h]
        out_ref[b * seq:(b + 1) * seq, :] = (acc + bo).astype(out_ref.dtype)


def multi_head_attention(q, k, v, params, *, num_heads):
    """q, k, v: (B, S, H) float32.

    params: (H, H) weights stored as (in_features, out_features) — i.e. already
    transposed vs. PyTorch's nn.Linear — and (1, H) biases.
    """
    B, S, H = q.shape
    assert H % num_heads == 0
    d = H // num_heads
    inv_sqrt_d = 1.0 / math.sqrt(d)

    def head_major(w):
        # (H, H) -> (num_heads, H, d): head h owns output features [h*d, (h+1)*d).
        return w.reshape(H, num_heads, d).transpose(1, 0, 2)

    def per_g(x):
        # (num_heads, ...) -> (B * num_heads, ...) with g = b * num_heads + h.
        return jnp.tile(x, (B,) + (1,) * (x.ndim - 1))

    # All layout plumbing happens here (cheap XLA ops on tiny tensors) so the
    # kernel itself contains no lane-dim slicing, transposes or concatenation.
    wq = per_g(head_major(params["wq"]) * inv_sqrt_d)                 # (G, H, d)
    bq = per_g(params["bq"].reshape(num_heads, 1, d) * inv_sqrt_d)    # (G, 1, d)
    wk = per_g(head_major(params["wk"]))
    bk = per_g(params["bk"].reshape(num_heads, 1, d))
    wv = per_g(head_major(params["wv"]))
    bv = per_g(params["bv"].reshape(num_heads, 1, d))
    wo = per_g(params["wo"].reshape(num_heads, d, H))                 # (G, d, H)
    bo = params["bo"]                                                 # (1, H)

    # Activations replicated per head: g = b * num_heads + h.
    q_rep = jnp.repeat(q, num_heads, axis=0)                          # (G, S, H)
    k_rep = jnp.repeat(k, num_heads, axis=0)
    v_rep = jnp.repeat(v, num_heads, axis=0)

    kernel = functools.partial(mha_kernel, batch=B, seq=S, num_heads=num_heads)

    out_flat = pl.pallas_call(
        kernel,
        out_shape=jax.ShapeDtypeStruct((B * S, H), q.dtype),
    )(q_rep, k_rep, v_rep, wq, bq, wk, bk, wv, bv, wo, bo)
    return out_flat.reshape(B, S, H)


def reference_mha(q, k, v, params, *, num_heads):
    """Pure-JAX reference mirroring the PyTorch forward."""
    B, S, H = q.shape
    d = H // num_heads

    def lin(x, w, b):
        return x @ w + b

    Q = lin(q, params["wq"], params["bq"]).reshape(B, S, num_heads, d).transpose(0, 2, 1, 3)
    K = lin(k, params["wk"], params["bk"]).reshape(B, S, num_heads, d).transpose(0, 2, 1, 3)
    V = lin(v, params["wv"], params["bv"]).reshape(B, S, num_heads, d).transpose(0, 2, 1, 3)
    scores = jnp.einsum("bhqd,bhkd->bhqk", Q, K) / math.sqrt(d)
    attn = jax.nn.softmax(scores, axis=-1)
    ctx = jnp.einsum("bhqk,bhkd->bhqd", attn, V).transpose(0, 2, 1, 3).reshape(B, S, H)
    return lin(ctx, params["wo"], params["bo"])


if __name__ == "__main__":
    # Small shapes consistent with the module: batch=2, seq=8, hidden=32, heads=4
    B, S, H, NUM_HEADS = 2, 8, 32, 4

    key = jax.random.PRNGKey(0)
    keys = jax.random.split(key, 12)

    scale = 1.0 / math.sqrt(H)
    params = {
        "wq": jax.random.uniform(keys[0], (H, H), jnp.float32, -scale, scale),
        "bq": jax.random.uniform(keys[1], (1, H), jnp.float32, -scale, scale),
        "wk": jax.random.uniform(keys[2], (H, H), jnp.float32, -scale, scale),
        "bk": jax.random.uniform(keys[3], (1, H), jnp.float32, -scale, scale),
        "wv": jax.random.uniform(keys[4], (H, H), jnp.float32, -scale, scale),
        "bv": jax.random.uniform(keys[5], (1, H), jnp.float32, -scale, scale),
        "wo": jax.random.uniform(keys[6], (H, H), jnp.float32, -scale, scale),
        "bo": jax.random.uniform(keys[7], (1, H), jnp.float32, -scale, scale),
    }

    q = jax.random.normal(keys[8], (B, S, H), jnp.float32)
    k = jax.random.normal(keys[9], (B, S, H), jnp.float32)
    v = jax.random.normal(keys[10], (B, S, H), jnp.float32)

    out = multi_head_attention(q, k, v, params, num_heads=NUM_HEADS)
    out = jax.block_until_ready(out)

    ref = reference_mha(q, k, v, params, num_heads=NUM_HEADS)
    assert out.shape == (B, S, H)
    max_err = float(jnp.max(jnp.abs(out - ref)))
    # Tolerance slightly loosened vs 1e-4 because of the approx EUP reciprocal in the softmax.
    assert jnp.allclose(out, ref, atol=2e-3, rtol=2e-3), f"mismatch vs reference (max abs err {max_err})"

    print("KERNEL_OK")
</pallas_src>

<mosaic_0001>
module attributes {stable_mosaic.version = 11 : i64} {
  func.func @mha_kernel(%arg0: memref<8x8x32xf32, #tpu.memory_space<vmem>>, %arg1: memref<8x8x32xf32, #tpu.memory_space<vmem>>, %arg2: memref<8x8x32xf32, #tpu.memory_space<vmem>>, %arg3: memref<8x32x8xf32, #tpu.memory_space<vmem>>, %arg4: memref<8x1x8xf32, #tpu.memory_space<vmem>>, %arg5: memref<8x32x8xf32, #tpu.memory_space<vmem>>, %arg6: memref<8x1x8xf32, #tpu.memory_space<vmem>>, %arg7: memref<8x32x8xf32, #tpu.memory_space<vmem>>, %arg8: memref<8x1x8xf32, #tpu.memory_space<vmem>>, %arg9: memref<8x8x32xf32, #tpu.memory_space<vmem>>, %arg10: memref<1x32xf32, #tpu.memory_space<vmem>>, %arg11: memref<16x32xf32, #tpu.memory_space<vmem>>) attributes {dimension_semantics = [], scalar_prefetch = 0 : i64, scratch_operands = 0 : i64, tpu.core_type = #tpu.core_type<tc>} {
    %c0 = arith.constant 0 : index
    %c0_0 = arith.constant 0 : index
    %c0_1 = arith.constant 0 : index
    %0 = vector.load %arg0[%c0, %c0_0, %c0_1] : memref<8x8x32xf32, #tpu.memory_space<vmem>>, vector<8x8x32xf32>
    %c0_2 = arith.constant 0 : index
    %c0_3 = arith.constant 0 : index
    %c0_4 = arith.constant 0 : index
    %1 = vector.load %arg3[%c0_2, %c0_3, %c0_4] : memref<8x32x8xf32, #tpu.memory_space<vmem>>, vector<8x32x8xf32>
    "tpu.trace_start"() <{level = 10 : i32, message = "gsk,gkd->gsd"}> : () -> ()
    %cst = arith.constant dense<0.000000e+00> : vector<8x8x8xf32>
    %2 = tpu.matmul %0, %1, %cst {dimension_numbers = #tpu.dot_dimension_numbers<[2], [1], [1], [2], [0, 0, 0, 1, 1, 2], [0], [0]>} : vector<8x8x32xf32>, vector<8x32x8xf32>, vector<8x8x8xf32> -> vector<8x8x8xf32>
    "tpu.trace_stop"() : () -> ()
    %c0_5 = arith.constant 0 : index
    %c0_6 = arith.constant 0 : index
    %c0_7 = arith.constant 0 : index
    %3 = vector.load %arg4[%c0_5, %c0_6, %c0_7] : memref<8x1x8xf32, #tpu.memory_space<vmem>>, vector<8x1x8xf32>
    %4 = vector.broadcast %3 : vector<8x1x8xf32> to vector<8x8x8xf32>
    %5 = arith.addf %2, %4 : vector<8x8x8xf32>
    %c0_8 = arith.constant 0 : index
    %c0_9 = arith.constant 0 : index
    %c0_10 = arith.constant 0 : index
    %6 = vector.load %arg1[%c0_8, %c0_9, %c0_10] : memref<8x8x32xf32, #tpu.memory_space<vmem>>, vector<8x8x32xf32>
    %c0_11 = arith.constant 0 : index
    %c0_12 = arith.constant 0 : index
    %c0_13 = arith.constant 0 : index
    %7 = vector.load %arg5[%c0_11, %c0_12, %c0_13] : memref<8x32x8xf32, #tpu.memory_space<vmem>>, vector<8x32x8xf32>
    "tpu.trace_start"() <{level = 10 : i32, message = "gsk,gkd->gsd"}> : () -> ()
    %cst_14 = arith.constant dense<0.000000e+00> : vector<8x8x8xf32>
    %8 = tpu.matmul %6, %7, %cst_14 {dimension_numbers = #tpu.dot_dimension_numbers<[2], [1], [1], [2], [0, 0, 0, 1, 1, 2], [0], [0]>} : vector<8x8x32xf32>, vector<8x32x8xf32>, vector<8x8x8xf32> -> vector<8x8x8xf32>
    "tpu.trace_stop"() : () -> ()
    %c0_15 = arith.constant 0 : index
    %c0_16 = arith.constant 0 : index
    %c0_17 = arith.constant 0 : index
    %9 = vector.load %arg6[%c0_15, %c0_16, %c0_17] : memref<8x1x8xf32, #tpu.memory_space<vmem>>, vector<8x1x8xf32>
    %10 = vector.broadcast %9 : vector<8x1x8xf32> to vector<8x8x8xf32>
    %11 = arith.addf %8, %10 : vector<8x8x8xf32>
    %c0_18 = arith.constant 0 : index
    %c0_19 = arith.constant 0 : index
    %c0_20 = arith.constant 0 : index
    %12 = vector.load %arg2[%c0_18, %c0_19, %c0_20] : memref<8x8x32xf32, #tpu.memory_space<vmem>>, vector<8x8x32xf32>
    %c0_21 = arith.constant 0 : index
    %c0_22 = arith.constant 0 : index
    %c0_23 = arith.constant 0 : index
    %13 = vector.load %arg7[%c0_21, %c0_22, %c0_23] : memref<8x32x8xf32, #tpu.memory_space<vmem>>, vector<8x32x8xf32>
    "tpu.trace_start"() <{level = 10 : i32, message = "gsk,gkd->gsd"}> : () -> ()
    %cst_24 = arith.constant dense<0.000000e+00> : vector<8x8x8xf32>
    %14 = tpu.matmul %12, %13, %cst_24 {dimension_numbers = #tpu.dot_dimension_numbers<[2], [1], [1], [2], [0, 0, 0, 1, 1, 2], [0], [0]>} : vector<8x8x32xf32>, vector<8x32x8xf32>, vector<8x8x8xf32> -> vector<8x8x8xf32>
    "tpu.trace_stop"() : () -> ()
    %c0_25 = arith.constant 0 : index
    %c0_26 = arith.constant 0 : index
    %c0_27 = arith.constant 0 : index
    %15 = vector.load %arg8[%c0_25, %c0_26, %c0_27] : memref<8x1x8xf32, #tpu.memory_space<vmem>>, vector<8x1x8xf32>
    %16 = vector.broadcast %15 : vector<8x1x8xf32> to vector<8x8x8xf32>
    %17 = arith.addf %14, %16 : vector<8x8x8xf32>
    "tpu.trace_start"() <{level = 10 : i32, message = "gqd,gkd->gqk"}> : () -> ()
    %cst_28 = arith.constant dense<0.000000e+00> : vector<8x8x8xf32>
    %18 = tpu.matmul %5, %11, %cst_28 {dimension_numbers = #tpu.dot_dimension_numbers<[2], [2], [1], [1], [0, 0, 0, 1, 1, 1], [0], [0]>} : vector<8x8x8xf32>, vector<8x8x8xf32>, vector<8x8x8xf32> -> vector<8x8x8xf32>
    "tpu.trace_stop"() : () -> ()
    %cst_29 = arith.constant dense<0xFF800000> : vector<8x8xf32>
    %19 = vector.multi_reduction <maximumf>, %18, %cst_29 [2] : vector<8x8x8xf32> to vector<8x8xf32>
    %20 = vector.shape_cast %19 : vector<8x8xf32> to vector<8x8x1xf32>
    %21 = vector.broadcast %20 : vector<8x8x1xf32> to vector<8x8x8xf32>
    %22 = arith.subf %18, %21 : vector<8x8x8xf32>
    %23 = math.exp %22 : vector<8x8x8xf32>
    %cst_30 = arith.constant dense<0.000000e+00> : vector<8x8xf32>
    %24 = vector.multi_reduction <add>, %23, %cst_30 [2] : vector<8x8x8xf32> to vector<8x8xf32>
    %25 = vector.shape_cast %24 : vector<8x8xf32> to vector<8x8x1xf32>
    %26 = tpu.reciprocal %25 {approx = true} : vector<8x8x1xf32> -> vector<8x8x1xf32>
    %27 = vector.broadcast %26 : vector<8x8x1xf32> to vector<8x8x8xf32>
    %28 = arith.mulf %23, %27 : vector<8x8x8xf32>
    "tpu.trace_start"() <{level = 10 : i32, message = "gqk,gkd->gqd"}> : () -> ()
    %cst_31 = arith.constant dense<0.000000e+00> : vector<8x8x8xf32>
    %29 = tpu.matmul %28, %17, %cst_31 {dimension_numbers = #tpu.dot_dimension_numbers<[2], [1], [1], [2], [0, 0, 0, 1, 1, 2], [0], [0]>} : vector<8x8x8xf32>, vector<8x8x8xf32>, vector<8x8x8xf32> -> vector<8x8x8xf32>
    "tpu.trace_stop"() : () -> ()
    %c0_32 = arith.constant 0 : index
    %c0_33 = arith.constant 0 : index
    %c0_34 = arith.constant 0 : index
    %30 = vector.load %arg9[%c0_32, %c0_33, %c0_34] : memref<8x8x32xf32, #tpu.memory_space<vmem>>, vector<8x8x32xf32>
    "tpu.trace_start"() <{level = 10 : i32, message = "gsd,gdo->gso"}> : () -> ()
    %cst_35 = arith.constant dense<0.000000e+00> : vector<8x8x32xf32>
    %31 = tpu.matmul %29, %30, %cst_35 {dimension_numbers = #tpu.dot_dimension_numbers<[2], [1], [1], [2], [0, 0, 0, 1, 1, 2], [0], [0]>} : vector<8x8x8xf32>, vector<8x8x32xf32>, vector<8x8x32xf32> -> vector<8x8x32xf32>
    "tpu.trace_stop"() : () -> ()
    %c0_36 = arith.constant 0 : index
    %c0_37 = arith.constant 0 : index
    %32 = vector.load %arg10[%c0_36, %c0_37] : memref<1x32xf32, #tpu.memory_space<vmem>>, vector<1x32xf32>
    %33 = vector.extract_strided_slice %31 {offsets = [0, 0, 0], sizes = [1, 8, 32], strides = [1, 1, 1]} : vector<8x8x32xf32> to vector<1x8x32xf32>
    %34 = vector.shape_cast %33 : vector<1x8x32xf32> to vector<8x32xf32>
    %35 = vector.extract_strided_slice %31 {offsets = [1, 0, 0], sizes = [1, 8, 32], strides = [1, 1, 1]} : vector<8x8x32xf32> to vector<1x8x32xf32>
    %36 = vector.shape_cast %35 : vector<1x8x32xf32> to vector<8x32xf32>
    %37 = arith.addf %34, %36 : vector<8x32xf32>
    %38 = vector.extract_strided_slice %31 {offsets = [2, 0, 0], sizes = [1, 8, 32], strides = [1, 1, 1]} : vector<8x8x32xf32> to vector<1x8x32xf32>
    %39 = vector.shape_cast %38 : vector<1x8x32xf32> to vector<8x32xf32>
    %40 = arith.addf %37, %39 : vector<8x32xf32>
    %41 = vector.extract_strided_slice %31 {offsets = [3, 0, 0], sizes = [1, 8, 32], strides = [1, 1, 1]} : vector<8x8x32xf32> to vector<1x8x32xf32>
    %42 = vector.shape_cast %41 : vector<1x8x32xf32> to vector<8x32xf32>
    %43 = arith.addf %40, %42 : vector<8x32xf32>
    %44 = vector.broadcast %32 : vector<1x32xf32> to vector<8x32xf32>
    %45 = arith.addf %43, %44 : vector<8x32xf32>
    %c0_38 = arith.constant 0 : index
    %c0_39 = arith.constant 0 : index
    %46 = vector.load %arg11[%c0_38, %c0_39] : memref<16x32xf32, #tpu.memory_space<vmem>>, vector<8x32xf32>
    tpu.vector_store %arg11[%c0_38, %c0_39], %45 {strides = array<i32>} : memref<16x32xf32, #tpu.memory_space<vmem>>, vector<8x32xf32>,
    %47 = vector.extract_strided_slice %31 {offsets = [4, 0, 0], sizes = [1, 8, 32], strides = [1, 1, 1]} : vector<8x8x32xf32> to vector<1x8x32xf32>
    %48 = vector.shape_cast %47 : vector<1x8x32xf32> to vector<8x32xf32>
    %49 = vector.extract_strided_slice %31 {offsets = [5, 0, 0], sizes = [1, 8, 32], strides = [1, 1, 1]} : vector<8x8x32xf32> to vector<1x8x32xf32>
    %50 = vector.shape_cast %49 : vector<1x8x32xf32> to vector<8x32xf32>
    %51 = arith.addf %48, %50 : vector<8x32xf32>
    %52 = vector.extract_strided_slice %31 {offsets = [6, 0, 0], sizes = [1, 8, 32], strides = [1, 1, 1]} : vector<8x8x32xf32> to vector<1x8x32xf32>
    %53 = vector.shape_cast %52 : vector<1x8x32xf32> to vector<8x32xf32>
    %54 = arith.addf %51, %53 : vector<8x32xf32>
    %55 = vector.extract_strided_slice %31 {offsets = [7, 0, 0], sizes = [1, 8, 32], strides = [1, 1, 1]} : vector<8x8x32xf32> to vector<1x8x32xf32>
    %56 = vector.shape_cast %55 : vector<1x8x32xf32> to vector<8x32xf32>
    %57 = arith.addf %54, %56 : vector<8x32xf32>
    %58 = vector.broadcast %32 : vector<1x32xf32> to vector<8x32xf32>
    %59 = arith.addf %57, %58 : vector<8x32xf32>
    %c8 = arith.constant 8 : index
    %c0_40 = arith.constant 0 : index
    %60 = vector.load %arg11[%c8, %c0_40] : memref<16x32xf32, #tpu.memory_space<vmem>>, vector<8x32xf32>
    tpu.vector_store %arg11[%c8, %c0_40], %59 {strides = array<i32>} : memref<16x32xf32, #tpu.memory_space<vmem>>, vector<8x32xf32>,
    return
  }
}

</mosaic_0001>

<llo_original>
// kernel: tpu_custom_call.1
$region0: #{tpu_custom_call.1}
  #allocation0 [shape = 'u32[]', space=smem, size = 0x4, offset = 0x4, fixed_abs, tag = 'smem constant byte address 0x4 - core index']
  #allocation1 [shape = 'u32[144,128]{1,0:T(1,128)}', space=vmem, size = 0x12000, scoped, tag = 'internal scratch']
  %s0 = inlined_call_operand.vmem [shape: f32[8,8,32], index: 0, kind: input, shape index: {}]
  %s1 = inlined_call_operand.vmem [shape: f32[8,8,32], index: 1, kind: input, shape index: {}]
  %s2 = inlined_call_operand.vmem [shape: f32[8,8,32], index: 2, kind: input, shape index: {}]
  %s3 = inlined_call_operand.vmem [shape: f32[8,32,8], index: 3, kind: input, shape index: {}]
  %s4 = inlined_call_operand.vmem [shape: f32[8,1,8], index: 4, kind: input, shape index: {}]
  %s5 = inlined_call_operand.vmem [shape: f32[8,32,8], index: 5, kind: input, shape index: {}]
  %s6 = inlined_call_operand.vmem [shape: f32[8,1,8], index: 6, kind: input, shape index: {}]
  %s7 = inlined_call_operand.vmem [shape: f32[8,32,8], index: 7, kind: input, shape index: {}]
  %s8 = inlined_call_operand.vmem [shape: f32[8,1,8], index: 8, kind: input, shape index: {}]
  %s9 = inlined_call_operand.vmem [shape: f32[8,8,32], index: 9, kind: input, shape index: {}]
  %s10 = inlined_call_operand.vmem [shape: f32[1,32], index: 10, kind: input, shape index: {}]
  %s11 = inlined_call_operand.hbm [shape: f32[16,32], index: 11, kind: output, shape index: {}]
  %s12 = sld [smem:[#allocation0]]
  $region54: #{tpu_custom_call.1} parent=0
    _
  %s14 = ssub.s32 1, %s12
  %s15 = scalar_select 0, %s14, %s12
  $region1: #{tpu_custom_call.1} parent=0
    #allocation2 [shape = 'u8[8192]{0}', space=vmem, size = 0x2000, scoped, tag = 'output window, operand 0, single buffered']
    #allocation3 [shape = 's32[1]{0}', space=sflag, size = 0x4, scoped, tag = 'scoped memory for tpu_custom_call.1']
    %16 = vsyncpa [#allocation3], 0
    // Predicated region
    $region2: #{tpu_custom_call.1} parent=1 // pred_check
      _
    $region3: #{tpu_custom_call.1} parent=1 // pred_check_branch
      %18 = sbr.rel (0) target = $region5
    $region4: #{tpu_custom_call.1} parent=1 // pred_region
      _
    $region5: #{tpu_custom_call.1} parent=1 // pred_fallthru
      _
    // Predicated region
    $region6: #{tpu_custom_call.1} parent=1 // pred_check
      _
    $region7: #{tpu_custom_call.1} parent=1 // pred_check_branch
      %20 = sbr.rel (0) target = $region9
    $region8: #{tpu_custom_call.1} parent=1 // pred_region
      _
    $region9: #{tpu_custom_call.1} parent=1 // pred_fallthru
      _
    // Predicated region
    $region10: #{tpu_custom_call.1} parent=1 // pred_check
      _
    $region11: #{tpu_custom_call.1} parent=1 // pred_check_branch
      %22 = sbr.rel (0) target = $region13
    $region12: #{tpu_custom_call.1} parent=1 // pred_region
      _
    $region13: #{tpu_custom_call.1} parent=1 // pred_fallthru
      _
    // Predicated region
    $region14: #{tpu_custom_call.1} parent=1 // pred_check
      _
    $region15: #{tpu_custom_call.1} parent=1 // pred_check_branch
      %24 = sbr.rel (0) target = $region17
    $region16: #{tpu_custom_call.1} parent=1 // pred_region
      _
    $region17: #{tpu_custom_call.1} parent=1 // pred_fallthru
      _
    // Predicated region
    $region18: #{tpu_custom_call.1} parent=1 // pred_check
      _
    $region19: #{tpu_custom_call.1} parent=1 // pred_check_branch
      %26 = sbr.rel (0) target = $region21
    $region20: #{tpu_custom_call.1} parent=1 // pred_region
      _
    $region21: #{tpu_custom_call.1} parent=1 // pred_fallthru
      _
    // Predicated region
    $region22: #{tpu_custom_call.1} parent=1 // pred_check
      _
    $region23: #{tpu_custom_call.1} parent=1 // pred_check_branch
      %28 = sbr.rel (0) target = $region25
    $region24: #{tpu_custom_call.1} parent=1 // pred_region
      _
    $region25: #{tpu_custom_call.1} parent=1 // pred_fallthru
      _
    // Predicated region
    $region26: #{tpu_custom_call.1} parent=1 // pred_check
      _
    $region27: #{tpu_custom_call.1} parent=1 // pred_check_branch
      %30 = sbr.rel (0) target = $region29
    $region28: #{tpu_custom_call.1} parent=1 // pred_region
      _
    $region29: #{tpu_custom_call.1} parent=1 // pred_fallthru
      _
    // Predicated region
    $region30: #{tpu_custom_call.1} parent=1 // pred_check
      _
    $region31: #{tpu_custom_call.1} parent=1 // pred_check_branch
      %32 = sbr.rel (0) target = $region33
    $region32: #{tpu_custom_call.1} parent=1 // pred_region
      _
    $region33: #{tpu_custom_call.1} parent=1 // pred_fallthru
      _
    // Predicated region
    $region34: #{tpu_custom_call.1} parent=1 // pred_check
      _
    $region35: #{tpu_custom_call.1} parent=1 // pred_check_branch
      %34 = sbr.rel (0) target = $region37
    $region36: #{tpu_custom_call.1} parent=1 // pred_region
      _
    $region37: #{tpu_custom_call.1} parent=1 // pred_fallthru
      _
    // Predicated region
    $region38: #{tpu_custom_call.1} parent=1 // pred_check
      _
    $region39: #{tpu_custom_call.1} parent=1 // pred_check_branch
      %36 = sbr.rel (0) target = $region41
    $region40: #{tpu_custom_call.1} parent=1 // pred_region
      _
    $region41: #{tpu_custom_call.1} parent=1 // pred_fallthru
      _
    // Predicated region
    $region42: #{tpu_custom_call.1} parent=1 // pred_check
      _
    $region43: #{tpu_custom_call.1} parent=1 // pred_check_branch
      %38 = sbr.rel (0) target = $region45
    $region44: #{tpu_custom_call.1} parent=1 // pred_region
      _
    $region45: #{tpu_custom_call.1} parent=1 // pred_fallthru
      _
    %v39 = vld [vmem:[%s0] sm:$0xff]
    %v40 = vld [vmem:[%s0 + $0x8] sm:$0xff]
    %v41 = vld [vmem:[%s0 + $0x10] sm:$0xff]
    %v42 = vld [vmem:[%s0 + $0x18] sm:$0xff]
    %v43 = vld [vmem:[%s0 + $0x20] sm:$0xff]
    %v44 = vld [vmem:[%s0 + $0x28] sm:$0xff]
    %v45 = vld [vmem:[%s0 + $0x30] sm:$0xff]
    %v46 = vld [vmem:[%s0 + $0x38] sm:$0xff]
    %v47 = vld [vmem:[%s3] sm:$0xff]
    %v48 = vld [vmem:[%s3 + $0x8] sm:$0xff]
    %v49 = vld [vmem:[%s3 + $0x10] sm:$0xff]
    %v50 = vld [vmem:[%s3 + $0x18] sm:$0xff]
    %v51 = vld [vmem:[%s3 + $0x20] sm:$0xff]
    %v52 = vld [vmem:[%s3 + $0x28] sm:$0xff]
    %v53 = vld [vmem:[%s3 + $0x30] sm:$0xff]
    %v54 = vld [vmem:[%s3 + $0x38] sm:$0xff]
    %v55 = vld [vmem:[%s3 + $0x40] sm:$0xff]
    %v56 = vld [vmem:[%s3 + $0x48] sm:$0xff]
    %v57 = vld [vmem:[%s3 + $0x50] sm:$0xff]
    %v58 = vld [vmem:[%s3 + $0x58] sm:$0xff]
    %v59 = vld [vmem:[%s3 + $0x60] sm:$0xff]
    %v60 = vld [vmem:[%s3 + $0x68] sm:$0xff]
    %v61 = vld [vmem:[%s3 + $0x70] sm:$0xff]
    %v62 = vld [vmem:[%s3 + $0x78] sm:$0xff]
    %v63 = vld [vmem:[%s3 + $0x80] sm:$0xff]
    %v64 = vld [vmem:[%s3 + $0x88] sm:$0xff]
    %v65 = vld [vmem:[%s3 + $0x90] sm:$0xff]
    %v66 = vld [vmem:[%s3 + $0x98] sm:$0xff]
    %v67 = vld [vmem:[%s3 + $0xa0] sm:$0xff]
    %v68 = vld [vmem:[%s3 + $0xa8] sm:$0xff]
    %v69 = vld [vmem:[%s3 + $0xb0] sm:$0xff]
    %v70 = vld [vmem:[%s3 + $0xb8] sm:$0xff]
    %v71 = vld [vmem:[%s3 + $0xc0] sm:$0xff]
    %v72 = vld [vmem:[%s3 + $0xc8] sm:$0xff]
    %v73 = vld [vmem:[%s3 + $0xd0] sm:$0xff]
    %v74 = vld [vmem:[%s3 + $0xd8] sm:$0xff]
    %v75 = vld [vmem:[%s3 + $0xe0] sm:$0xff]
    %v76 = vld [vmem:[%s3 + $0xe8] sm:$0xff]
    %v77 = vld [vmem:[%s3 + $0xf0] sm:$0xff]
    %v78 = vld [vmem:[%s3 + $0xf8] sm:$0xff]
    %v79 = vld [vmem:[%s4] sm:$0x1]
    %v80 = vld [vmem:[%s4 + $0x1] sm:$0x1]
    %v81 = vld [vmem:[%s4 + $0x2] sm:$0x1]
    %v82 = vld [vmem:[%s4 + $0x3] sm:$0x1]
    %v83 = vld [vmem:[%s4 + $0x4] sm:$0x1]
    %v84 = vld [vmem:[%s4 + $0x5] sm:$0x1]
    %v85 = vld [vmem:[%s4 + $0x6] sm:$0x1]
    %v86 = vld [vmem:[%s4 + $0x7] sm:$0x1]
    %v95 = vlaneseq
    %v96 = vshrl.u32 %v95, 7
    %v97 = vsub.s32 0, %v96
    %v98 = vrot.slane %v79, %v97
    %v99 = vlaneseq
    %v100 = vshrl.u32 %v99, 7
    %v101 = vsub.s32 0, %v100
    %v102 = vrot.slane %v80, %v101
    %v103 = vlaneseq
    %v104 = vshrl.u32 %v103, 7
    %v105 = vsub.s32 0, %v104
    %v106 = vrot.slane %v81, %v105
    %v107 = vlaneseq
    %v108 = vshrl.u32 %v107, 7
    %v109 = vsub.s32 0, %v108
    %v110 = vrot.slane %v82, %v109
    %v111 = vlaneseq
    %v112 = vshrl.u32 %v111, 7
    %v113 = vsub.s32 0, %v112
    %v114 = vrot.slane %v83, %v113
    %v115 = vlaneseq
    %v116 = vshrl.u32 %v115, 7
    %v117 = vsub.s32 0, %v116
    %v118 = vrot.slane %v84, %v117
    %v119 = vlaneseq
    %v120 = vshrl.u32 %v119, 7
    %v121 = vsub.s32 0, %v120
    %v122 = vrot.slane %v85, %v121
    %v123 = vlaneseq
    %v124 = vshrl.u32 %v123, 7
    %v125 = vsub.s32 0, %v124
    %v126 = vrot.slane %v86, %v125
    %vm135 = vcmask 261120
    %v137 = vsel %vm135, %v39, 0
    %139 = vmatprep.subr.mxu0 0.0
    %140 = vmatpush1.msra.mxu0 %v47
    %141 = vmatprep.subr.mxu0 0.0
    %142 = vmatpush1.msra.mxu0 %v48
    %143 = vmatprep.subr.mxu0 0.0
    %144 = vmatpush1.msra.mxu0 %v49
    %145 = vmatprep.subr.mxu0 0.0
    %146 = vmatpush1.msra.mxu0 %v50
    %147 = vmatprep.subr.mxu0 0.0
    %148 = vmatpush1.msra.mxu0 0.0
    %149 = vmatprep.subr.mxu0 0.0
    %150 = vmatpush1.msra.mxu0 0.0
    %151 = vmatprep.subr.mxu0 0.0
    %152 = vmatpush1.msra.mxu0 0.0
    %153 = vmatprep.subr.mxu0 0.0
    %154 = vmatpush1.msra.mxu0 0.0
    %155 = vmatprep.subr.mxu0 0.0
    %156 = vmatpush1.msra.mxu0 0.0
    %157 = vmatprep.subr.mxu0 0.0
    %158 = vmatpush1.msra.mxu0 0.0
    %159 = vmatprep.subr.mxu0 0.0
    %160 = vmatpush1.msra.mxu0 0.0
    %161 = vmatprep.subr.mxu0 0.0
    %162 = vmatpush1.msra.mxu0 0.0
    %163 = vmatprep.subr.mxu0 0.0
    %164 = vmatpush1.msra.mxu0 0.0
    %165 = vmatprep.subr.mxu0 0.0
    %166 = vmatpush1.msra.mxu0 0.0
    %167 = vmatprep.subr.mxu0 0.0
    %168 = vmatpush1.msra.mxu0 0.0
    %169 = vmatprep.subr.mxu0 0.0
    %170 = vmatpush1.msra.mxu0 0.0
    %171 = vmatprep.subr.mxu0 0.0
    %172 = vmatpush1.msra.mxu0 0.0
    %173 = vmatprep.subr.mxu0 0.0
    %174 = vmatpush1.msra.mxu0 0.0
    %175 = vmatprep.subr.mxu0 0.0
    %176 = vmatpush1.msra.mxu0 0.0
    %177 = vmatprep.subr.mxu0 0.0
    %178 = vmatpush1.msra.mxu0 0.0
    %179 = vmatprep.subr.mxu0 0.0
    %180 = vmatpush1.msra.mxu0 0.0
    %181 = vmatprep.subr.mxu0 0.0
    %182 = vmatpush1.msra.mxu0 0.0
    %183 = vmatprep.subr.mxu0 0.0
    %184 = vmatpush1.msra.mxu0 0.0
    %185 = vmatprep.subr.mxu0 0.0
    %186 = vmatpush1.msra.mxu0 0.0
    %187 = vmatprep.subr.mxu0 0.0
    %188 = vmatpush1.msra.mxu0 0.0
    %189 = vmatprep.subr.mxu0 0.0
    %190 = vmatpush1.msra.mxu0 0.0
    %191 = vmatprep.subr.mxu0 0.0
    %192 = vmatpush1.msra.mxu0 0.0
    %193 = vmatprep.subr.mxu0 0.0
    %194 = vmatpush1.msra.mxu0 0.0
    %195 = vmatprep.subr.mxu0 0.0
    %196 = vmatpush1.msra.mxu0 0.0
    %197 = vmatprep.subr.mxu0 0.0
    %198 = vmatpush1.msra.mxu0 0.0
    %199 = vmatprep.subr.mxu0 0.0
    %200 = vmatpush1.msra.mxu0 0.0
    %201 = vmatprep.subr.mxu0 0.0
    %202 = vmatpush1.msra.mxu0 0.0
    %203 = vmatprep.mubr.f32.mxu0 0.0
    %204 = vmatmul.mubr.f32.gmra.mrb[0].mxu0 %v137
    %v205 = vpop.f32.mrb[0].mxu0
    %v206 = vadd.f32 %v98, %v205
    %v207 = vpop.f32.mrb[0].mxu0
    %208 = vdwg.mxu0
    %v210 = vsel %vm135, %v40, 0
    %212 = vmatprep.subr.mxu0 0.0
    %213 = vmatpush1.msra.mxu0 %v51
    %214 = vmatprep.subr.mxu0 0.0
    %215 = vmatpush1.msra.mxu0 %v52
    %216 = vmatprep.subr.mxu0 0.0
    %217 = vmatpush1.msra.mxu0 %v53
    %218 = vmatprep.subr.mxu0 0.0
    %219 = vmatpush1.msra.mxu0 %v54
    %220 = vmatprep.subr.mxu0 0.0
    %221 = vmatpush1.msra.mxu0 0.0
    %222 = vmatprep.subr.mxu0 0.0
    %223 = vmatpush1.msra.mxu0 0.0
    %224 = vmatprep.subr.mxu0 0.0
    %225 = vmatpush1.msra.mxu0 0.0
    %226 = vmatprep.subr.mxu0 0.0
    %227 = vmatpush1.msra.mxu0 0.0
    %228 = vmatprep.subr.mxu0 0.0
    %229 = vmatpush1.msra.mxu0 0.0
    %230 = vmatprep.subr.mxu0 0.0
    %231 = vmatpush1.msra.mxu0 0.0
    %232 = vmatprep.subr.mxu0 0.0
    %233 = vmatpush1.msra.mxu0 0.0
    %234 = vmatprep.subr.mxu0 0.0
    %235 = vmatpush1.msra.mxu0 0.0
    %236 = vmatprep.subr.mxu0 0.0
    %237 = vmatpush1.msra.mxu0 0.0
    %238 = vmatprep.subr.mxu0 0.0
    %239 = vmatpush1.msra.mxu0 0.0
    %240 = vmatprep.subr.mxu0 0.0
    %241 = vmatpush1.msra.mxu0 0.0
    %242 = vmatprep.subr.mxu0 0.0
    %243 = vmatpush1.msra.mxu0 0.0
    %244 = vmatprep.subr.mxu0 0.0
    %245 = vmatpush1.msra.mxu0 0.0
    %246 = vmatprep.subr.mxu0 0.0
    %247 = vmatpush1.msra.mxu0 0.0
    %248 = vmatprep.subr.mxu0 0.0
    %249 = vmatpush1.msra.mxu0 0.0
    %250 = vmatprep.subr.mxu0 0.0
    %251 = vmatpush1.msra.mxu0 0.0
    %252 = vmatprep.subr.mxu0 0.0
    %253 = vmatpush1.msra.mxu0 0.0
    %254 = vmatprep.subr.mxu0 0.0
    %255 = vmatpush1.msra.mxu0 0.0
    %256 = vmatprep.subr.mxu0 0.0
    %257 = vmatpush1.msra.mxu0 0.0
    %258 = vmatprep.subr.mxu0 0.0
    %259 = vmatpush1.msra.mxu0 0.0
    %260 = vmatprep.subr.mxu0 0.0
    %261 = vmatpush1.msra.mxu0 0.0
    %262 = vmatprep.subr.mxu0 0.0
    %263 = vmatpush1.msra.mxu0 0.0
    %264 = vmatprep.subr.mxu0 0.0
    %265 = vmatpush1.msra.mxu0 0.0
    %266 = vmatprep.subr.mxu0 0.0
    %267 = vmatpush1.msra.mxu0 0.0
    %268 = vmatprep.subr.mxu0 0.0
    %269 = vmatpush1.msra.mxu0 0.0
    %270 = vmatprep.subr.mxu0 0.0
    %271 = vmatpush1.msra.mxu0 0.0
    %272 = vmatprep.subr.mxu0 0.0
    %273 = vmatpush1.msra.mxu0 0.0
    %274 = vmatprep.subr.mxu0 0.0
    %275 = vmatpush1.msra.mxu0 0.0
    %276 = vmatprep.mubr.f32.mxu0 0.0
    %277 = vmatmul.mubr.f32.gmra.mrb[0].mxu0 %v210
    %v278 = vpop.f32.mrb[0].mxu0
    %v279 = vadd.f32 %v102, %v278
    %v280 = vpop.f32.mrb[0].mxu0
    %281 = vdwg.mxu0
    %v283 = vsel %vm135, %v41, 0
    %285 = vmatprep.subr.mxu0 0.0
    %286 = vmatpush1.msra.mxu0 %v55
    %287 = vmatprep.subr.mxu0 0.0
    %288 = vmatpush1.msra.mxu0 %v56
    %289 = vmatprep.subr.mxu0 0.0
    %290 = vmatpush1.msra.mxu0 %v57
    %291 = vmatprep.subr.mxu0 0.0
    %292 = vmatpush1.msra.mxu0 %v58
    %293 = vmatprep.subr.mxu0 0.0
    %294 = vmatpush1.msra.mxu0 0.0
    %295 = vmatprep.subr.mxu0 0.0
    %296 = vmatpush1.msra.mxu0 0.0
    %297 = vmatprep.subr.mxu0 0.0
    %298 = vmatpush1.msra.mxu0 0.0
    %299 = vmatprep.subr.mxu0 0.0
    %300 = vmatpush1.msra.mxu0 0.0
    %301 = vmatprep.subr.mxu0 0.0
    %302 = vmatpush1.msra.mxu0 0.0
    %303 = vmatprep.subr.mxu0 0.0
    %304 = vmatpush1.msra.mxu0 0.0
    %305 = vmatprep.subr.mxu0 0.0
    %306 = vmatpush1.msra.mxu0 0.0
    %307 = vmatprep.subr.mxu0 0.0
    %308 = vmatpush1.msra.mxu0 0.0
    %309 = vmatprep.subr.mxu0 0.0
    %310 = vmatpush1.msra.mxu0 0.0
    %311 = vmatprep.subr.mxu0 0.0
    %312 = vmatpush1.msra.mxu0 0.0
    %313 = vmatprep.subr.mxu0 0.0
    %314 = vmatpush1.msra.mxu0 0.0
    %315 = vmatprep.subr.mxu0 0.0
    %316 = vmatpush1.msra.mxu0 0.0
    %317 = vmatprep.subr.mxu0 0.0
    %318 = vmatpush1.msra.mxu0 0.0
    %319 = vmatprep.subr.mxu0 0.0
    %320 = vmatpush1.msra.mxu0 0.0
    %321 = vmatprep.subr.mxu0 0.0
    %322 = vmatpush1.msra.mxu0 0.0
    %323 = vmatprep.subr.mxu0 0.0
    %324 = vmatpush1.msra.mxu0 0.0
    %325 = vmatprep.subr.mxu0 0.0
    %326 = vmatpush1.msra.mxu0 0.0
    %327 = vmatprep.subr.mxu0 0.0
    %328 = vmatpush1.msra.mxu0 0.0
    %329 = vmatprep.subr.mxu0 0.0
    %330 = vmatpush1.msra.mxu0 0.0
    %331 = vmatprep.subr.mxu0 0.0
    %332 = vmatpush1.msra.mxu0 0.0
    %333 = vmatprep.subr.mxu0 0.0
    %334 = vmatpush1.msra.mxu0 0.0
    %335 = vmatprep.subr.mxu0 0.0
    %336 = vmatpush1.msra.mxu0 0.0
    %337 = vmatprep.subr.mxu0 0.0
    %338 = vmatpush1.msra.mxu0 0.0
    %339 = vmatprep.subr.mxu0 0.0
    %340 = vmatpush1.msra.mxu0 0.0
    %341 = vmatprep.subr.mxu0 0.0
    %342 = vmatpush1.msra.mxu0 0.0
    %343 = vmatprep.subr.mxu0 0.0
    %344 = vmatpush1.msra.mxu0 0.0
    %345 = vmatprep.subr.mxu0 0.0
    %346 = vmatpush1.msra.mxu0 0.0
    %347 = vmatprep.subr.mxu0 0.0
    %348 = vmatpush1.msra.mxu0 0.0
    %349 = vmatprep.mubr.f32.mxu0 0.0
    %350 = vmatmul.mubr.f32.gmra.mrb[0].mxu0 %v283
    %v351 = vpop.f32.mrb[0].mxu0
    %v352 = vadd.f32 %v106, %v351
    %v353 = vpop.f32.mrb[0].mxu0
    %354 = vdwg.mxu0
    %v356 = vsel %vm135, %v42, 0
    %358 = vmatprep.subr.mxu0 0.0
    %359 = vmatpush1.msra.mxu0 %v59
    %360 = vmatprep.subr.mxu0 0.0
    %361 = vmatpush1.msra.mxu0 %v60
    %362 = vmatprep.subr.mxu0 0.0
    %363 = vmatpush1.msra.mxu0 %v61
    %364 = vmatprep.subr.mxu0 0.0
    %365 = vmatpush1.msra.mxu0 %v62
    %366 = vmatprep.subr.mxu0 0.0
    %367 = vmatpush1.msra.mxu0 0.0
    %368 = vmatprep.subr.mxu0 0.0
    %369 = vmatpush1.msra.mxu0 0.0
    %370 = vmatprep.subr.mxu0 0.0
    %371 = vmatpush1.msra.mxu0 0.0
    %372 = vmatprep.subr.mxu0 0.0
    %373 = vmatpush1.msra.mxu0 0.0
    %374 = vmatprep.subr.mxu0 0.0
    %375 = vmatpush1.msra.mxu0 0.0
    %376 = vmatprep.subr.mxu0 0.0
    %377 = vmatpush1.msra.mxu0 0.0
    %378 = vmatprep.subr.mxu0 0.0
    %379 = vmatpush1.msra.mxu0 0.0
    %380 = vmatprep.subr.mxu0 0.0
    %381 = vmatpush1.msra.mxu0 0.0
    %382 = vmatprep.subr.mxu0 0.0
    %383 = vmatpush1.msra.mxu0 0.0
    %384 = vmatprep.subr.mxu0 0.0
    %385 = vmatpush1.msra.mxu0 0.0
    %386 = vmatprep.subr.mxu0 0.0
    %387 = vmatpush1.msra.mxu0 0.0
    %388 = vmatprep.subr.mxu0 0.0
    %389 = vmatpush1.msra.mxu0 0.0
    %390 = vmatprep.subr.mxu0 0.0
    %391 = vmatpush1.msra.mxu0 0.0
    %392 = vmatprep.subr.mxu0 0.0
    %393 = vmatpush1.msra.mxu0 0.0
    %394 = vmatprep.subr.mxu0 0.0
    %395 = vmatpush1.msra.mxu0 0.0
    %396 = vmatprep.subr.mxu0 0.0
    %397 = vmatpush1.msra.mxu0 0.0
    %398 = vmatprep.subr.mxu0 0.0
    %399 = vmatpush1.msra.mxu0 0.0
    %400 = vmatprep.subr.mxu0 0.0
    %401 = vmatpush1.msra.mxu0 0.0
    %402 = vmatprep.subr.mxu0 0.0
    %403 = vmatpush1.msra.mxu0 0.0
    %404 = vmatprep.subr.mxu0 0.0
    %405 = vmatpush1.msra.mxu0 0.0
    %406 = vmatprep.subr.mxu0 0.0
    %407 = vmatpush1.msra.mxu0 0.0
    %408 = vmatprep.subr.mxu0 0.0
    %409 = vmatpush1.msra.mxu0 0.0
    %410 = vmatprep.subr.mxu0 0.0
    %411 = vmatpush1.msra.mxu0 0.0
    %412 = vmatprep.subr.mxu0 0.0
    %413 = vmatpush1.msra.mxu0 0.0
    %414 = vmatprep.subr.mxu0 0.0
    %415 = vmatpush1.msra.mxu0 0.0
    %416 = vmatprep.subr.mxu0 0.0
    %417 = vmatpush1.msra.mxu0 0.0
    %418 = vmatprep.subr.mxu0 0.0
    %419 = vmatpush1.msra.mxu0 0.0
    %420 = vmatprep.subr.mxu0 0.0
    %421 = vmatpush1.msra.mxu0 0.0
    %422 = vmatprep.mubr.f32.mxu0 0.0
    %423 = vmatmul.mubr.f32.gmra.mrb[0].mxu0 %v356
    %v424 = vpop.f32.mrb[0].mxu0
    %v425 = vadd.f32 %v110, %v424
    %v426 = vpop.f32.mrb[0].mxu0
    %427 = vdwg.mxu0
    %v429 = vsel %vm135, %v43, 0
    %431 = vmatprep.subr.mxu0 0.0
    %432 = vmatpush1.msra.mxu0 %v63
    %433 = vmatprep.subr.mxu0 0.0
    %434 = vmatpush1.msra.mxu0 %v64
    %435 = vmatprep.subr.mxu0 0.0
    %436 = vmatpush1.msra.mxu0 %v65
    %437 = vmatprep.subr.mxu0 0.0
    %438 = vmatpush1.msra.mxu0 %v66
    %439 = vmatprep.subr.mxu0 0.0
    %440 = vmatpush1.msra.mxu0 0.0
    %441 = vmatprep.subr.mxu0 0.0
    %442 = vmatpush1.msra.mxu0 0.0
    %443 = vmatprep.subr.mxu0 0.0
    %444 = vmatpush1.msra.mxu0 0.0
    %445 = vmatprep.subr.mxu0 0.0
    %446 = vmatpush1.msra.mxu0 0.0
    %447 = vmatprep.subr.mxu0 0.0
    %448 = vmatpush1.msra.mxu0 0.0
    %449 = vmatprep.subr.mxu0 0.0
    %450 = vmatpush1.msra.mxu0 0.0
    %451 = vmatprep.subr.mxu0 0.0
    %452 = vmatpush1.msra.mxu0 0.0
    %453 = vmatprep.subr.mxu0 0.0
    %454 = vmatpush1.msra.mxu0 0.0
    %455 = vmatprep.subr.mxu0 0.0
    %456 = vmatpush1.msra.mxu0 0.0
    %457 = vmatprep.subr.mxu0 0.0
    %458 = vmatpush1.msra.mxu0 0.0
    %459 = vmatprep.subr.mxu0 0.0
    %460 = vmatpush1.msra.mxu0 0.0
    %461 = vmatprep.subr.mxu0 0.0
    %462 = vmatpush1.msra.mxu0 0.0
    %463 = vmatprep.subr.mxu0 0.0
    %464 = vmatpush1.msra.mxu0 0.0
    %465 = vmatprep.subr.mxu0 0.0
    %466 = vmatpush1.msra.mxu0 0.0
    %467 = vmatprep.subr.mxu0 0.0
    %468 = vmatpush1.msra.mxu0 0.0
    %469 = vmatprep.subr.mxu0 0.0
    %470 = vmatpush1.msra.mxu0 0.0
    %471 = vmatprep.subr.mxu0 0.0
    %472 = vmatpush1.msra.mxu0 0.0
    %473 = vmatprep.subr.mxu0 0.0
    %474 = vmatpush1.msra.mxu0 0.0
    %475 = vmatprep.subr.mxu0 0.0
    %476 = vmatpush1.msra.mxu0 0.0
    %477 = vmatprep.subr.mxu0 0.0
    %478 = vmatpush1.msra.mxu0 0.0
    %479 = vmatprep.subr.mxu0 0.0
    %480 = vmatpush1.msra.mxu0 0.0
    %481 = vmatprep.subr.mxu0 0.0
    %482 = vmatpush1.msra.mxu0 0.0
    %483 = vmatprep.subr.mxu0 0.0
    %484 = vmatpush1.msra.mxu0 0.0
    %485 = vmatprep.subr.mxu0 0.0
    %486 = vmatpush1.msra.mxu0 0.0
    %487 = vmatprep.subr.mxu0 0.0
    %488 = vmatpush1.msra.mxu0 0.0
    %489 = vmatprep.subr.mxu0 0.0
    %490 = vmatpush1.msra.mxu0 0.0
    %491 = vmatprep.subr.mxu0 0.0
    %492 = vmatpush1.msra.mxu0 0.0
    %493 = vmatprep.subr.mxu0 0.0
    %494 = vmatpush1.msra.mxu0 0.0
    %495 = vmatprep.mubr.f32.mxu0 0.0
    %496 = vmatmul.mubr.f32.gmra.mrb[0].mxu0 %v429
    %v497 = vpop.f32.mrb[0].mxu0
    %v498 = vadd.f32 %v114, %v497
    %v499 = vpop.f32.mrb[0].mxu0
    %500 = vdwg.mxu0
    %v502 = vsel %vm135, %v44, 0
    %504 = vmatprep.subr.mxu0 0.0
    %505 = vmatpush1.msra.mxu0 %v67
    %506 = vmatprep.subr.mxu0 0.0
    %507 = vmatpush1.msra.mxu0 %v68
    %508 = vmatprep.subr.mxu0 0.0
    %509 = vmatpush1.msra.mxu0 %v69
    %510 = vmatprep.subr.mxu0 0.0
    %511 = vmatpush1.msra.mxu0 %v70
    %512 = vmatprep.subr.mxu0 0.0
    %513 = vmatpush1.msra.mxu0 0.0
    %514 = vmatprep.subr.mxu0 0.0
    %515 = vmatpush1.msra.mxu0 0.0
    %516 = vmatprep.subr.mxu0 0.0
    %517 = vmatpush1.msra.mxu0 0.0
    %518 = vmatprep.subr.mxu0 0.0
    %519 = vmatpush1.msra.mxu0 0.0
    %520 = vmatprep.subr.mxu0 0.0
    %521 = vmatpush1.msra.mxu0 0.0
    %522 = vmatprep.subr.mxu0 0.0
    %523 = vmatpush1.msra.mxu0 0.0
    %524 = vmatprep.subr.mxu0 0.0
    %525 = vmatpush1.msra.mxu0 0.0
    %526 = vmatprep.subr.mxu0 0.0
    %527 = vmatpush1.msra.mxu0 0.0
    %528 = vmatprep.subr.mxu0 0.0
    %529 = vmatpush1.msra.mxu0 0.0
    %530 = vmatprep.subr.mxu0 0.0
    %531 = vmatpush1.msra.mxu0 0.0
    %532 = vmatprep.subr.mxu0 0.0
    %533 = vmatpush1.msra.mxu0 0.0
    %534 = vmatprep.subr.mxu0 0.0
    %535 = vmatpush1.msra.mxu0 0.0
    %536 = vmatprep.subr.mxu0 0.0
    %537 = vmatpush1.msra.mxu0 0.0
    %538 = vmatprep.subr.mxu0 0.0
    %539 = vmatpush1.msra.mxu0 0.0
    %540 = vmatprep.subr.mxu0 0.0
    %541 = vmatpush1.msra.mxu0 0.0
    %542 = vmatprep.subr.mxu0 0.0
    %543 = vmatpush1.msra.mxu0 0.0
    %544 = vmatprep.subr.mxu0 0.0
    %545 = vmatpush1.msra.mxu0 0.0
    %546 = vmatprep.subr.mxu0 0.0
    %547 = vmatpush1.msra.mxu0 0.0
    %548 = vmatprep.subr.mxu0 0.0
    %549 = vmatpush1.msra.mxu0 0.0
    %550 = vmatprep.subr.mxu0 0.0
    %551 = vmatpush1.msra.mxu0 0.0
    %552 = vmatprep.subr.mxu0 0.0
    %553 = vmatpush1.msra.mxu0 0.0
    %554 = vmatprep.subr.mxu0 0.0
    %555 = vmatpush1.msra.mxu0 0.0
    %556 = vmatprep.subr.mxu0 0.0
    %557 = vmatpush1.msra.mxu0 0.0
    %558 = vmatprep.subr.mxu0 0.0
    %559 = vmatpush1.msra.mxu0 0.0
    %560 = vmatprep.subr.mxu0 0.0
    %561 = vmatpush1.msra.mxu0 0.0
    %562 = vmatprep.subr.mxu0 0.0
    %563 = vmatpush1.msra.mxu0 0.0
    %564 = vmatprep.subr.mxu0 0.0
    %565 = vmatpush1.msra.mxu0 0.0
    %566 = vmatprep.subr.mxu0 0.0
    %567 = vmatpush1.msra.mxu0 0.0
    %568 = vmatprep.mubr.f32.mxu0 0.0
    %569 = vmatmul.mubr.f32.gmra.mrb[0].mxu0 %v502
    %v570 = vpop.f32.mrb[0].mxu0
    %v571 = vadd.f32 %v118, %v570
    %v572 = vpop.f32.mrb[0].mxu0
    %573 = vdwg.mxu0
    %v575 = vsel %vm135, %v45, 0
    %577 = vmatprep.subr.mxu0 0.0
    %578 = vmatpush1.msra.mxu0 %v71
    %579 = vmatprep.subr.mxu0 0.0
    %580 = vmatpush1.msra.mxu0 %v72
    %581 = vmatprep.subr.mxu0 0.0
    %582 = vmatpush1.msra.mxu0 %v73
    %583 = vmatprep.subr.mxu0 0.0
    %584 = vmatpush1.msra.mxu0 %v74
    %585 = vmatprep.subr.mxu0 0.0
    %586 = vmatpush1.msra.mxu0 0.0
    %587 = vmatprep.subr.mxu0 0.0
    %588 = vmatpush1.msra.mxu0 0.0
    %589 = vmatprep.subr.mxu0 0.0
    %590 = vmatpush1.msra.mxu0 0.0
    %591 = vmatprep.subr.mxu0 0.0
    %592 = vmatpush1.msra.mxu0 0.0
    %593 = vmatprep.subr.mxu0 0.0
    %594 = vmatpush1.msra.mxu0 0.0
    %595 = vmatprep.subr.mxu0 0.0
    %596 = vmatpush1.msra.mxu0 0.0
    %597 = vmatprep.subr.mxu0 0.0
    %598 = vmatpush1.msra.mxu0 0.0
    %599 = vmatprep.subr.mxu0 0.0
    %600 = vmatpush1.msra.mxu0 0.0
    %601 = vmatprep.subr.mxu0 0.0
    %602 = vmatpush1.msra.mxu0 0.0
    %603 = vmatprep.subr.mxu0 0.0
    %604 = vmatpush1.msra.mxu0 0.0
    %605 = vmatprep.subr.mxu0 0.0
    %606 = vmatpush1.msra.mxu0 0.0
    %607 = vmatprep.subr.mxu0 0.0
    %608 = vmatpush1.msra.mxu0 0.0
    %609 = vmatprep.subr.mxu0 0.0
    %610 = vmatpush1.msra.mxu0 0.0
    %611 = vmatprep.subr.mxu0 0.0
    %612 = vmatpush1.msra.mxu0 0.0
    %613 = vmatprep.subr.mxu0 0.0
    %614 = vmatpush1.msra.mxu0 0.0
    %615 = vmatprep.subr.mxu0 0.0
    %616 = vmatpush1.msra.mxu0 0.0
    %617 = vmatprep.subr.mxu0 0.0
    %618 = vmatpush1.msra.mxu0 0.0
    %619 = vmatprep.subr.mxu0 0.0
    %620 = vmatpush1.msra.mxu0 0.0
    %621 = vmatprep.subr.mxu0 0.0
    %622 = vmatpush1.msra.mxu0 0.0
    %623 = vmatprep.subr.mxu0 0.0
    %624 = vmatpush1.msra.mxu0 0.0
    %625 = vmatprep.subr.mxu0 0.0
    %626 = vmatpush1.msra.mxu0 0.0
    %627 = vmatprep.subr.mxu0 0.0
    %628 = vmatpush1.msra.mxu0 0.0
    %629 = vmatprep.subr.mxu0 0.0
    %630 = vmatpush1.msra.mxu0 0.0
    %631 = vmatprep.subr.mxu0 0.0
    %632 = vmatpush1.msra.mxu0 0.0
    %633 = vmatprep.subr.mxu0 0.0
    %634 = vmatpush1.msra.mxu0 0.0
    %635 = vmatprep.subr.mxu0 0.0
    %636 = vmatpush1.msra.mxu0 0.0
    %637 = vmatprep.subr.mxu0 0.0
    %638 = vmatpush1.msra.mxu0 0.0
    %639 = vmatprep.subr.mxu0 0.0
    %640 = vmatpush1.msra.mxu0 0.0
    %641 = vmatprep.mubr.f32.mxu0 0.0
    %642 = vmatmul.mubr.f32.gmra.mrb[0].mxu0 %v575
    %v643 = vpop.f32.mrb[0].mxu0
    %v644 = vadd.f32 %v122, %v643
    %v645 = vpop.f32.mrb[0].mxu0
    %646 = vdwg.mxu0
    %v648 = vsel %vm135, %v46, 0
    %650 = vmatprep.subr.mxu0 0.0
    %651 = vmatpush1.msra.mxu0 %v75
    %652 = vmatprep.subr.mxu0 0.0
    %653 = vmatpush1.msra.mxu0 %v76
    %654 = vmatprep.subr.mxu0 0.0
    %655 = vmatpush1.msra.mxu0 %v77
    %656 = vmatprep.subr.mxu0 0.0
    %657 = vmatpush1.msra.mxu0 %v78
    %658 = vmatprep.subr.mxu0 0.0
    %659 = vmatpush1.msra.mxu0 0.0
    %660 = vmatprep.subr.mxu0 0.0
    %661 = vmatpush1.msra.mxu0 0.0
    %662 = vmatprep.subr.mxu0 0.0
    %663 = vmatpush1.msra.mxu0 0.0
    %664 = vmatprep.subr.mxu0 0.0
    %665 = vmatpush1.msra.mxu0 0.0
    %666 = vmatprep.subr.mxu0 0.0
    %667 = vmatpush1.msra.mxu0 0.0
    %668 = vmatprep.subr.mxu0 0.0
    %669 = vmatpush1.msra.mxu0 0.0
    %670 = vmatprep.subr.mxu0 0.0
    %671 = vmatpush1.msra.mxu0 0.0
    %672 = vmatprep.subr.mxu0 0.0
    %673 = vmatpush1.msra.mxu0 0.0
    %674 = vmatprep.subr.mxu0 0.0
    %675 = vmatpush1.msra.mxu0 0.0
    %676 = vmatprep.subr.mxu0 0.0
    %677 = vmatpush1.msra.mxu0 0.0
    %678 = vmatprep.subr.mxu0 0.0
    %679 = vmatpush1.msra.mxu0 0.0
    %680 = vmatprep.subr.mxu0 0.0
    %681 = vmatpush1.msra.mxu0 0.0
    %682 = vmatprep.subr.mxu0 0.0
    %683 = vmatpush1.msra.mxu0 0.0
    %684 = vmatprep.subr.mxu0 0.0
    %685 = vmatpush1.msra.mxu0 0.0
    %686 = vmatprep.subr.mxu0 0.0
    %687 = vmatpush1.msra.mxu0 0.0
    %688 = vmatprep.subr.mxu0 0.0
    %689 = vmatpush1.msra.mxu0 0.0
    %690 = vmatprep.subr.mxu0 0.0
    %691 = vmatpush1.msra.mxu0 0.0
    %692 = vmatprep.subr.mxu0 0.0
    %693 = vmatpush1.msra.mxu0 0.0
    %694 = vmatprep.subr.mxu0 0.0
    %695 = vmatpush1.msra.mxu0 0.0
    %696 = vmatprep.subr.mxu0 0.0
    %697 = vmatpush1.msra.mxu0 0.0
    %698 = vmatprep.subr.mxu0 0.0
    %699 = vmatpush1.msra.mxu0 0.0
    %700 = vmatprep.subr.mxu0 0.0
    %701 = vmatpush1.msra.mxu0 0.0
    %702 = vmatprep.subr.mxu0 0.0
    %703 = vmatpush1.msra.mxu0 0.0
    %704 = vmatprep.subr.mxu0 0.0
    %705 = vmatpush1.msra.mxu0 0.0
    %706 = vmatprep.subr.mxu0 0.0
    %707 = vmatpush1.msra.mxu0 0.0
    %708 = vmatprep.subr.mxu0 0.0
    %709 = vmatpush1.msra.mxu0 0.0
    %710 = vmatprep.subr.mxu0 0.0
    %711 = vmatpush1.msra.mxu0 0.0
    %712 = vmatprep.subr.mxu0 0.0
    %713 = vmatpush1.msra.mxu0 0.0
    %714 = vmatprep.mubr.f32.mxu0 0.0
    %715 = vmatmul.mubr.f32.gmra.mrb[0].mxu0 %v648
    %v716 = vpop.f32.mrb[0].mxu0
    %v717 = vadd.f32 %v126, %v716
    %v718 = vpop.f32.mrb[0].mxu0
    %719 = vdwg.mxu0
    %v720 = vld [vmem:[%s1] sm:$0xff]
    %v721 = vld [vmem:[%s1 + $0x8] sm:$0xff]
    %v722 = vld [vmem:[%s1 + $0x10] sm:$0xff]
    %v723 = vld [vmem:[%s1 + $0x18] sm:$0xff]
    %v724 = vld [vmem:[%s1 + $0x20] sm:$0xff]
    %v725 = vld [vmem:[%s1 + $0x28] sm:$0xff]
    %v726 = vld [vmem:[%s1 + $0x30] sm:$0xff]
    %v727 = vld [vmem:[%s1 + $0x38] sm:$0xff]
    %v728 = vld [vmem:[%s5] sm:$0xff]
    %v729 = vld [vmem:[%s5 + $0x8] sm:$0xff]
    %v730 = vld [vmem:[%s5 + $0x10] sm:$0xff]
    %v731 = vld [vmem:[%s5 + $0x18] sm:$0xff]
    %v732 = vld [vmem:[%s5 + $0x20] sm:$0xff]
    %v733 = vld [vmem:[%s5 + $0x28] sm:$0xff]
    %v734 = vld [vmem:[%s5 + $0x30] sm:$0xff]
    %v735 = vld [vmem:[%s5 + $0x38] sm:$0xff]
    %v736 = vld [vmem:[%s5 + $0x40] sm:$0xff]
    %v737 = vld [vmem:[%s5 + $0x48] sm:$0xff]
    %v738 = vld [vmem:[%s5 + $0x50] sm:$0xff]
    %v739 = vld [vmem:[%s5 + $0x58] sm:$0xff]
    %v740 = vld [vmem:[%s5 + $0x60] sm:$0xff]
    %v741 = vld [vmem:[%s5 + $0x68] sm:$0xff]
    %v742 = vld [vmem:[%s5 + $0x70] sm:$0xff]
    %v743 = vld [vmem:[%s5 + $0x78] sm:$0xff]
    %v744 = vld [vmem:[%s5 + $0x80] sm:$0xff]
    %v745 = vld [vmem:[%s5 + $0x88] sm:$0xff]
    %v746 = vld [vmem:[%s5 + $0x90] sm:$0xff]
    %v747 = vld [vmem:[%s5 + $0x98] sm:$0xff]
    %v748 = vld [vmem:[%s5 + $0xa0] sm:$0xff]
    %v749 = vld [vmem:[%s5 + $0xa8] sm:$0xff]
    %v750 = vld [vmem:[%s5 + $0xb0] sm:$0xff]
    %v751 = vld [vmem:[%s5 + $0xb8] sm:$0xff]
    %v752 = vld [vmem:[%s5 + $0xc0] sm:$0xff]
    %v753 = vld [vmem:[%s5 + $0xc8] sm:$0xff]
    %v754 = vld [vmem:[%s5 + $0xd0] sm:$0xff]
    %v755 = vld [vmem:[%s5 + $0xd8] sm:$0xff]
    %v756 = vld [vmem:[%s5 + $0xe0] sm:$0xff]
    %v757 = vld [vmem:[%s5 + $0xe8] sm:$0xff]
    %v758 = vld [vmem:[%s5 + $0xf0] sm:$0xff]
    %v759 = vld [vmem:[%s5 + $0xf8] sm:$0xff]
    %v760 = vld [vmem:[%s6] sm:$0x1]
    %v761 = vld [vmem:[%s6 + $0x1] sm:$0x1]
    %v762 = vld [vmem:[%s6 + $0x2] sm:$0x1]
    %v763 = vld [vmem:[%s6 + $0x3] sm:$0x1]
    %v764 = vld [vmem:[%s6 + $0x4] sm:$0x1]
    %v765 = vld [vmem:[%s6 + $0x5] sm:$0x1]
    %v766 = vld [vmem:[%s6 + $0x6] sm:$0x1]
    %v767 = vld [vmem:[%s6 + $0x7] sm:$0x1]
    %v776 = vlaneseq
    %v777 = vshrl.u32 %v776, 7
    %v778 = vsub.s32 0, %v777
    %v779 = vrot.slane %v760, %v778
    %v780 = vlaneseq
    %v781 = vshrl.u32 %v780, 7
    %v782 = vsub.s32 0, %v781
    %v783 = vrot.slane %v761, %v782
    %v784 = vlaneseq
    %v785 = vshrl.u32 %v784, 7
    %v786 = vsub.s32 0, %v785
    %v787 = vrot.slane %v762, %v786
    %v788 = vlaneseq
    %v789 = vshrl.u32 %v788, 7
    %v790 = vsub.s32 0, %v789
    %v791 = vrot.slane %v763, %v790
    %v792 = vlaneseq
    %v793 = vshrl.u32 %v792, 7
    %v794 = vsub.s32 0, %v793
    %v795 = vrot.slane %v764, %v794
    %v796 = vlaneseq
    %v797 = vshrl.u32 %v796, 7
    %v798 = vsub.s32 0, %v797
    %v799 = vrot.slane %v765, %v798
    %v800 = vlaneseq
    %v801 = vshrl.u32 %v800, 7
    %v802 = vsub.s32 0, %v801
    %v803 = vrot.slane %v766, %v802
    %v804 = vlaneseq
    %v805 = vshrl.u32 %v804, 7
    %v806 = vsub.s32 0, %v805
    %v807 = vrot.slane %v767, %v806
    %v817 = vsel %vm135, %v720, 0
    %819 = vmatprep.subr.mxu0 0.0
    %820 = vmatpush1.msra.mxu0 %v728
    %821 = vmatprep.subr.mxu0 0.0
    %822 = vmatpush1.msra.mxu0 %v729
    %823 = vmatprep.subr.mxu0 0.0
    %824 = vmatpush1.msra.mxu0 %v730
    %825 = vmatprep.subr.mxu0 0.0
    %826 = vmatpush1.msra.mxu0 %v731
    %827 = vmatprep.subr.mxu0 0.0
    %828 = vmatpush1.msra.mxu0 0.0
    %829 = vmatprep.subr.mxu0 0.0
    %830 = vmatpush1.msra.mxu0 0.0
    %831 = vmatprep.subr.mxu0 0.0
    %832 = vmatpush1.msra.mxu0 0.0
    %833 = vmatprep.subr.mxu0 0.0
    %834 = vmatpush1.msra.mxu0 0.0
    %835 = vmatprep.subr.mxu0 0.0
    %836 = vmatpush1.msra.mxu0 0.0
    %837 = vmatprep.subr.mxu0 0.0
    %838 = vmatpush1.msra.mxu0 0.0
    %839 = vmatprep.subr.mxu0 0.0
    %840 = vmatpush1.msra.mxu0 0.0
    %841 = vmatprep.subr.mxu0 0.0
    %842 = vmatpush1.msra.mxu0 0.0
    %843 = vmatprep.subr.mxu0 0.0
    %844 = vmatpush1.msra.mxu0 0.0
    %845 = vmatprep.subr.mxu0 0.0
    %846 = vmatpush1.msra.mxu0 0.0
    %847 = vmatprep.subr.mxu0 0.0
    %848 = vmatpush1.msra.mxu0 0.0
    %849 = vmatprep.subr.mxu0 0.0
    %850 = vmatpush1.msra.mxu0 0.0
    %851 = vmatprep.subr.mxu0 0.0
    %852 = vmatpush1.msra.mxu0 0.0
    %853 = vmatprep.subr.mxu0 0.0
    %854 = vmatpush1.msra.mxu0 0.0
    %855 = vmatprep.subr.mxu0 0.0
    %856 = vmatpush1.msra.mxu0 0.0
    %857 = vmatprep.subr.mxu0 0.0
    %858 = vmatpush1.msra.mxu0 0.0
    %859 = vmatprep.subr.mxu0 0.0
    %860 = vmatpush1.msra.mxu0 0.0
    %861 = vmatprep.subr.mxu0 0.0
    %862 = vmatpush1.msra.mxu0 0.0
    %863 = vmatprep.subr.mxu0 0.0
    %864 = vmatpush1.msra.mxu0 0.0
    %865 = vmatprep.subr.mxu0 0.0
    %866 = vmatpush1.msra.mxu0 0.0
    %867 = vmatprep.subr.mxu0 0.0
    %868 = vmatpush1.msra.mxu0 0.0
    %869 = vmatprep.subr.mxu0 0.0
    %870 = vmatpush1.msra.mxu0 0.0
    %871 = vmatprep.subr.mxu0 0.0
    %872 = vmatpush1.msra.mxu0 0.0
    %873 = vmatprep.subr.mxu0 0.0
    %874 = vmatpush1.msra.mxu0 0.0
    %875 = vmatprep.subr.mxu0 0.0
    %876 = vmatpush1.msra.mxu0 0.0
    %877 = vmatprep.subr.mxu0 0.0
    %878 = vmatpush1.msra.mxu0 0.0
    %879 = vmatprep.subr.mxu0 0.0
    %880 = vmatpush1.msra.mxu0 0.0
    %881 = vmatprep.subr.mxu0 0.0
    %882 = vmatpush1.msra.mxu0 0.0
    %883 = vmatprep.mubr.f32.mxu0 0.0
    %884 = vmatmul.mubr.f32.gmra.mrb[0].mxu0 %v817
    %v885 = vpop.f32.mrb[0].mxu0
    %v886 = vadd.f32 %v779, %v885
    %v887 = vpop.f32.mrb[0].mxu0
    %888 = vdwg.mxu0
    %v890 = vsel %vm135, %v721, 0
    %892 = vmatprep.subr.mxu0 0.0
    %893 = vmatpush1.msra.mxu0 %v732
    %894 = vmatprep.subr.mxu0 0.0
    %895 = vmatpush1.msra.mxu0 %v733
    %896 = vmatprep.subr.mxu0 0.0
    %897 = vmatpush1.msra.mxu0 %v734
    %898 = vmatprep.subr.mxu0 0.0
    %899 = vmatpush1.msra.mxu0 %v735
    %900 = vmatprep.subr.mxu0 0.0
    %901 = vmatpush1.msra.mxu0 0.0
    %902 = vmatprep.subr.mxu0 0.0
    %903 = vmatpush1.msra.mxu0 0.0
    %904 = vmatprep.subr.mxu0 0.0
    %905 = vmatpush1.msra.mxu0 0.0
    %906 = vmatprep.subr.mxu0 0.0
    %907 = vmatpush1.msra.mxu0 0.0
    %908 = vmatprep.subr.mxu0 0.0
    %909 = vmatpush1.msra.mxu0 0.0
    %910 = vmatprep.subr.mxu0 0.0
    %911 = vmatpush1.msra.mxu0 0.0
    %912 = vmatprep.subr.mxu0 0.0
    %913 = vmatpush1.msra.mxu0 0.0
    %914 = vmatprep.subr.mxu0 0.0
    %915 = vmatpush1.msra.mxu0 0.0
    %916 = vmatprep.subr.mxu0 0.0
    %917 = vmatpush1.msra.mxu0 0.0
    %918 = vmatprep.subr.mxu0 0.0
    %919 = vmatpush1.msra.mxu0 0.0
    %920 = vmatprep.subr.mxu0 0.0
    %921 = vmatpush1.msra.mxu0 0.0
    %922 = vmatprep.subr.mxu0 0.0
    %923 = vmatpush1.msra.mxu0 0.0
    %924 = vmatprep.subr.mxu0 0.0
    %925 = vmatpush1.msra.mxu0 0.0
    %926 = vmatprep.subr.mxu0 0.0
    %927 = vmatpush1.msra.mxu0 0.0
    %928 = vmatprep.subr.mxu0 0.0
    %929 = vmatpush1.msra.mxu0 0.0
    %930 = vmatprep.subr.mxu0 0.0
    %931 = vmatpush1.msra.mxu0 0.0
    %932 = vmatprep.subr.mxu0 0.0
    %933 = vmatpush1.msra.mxu0 0.0
    %934 = vmatprep.subr.mxu0 0.0
    %935 = vmatpush1.msra.mxu0 0.0
    %936 = vmatprep.subr.mxu0 0.0
    %937 = vmatpush1.msra.mxu0 0.0
    %938 = vmatprep.subr.mxu0 0.0
    %939 = vmatpush1.msra.mxu0 0.0
    %940 = vmatprep.subr.mxu0 0.0
    %941 = vmatpush1.msra.mxu0 0.0
    %942 = vmatprep.subr.mxu0 0.0
    %943 = vmatpush1.msra.mxu0 0.0
    %944 = vmatprep.subr.mxu0 0.0
    %945 = vmatpush1.msra.mxu0 0.0
    %946 = vmatprep.subr.mxu0 0.0
    %947 = vmatpush1.msra.mxu0 0.0
    %948 = vmatprep.subr.mxu0 0.0
    %949 = vmatpush1.msra.mxu0 0.0
    %950 = vmatprep.subr.mxu0 0.0
    %951 = vmatpush1.msra.mxu0 0.0
    %952 = vmatprep.subr.mxu0 0.0
    %953 = vmatpush1.msra.mxu0 0.0
    %954 = vmatprep.subr.mxu0 0.0
    %955 = vmatpush1.msra.mxu0 0.0
    %956 = vmatprep.mubr.f32.mxu0 0.0
    %957 = vmatmul.mubr.f32.gmra.mrb[0].mxu0 %v890
    %v958 = vpop.f32.mrb[0].mxu0
    %v959 = vadd.f32 %v783, %v958
    %v960 = vpop.f32.mrb[0].mxu0
    %961 = vdwg.mxu0
    %v963 = vsel %vm135, %v722, 0
    %965 = vmatprep.subr.mxu0 0.0
    %966 = vmatpush1.msra.mxu0 %v736
    %967 = vmatprep.subr.mxu0 0.0
    %968 = vmatpush1.msra.mxu0 %v737
    %969 = vmatprep.subr.mxu0 0.0
    %970 = vmatpush1.msra.mxu0 %v738
    %971 = vmatprep.subr.mxu0 0.0
    %972 = vmatpush1.msra.mxu0 %v739
    %973 = vmatprep.subr.mxu0 0.0
    %974 = vmatpush1.msra.mxu0 0.0
    %975 = vmatprep.subr.mxu0 0.0
    %976 = vmatpush1.msra.mxu0 0.0
    %977 = vmatprep.subr.mxu0 0.0
    %978 = vmatpush1.msra.mxu0 0.0
    %979 = vmatprep.subr.mxu0 0.0
    %980 = vmatpush1.msra.mxu0 0.0
    %981 = vmatprep.subr.mxu0 0.0
    %982 = vmatpush1.msra.mxu0 0.0
    %983 = vmatprep.subr.mxu0 0.0
    %984 = vmatpush1.msra.mxu0 0.0
    %985 = vmatprep.subr.mxu0 0.0
    %986 = vmatpush1.msra.mxu0 0.0
    %987 = vmatprep.subr.mxu0 0.0
    %988 = vmatpush1.msra.mxu0 0.0
    %989 = vmatprep.subr.mxu0 0.0
    %990 = vmatpush1.msra.mxu0 0.0
    %991 = vmatprep.subr.mxu0 0.0
    %992 = vmatpush1.msra.mxu0 0.0
    %993 = vmatprep.subr.mxu0 0.0
    %994 = vmatpush1.msra.mxu0 0.0
    %995 = vmatprep.subr.mxu0 0.0
    %996 = vmatpush1.msra.mxu0 0.0
    %997 = vmatprep.subr.mxu0 0.0
    %998 = vmatpush1.msra.mxu0 0.0
    %999 = vmatprep.subr.mxu0 0.0
    %1000 = vmatpush1.msra.mxu0 0.0
    %1001 = vmatprep.subr.mxu0 0.0
    %1002 = vmatpush1.msra.mxu0 0.0
    %1003 = vmatprep.subr.mxu0 0.0
    %1004 = vmatpush1.msra.mxu0 0.0
    %1005 = vmatprep.subr.mxu0 0.0
    %1006 = vmatpush1.msra.mxu0 0.0
    %1007 = vmatprep.subr.mxu0 0.0
    %1008 = vmatpush1.msra.mxu0 0.0
    %1009 = vmatprep.subr.mxu0 0.0
    %1010 = vmatpush1.msra.mxu0 0.0
    %1011 = vmatprep.subr.mxu0 0.0
    %1012 = vmatpush1.msra.mxu0 0.0
    %1013 = vmatprep.subr.mxu0 0.0
    %1014 = vmatpush1.msra.mxu0 0.0
    %1015 = vmatprep.subr.mxu0 0.0
    %1016 = vmatpush1.msra.mxu0 0.0
    %1017 = vmatprep.subr.mxu0 0.0
    %1018 = vmatpush1.msra.mxu0 0.0
    %1019 = vmatprep.subr.mxu0 0.0
    %1020 = vmatpush1.msra.mxu0 0.0
    %1021 = vmatprep.subr.mxu0 0.0
    %1022 = vmatpush1.msra.mxu0 0.0
    %1023 = vmatprep.subr.mxu0 0.0
    %1024 = vmatpush1.msra.mxu0 0.0
    %1025 = vmatprep.subr.mxu0 0.0
    %1026 = vmatpush1.msra.mxu0 0.0
    %1027 = vmatprep.subr.mxu0 0.0
    %1028 = vmatpush1.msra.mxu0 0.0
    %1029 = vmatprep.mubr.f32.mxu0 0.0
    %1030 = vmatmul.mubr.f32.gmra.mrb[0].mxu0 %v963
    %v1031 = vpop.f32.mrb[0].mxu0
    %v1032 = vadd.f32 %v787, %v1031
    %v1033 = vpop.f32.mrb[0].mxu0
    %1034 = vdwg.mxu0
    %v1036 = vsel %vm135, %v723, 0
    %1038 = vmatprep.subr.mxu0 0.0
    %1039 = vmatpush1.msra.mxu0 %v740
    %1040 = vmatprep.subr.mxu0 0.0
    %1041 = vmatpush1.msra.mxu0 %v741
    %1042 = vmatprep.subr.mxu0 0.0
    %1043 = vmatpush1.msra.mxu0 %v742
    %1044 = vmatprep.subr.mxu0 0.0
    %1045 = vmatpush1.msra.mxu0 %v743
    %1046 = vmatprep.subr.mxu0 0.0
    %1047 = vmatpush1.msra.mxu0 0.0
    %1048 = vmatprep.subr.mxu0 0.0
    %1049 = vmatpush1.msra.mxu0 0.0
    %1050 = vmatprep.subr.mxu0 0.0
    %1051 = vmatpush1.msra.mxu0 0.0
    %1052 = vmatprep.subr.mxu0 0.0
    %1053 = vmatpush1.msra.mxu0 0.0
    %1054 = vmatprep.subr.mxu0 0.0
    %1055 = vmatpush1.msra.mxu0 0.0
    %1056 = vmatprep.subr.mxu0 0.0
    %1057 = vmatpush1.msra.mxu0 0.0
    %1058 = vmatprep.subr.mxu0 0.0
    %1059 = vmatpush1.msra.mxu0 0.0
    %1060 = vmatprep.subr.mxu0 0.0
    %1061 = vmatpush1.msra.mxu0 0.0
    %1062 = vmatprep.subr.mxu0 0.0
    %1063 = vmatpush1.msra.mxu0 0.0
    %1064 = vmatprep.subr.mxu0 0.0
    %1065 = vmatpush1.msra.mxu0 0.0
    %1066 = vmatprep.subr.mxu0 0.0
    %1067 = vmatpush1.msra.mxu0 0.0
    %1068 = vmatprep.subr.mxu0 0.0
    %1069 = vmatpush1.msra.mxu0 0.0
    %1070 = vmatprep.subr.mxu0 0.0
    %1071 = vmatpush1.msra.mxu0 0.0
    %1072 = vmatprep.subr.mxu0 0.0
    %1073 = vmatpush1.msra.mxu0 0.0
    %1074 = vmatprep.subr.mxu0 0.0
    %1075 = vmatpush1.msra.mxu0 0.0
    %1076 = vmatprep.subr.mxu0 0.0
    %1077 = vmatpush1.msra.mxu0 0.0
    %1078 = vmatprep.subr.mxu0 0.0
    %1079 = vmatpush1.msra.mxu0 0.0
    %1080 = vmatprep.subr.mxu0 0.0
    %1081 = vmatpush1.msra.mxu0 0.0
    %1082 = vmatprep.subr.mxu0 0.0
    %1083 = vmatpush1.msra.mxu0 0.0
    %1084 = vmatprep.subr.mxu0 0.0
    %1085 = vmatpush1.msra.mxu0 0.0
    %1086 = vmatprep.subr.mxu0 0.0
    %1087 = vmatpush1.msra.mxu0 0.0
    %1088 = vmatprep.subr.mxu0 0.0
    %1089 = vmatpush1.msra.mxu0 0.0
    %1090 = vmatprep.subr.mxu0 0.0
    %1091 = vmatpush1.msra.mxu0 0.0
    %1092 = vmatprep.subr.mxu0 0.0
    %1093 = vmatpush1.msra.mxu0 0.0
    %1094 = vmatprep.subr.mxu0 0.0
    %1095 = vmatpush1.msra.mxu0 0.0
    %1096 = vmatprep.subr.mxu0 0.0
    %1097 = vmatpush1.msra.mxu0 0.0
    %1098 = vmatprep.subr.mxu0 0.0
    %1099 = vmatpush1.msra.mxu0 0.0
    %1100 = vmatprep.subr.mxu0 0.0
    %1101 = vmatpush1.msra.mxu0 0.0
    %1102 = vmatprep.mubr.f32.mxu0 0.0
    %1103 = vmatmul.mubr.f32.gmra.mrb[0].mxu0 %v1036
    %v1104 = vpop.f32.mrb[0].mxu0
    %v1105 = vadd.f32 %v791, %v1104
    %v1106 = vpop.f32.mrb[0].mxu0
    %1107 = vdwg.mxu0
    %v1109 = vsel %vm135, %v724, 0
    %1111 = vmatprep.subr.mxu0 0.0
    %1112 = vmatpush1.msra.mxu0 %v744
    %1113 = vmatprep.subr.mxu0 0.0
    %1114 = vmatpush1.msra.mxu0 %v745
    %1115 = vmatprep.subr.mxu0 0.0
    %1116 = vmatpush1.msra.mxu0 %v746
    %1117 = vmatprep.subr.mxu0 0.0
    %1118 = vmatpush1.msra.mxu0 %v747
    %1119 = vmatprep.subr.mxu0 0.0
    %1120 = vmatpush1.msra.mxu0 0.0
    %1121 = vmatprep.subr.mxu0 0.0
    %1122 = vmatpush1.msra.mxu0 0.0
    %1123 = vmatprep.subr.mxu0 0.0
    %1124 = vmatpush1.msra.mxu0 0.0
    %1125 = vmatprep.subr.mxu0 0.0
    %1126 = vmatpush1.msra.mxu0 0.0
    %1127 = vmatprep.subr.mxu0 0.0
    %1128 = vmatpush1.msra.mxu0 0.0
    %1129 = vmatprep.subr.mxu0 0.0
    %1130 = vmatpush1.msra.mxu0 0.0
    %1131 = vmatprep.subr.mxu0 0.0
    %1132 = vmatpush1.msra.mxu0 0.0
    %1133 = vmatprep.subr.mxu0 0.0
    %1134 = vmatpush1.msra.mxu0 0.0
    %1135 = vmatprep.subr.mxu0 0.0
    %1136 = vmatpush1.msra.mxu0 0.0
    %1137 = vmatprep.subr.mxu0 0.0
    %1138 = vmatpush1.msra.mxu0 0.0
    %1139 = vmatprep.subr.mxu0 0.0
    %1140 = vmatpush1.msra.mxu0 0.0
    %1141 = vmatprep.subr.mxu0 0.0
    %1142 = vmatpush1.msra.mxu0 0.0
    %1143 = vmatprep.subr.mxu0 0.0
    %1144 = vmatpush1.msra.mxu0 0.0
    %1145 = vmatprep.subr.mxu0 0.0
    %1146 = vmatpush1.msra.mxu0 0.0
    %1147 = vmatprep.subr.mxu0 0.0
    %1148 = vmatpush1.msra.mxu0 0.0
    %1149 = vmatprep.subr.mxu0 0.0
    %1150 = vmatpush1.msra.mxu0 0.0
    %1151 = vmatprep.subr.mxu0 0.0
    %1152 = vmatpush1.msra.mxu0 0.0
    %1153 = vmatprep.subr.mxu0 0.0
    %1154 = vmatpush1.msra.mxu0 0.0
    %1155 = vmatprep.subr.mxu0 0.0
    %1156 = vmatpush1.msra.mxu0 0.0
    %1157 = vmatprep.subr.mxu0 0.0
    %1158 = vmatpush1.msra.mxu0 0.0
    %1159 = vmatprep.subr.mxu0 0.0
    %1160 = vmatpush1.msra.mxu0 0.0
    %1161 = vmatprep.subr.mxu0 0.0
    %1162 = vmatpush1.msra.mxu0 0.0
    %1163 = vmatprep.subr.mxu0 0.0
    %1164 = vmatpush1.msra.mxu0 0.0
    %1165 = vmatprep.subr.mxu0 0.0
    %1166 = vmatpush1.msra.mxu0 0.0
    %1167 = vmatprep.subr.mxu0 0.0
    %1168 = vmatpush1.msra.mxu0 0.0
    %1169 = vmatprep.subr.mxu0 0.0
    %1170 = vmatpush1.msra.mxu0 0.0
    %1171 = vmatprep.subr.mxu0 0.0
    %1172 = vmatpush1.msra.mxu0 0.0
    %1173 = vmatprep.subr.mxu0 0.0
    %1174 = vmatpush1.msra.mxu0 0.0
    %1175 = vmatprep.mubr.f32.mxu0 0.0
    %1176 = vmatmul.mubr.f32.gmra.mrb[0].mxu0 %v1109
    %v1177 = vpop.f32.mrb[0].mxu0
    %v1178 = vadd.f32 %v795, %v1177
    %v1179 = vpop.f32.mrb[0].mxu0
    %1180 = vdwg.mxu0
    %v1182 = vsel %vm135, %v725, 0
    %1184 = vmatprep.subr.mxu0 0.0
    %1185 = vmatpush1.msra.mxu0 %v748
    %1186 = vmatprep.subr.mxu0 0.0
    %1187 = vmatpush1.msra.mxu0 %v749
    %1188 = vmatprep.subr.mxu0 0.0
    %1189 = vmatpush1.msra.mxu0 %v750
    %1190 = vmatprep.subr.mxu0 0.0
    %1191 = vmatpush1.msra.mxu0 %v751
    %1192 = vmatprep.subr.mxu0 0.0
    %1193 = vmatpush1.msra.mxu0 0.0
    %1194 = vmatprep.subr.mxu0 0.0
    %1195 = vmatpush1.msra.mxu0 0.0
    %1196 = vmatprep.subr.mxu0 0.0
    %1197 = vmatpush1.msra.mxu0 0.0
    %1198 = vmatprep.subr.mxu0 0.0
    %1199 = vmatpush1.msra.mxu0 0.0
    %1200 = vmatprep.subr.mxu0 0.0
    %1201 = vmatpush1.msra.mxu0 0.0
    %1202 = vmatprep.subr.mxu0 0.0
    %1203 = vmatpush1.msra.mxu0 0.0
    %1204 = vmatprep.subr.mxu0 0.0
    %1205 = vmatpush1.msra.mxu0 0.0
    %1206 = vmatprep.subr.mxu0 0.0
    %1207 = vmatpush1.msra.mxu0 0.0
    %1208 = vmatprep.subr.mxu0 0.0
    %1209 = vmatpush1.msra.mxu0 0.0
    %1210 = vmatprep.subr.mxu0 0.0
    %1211 = vmatpush1.msra.mxu0 0.0
    %1212 = vmatprep.subr.mxu0 0.0
    %1213 = vmatpush1.msra.mxu0 0.0
    %1214 = vmatprep.subr.mxu0 0.0
    %1215 = vmatpush1.msra.mxu0 0.0
    %1216 = vmatprep.subr.mxu0 0.0
    %1217 = vmatpush1.msra.mxu0 0.0
    %1218 = vmatprep.subr.mxu0 0.0
    %1219 = vmatpush1.msra.mxu0 0.0
    %1220 = vmatprep.subr.mxu0 0.0
    %1221 = vmatpush1.msra.mxu0 0.0
    %1222 = vmatprep.subr.mxu0 0.0
    %1223 = vmatpush1.msra.mxu0 0.0
    %1224 = vmatprep.subr.mxu0 0.0
    %1225 = vmatpush1.msra.mxu0 0.0
    %1226 = vmatprep.subr.mxu0 0.0
    %1227 = vmatpush1.msra.mxu0 0.0
    %1228 = vmatprep.subr.mxu0 0.0
    %1229 = vmatpush1.msra.mxu0 0.0
    %1230 = vmatprep.subr.mxu0 0.0
    %1231 = vmatpush1.msra.mxu0 0.0
    %1232 = vmatprep.subr.mxu0 0.0
    %1233 = vmatpush1.msra.mxu0 0.0
    %1234 = vmatprep.subr.mxu0 0.0
    %1235 = vmatpush1.msra.mxu0 0.0
    %1236 = vmatprep.subr.mxu0 0.0
    %1237 = vmatpush1.msra.mxu0 0.0
    %1238 = vmatprep.subr.mxu0 0.0
    %1239 = vmatpush1.msra.mxu0 0.0
    %1240 = vmatprep.subr.mxu0 0.0
    %1241 = vmatpush1.msra.mxu0 0.0
    %1242 = vmatprep.subr.mxu0 0.0
    %1243 = vmatpush1.msra.mxu0 0.0
    %1244 = vmatprep.subr.mxu0 0.0
    %1245 = vmatpush1.msra.mxu0 0.0
    %1246 = vmatprep.subr.mxu0 0.0
    %1247 = vmatpush1.msra.mxu0 0.0
    %1248 = vmatprep.mubr.f32.mxu0 0.0
    %1249 = vmatmul.mubr.f32.gmra.mrb[0].mxu0 %v1182
    %v1250 = vpop.f32.mrb[0].mxu0
    %v1251 = vadd.f32 %v799, %v1250
    %v1252 = vpop.f32.mrb[0].mxu0
    %1253 = vdwg.mxu0
    %v1255 = vsel %vm135, %v726, 0
    %1257 = vmatprep.subr.mxu0 0.0
    %1258 = vmatpush1.msra.mxu0 %v752
    %1259 = vmatprep.subr.mxu0 0.0
    %1260 = vmatpush1.msra.mxu0 %v753
    %1261 = vmatprep.subr.mxu0 0.0
    %1262 = vmatpush1.msra.mxu0 %v754
    %1263 = vmatprep.subr.mxu0 0.0
    %1264 = vmatpush1.msra.mxu0 %v755
    %1265 = vmatprep.subr.mxu0 0.0
    %1266 = vmatpush1.msra.mxu0 0.0
    %1267 = vmatprep.subr.mxu0 0.0
    %1268 = vmatpush1.msra.mxu0 0.0
    %1269 = vmatprep.subr.mxu0 0.0
    %1270 = vmatpush1.msra.mxu0 0.0
    %1271 = vmatprep.subr.mxu0 0.0
    %1272 = vmatpush1.msra.mxu0 0.0
    %1273 = vmatprep.subr.mxu0 0.0
    %1274 = vmatpush1.msra.mxu0 0.0
    %1275 = vmatprep.subr.mxu0 0.0
    %1276 = vmatpush1.msra.mxu0 0.0
    %1277 = vmatprep.subr.mxu0 0.0
    %1278 = vmatpush1.msra.mxu0 0.0
    %1279 = vmatprep.subr.mxu0 0.0
    %1280 = vmatpush1.msra.mxu0 0.0
    %1281 = vmatprep.subr.mxu0 0.0
    %1282 = vmatpush1.msra.mxu0 0.0
    %1283 = vmatprep.subr.mxu0 0.0
    %1284 = vmatpush1.msra.mxu0 0.0
    %1285 = vmatprep.subr.mxu0 0.0
    %1286 = vmatpush1.msra.mxu0 0.0
    %1287 = vmatprep.subr.mxu0 0.0
    %1288 = vmatpush1.msra.mxu0 0.0
    %1289 = vmatprep.subr.mxu0 0.0
    %1290 = vmatpush1.msra.mxu0 0.0
    %1291 = vmatprep.subr.mxu0 0.0
    %1292 = vmatpush1.msra.mxu0 0.0
    %1293 = vmatprep.subr.mxu0 0.0
    %1294 = vmatpush1.msra.mxu0 0.0
    %1295 = vmatprep.subr.mxu0 0.0
    %1296 = vmatpush1.msra.mxu0 0.0
    %1297 = vmatprep.subr.mxu0 0.0
    %1298 = vmatpush1.msra.mxu0 0.0
    %1299 = vmatprep.subr.mxu0 0.0
    %1300 = vmatpush1.msra.mxu0 0.0
    %1301 = vmatprep.subr.mxu0 0.0
    %1302 = vmatpush1.msra.mxu0 0.0
    %1303 = vmatprep.subr.mxu0 0.0
    %1304 = vmatpush1.msra.mxu0 0.0
    %1305 = vmatprep.subr.mxu0 0.0
    %1306 = vmatpush1.msra.mxu0 0.0
    %1307 = vmatprep.subr.mxu0 0.0
    %1308 = vmatpush1.msra.mxu0 0.0
    %1309 = vmatprep.subr.mxu0 0.0
    %1310 = vmatpush1.msra.mxu0 0.0
    %1311 = vmatprep.subr.mxu0 0.0
    %1312 = vmatpush1.msra.mxu0 0.0
    %1313 = vmatprep.subr.mxu0 0.0
    %1314 = vmatpush1.msra.mxu0 0.0
    %1315 = vmatprep.subr.mxu0 0.0
    %1316 = vmatpush1.msra.mxu0 0.0
    %1317 = vmatprep.subr.mxu0 0.0
    %1318 = vmatpush1.msra.mxu0 0.0
    %1319 = vmatprep.subr.mxu0 0.0
    %1320 = vmatpush1.msra.mxu0 0.0
    %1321 = vmatprep.mubr.f32.mxu0 0.0
    %1322 = vmatmul.mubr.f32.gmra.mrb[0].mxu0 %v1255
    %v1323 = vpop.f32.mrb[0].mxu0
    %v1324 = vadd.f32 %v803, %v1323
    %v1325 = vpop.f32.mrb[0].mxu0
    %1326 = vdwg.mxu0
    %v1328 = vsel %vm135, %v727, 0
    %1330 = vmatprep.subr.mxu0 0.0
    %1331 = vmatpush1.msra.mxu0 %v756
    %1332 = vmatprep.subr.mxu0 0.0
    %1333 = vmatpush1.msra.mxu0 %v757
    %1334 = vmatprep.subr.mxu0 0.0
    %1335 = vmatpush1.msra.mxu0 %v758
    %1336 = vmatprep.subr.mxu0 0.0
    %1337 = vmatpush1.msra.mxu0 %v759
    %1338 = vmatprep.subr.mxu0 0.0
    %1339 = vmatpush1.msra.mxu0 0.0
    %1340 = vmatprep.subr.mxu0 0.0
    %1341 = vmatpush1.msra.mxu0 0.0
    %1342 = vmatprep.subr.mxu0 0.0
    %1343 = vmatpush1.msra.mxu0 0.0
    %1344 = vmatprep.subr.mxu0 0.0
    %1345 = vmatpush1.msra.mxu0 0.0
    %1346 = vmatprep.subr.mxu0 0.0
    %1347 = vmatpush1.msra.mxu0 0.0
    %1348 = vmatprep.subr.mxu0 0.0
    %1349 = vmatpush1.msra.mxu0 0.0
    %1350 = vmatprep.subr.mxu0 0.0
    %1351 = vmatpush1.msra.mxu0 0.0
    %1352 = vmatprep.subr.mxu0 0.0
    %1353 = vmatpush1.msra.mxu0 0.0
    %1354 = vmatprep.subr.mxu0 0.0
    %1355 = vmatpush1.msra.mxu0 0.0
    %1356 = vmatprep.subr.mxu0 0.0
    %1357 = vmatpush1.msra.mxu0 0.0
    %1358 = vmatprep.subr.mxu0 0.0
    %1359 = vmatpush1.msra.mxu0 0.0
    %1360 = vmatprep.subr.mxu0 0.0
    %1361 = vmatpush1.msra.mxu0 0.0
    %1362 = vmatprep.subr.mxu0 0.0
    %1363 = vmatpush1.msra.mxu0 0.0
    %1364 = vmatprep.subr.mxu0 0.0
    %1365 = vmatpush1.msra.mxu0 0.0
    %1366 = vmatprep.subr.mxu0 0.0
    %1367 = vmatpush1.msra.mxu0 0.0
    %1368 = vmatprep.subr.mxu0 0.0
    %1369 = vmatpush1.msra.mxu0 0.0
    %1370 = vmatprep.subr.mxu0 0.0
    %1371 = vmatpush1.msra.mxu0 0.0
    %1372 = vmatprep.subr.mxu0 0.0
    %1373 = vmatpush1.msra.mxu0 0.0
    %1374 = vmatprep.subr.mxu0 0.0
    %1375 = vmatpush1.msra.mxu0 0.0
    %1376 = vmatprep.subr.mxu0 0.0
    %1377 = vmatpush1.msra.mxu0 0.0
    %1378 = vmatprep.subr.mxu0 0.0
    %1379 = vmatpush1.msra.mxu0 0.0
    %1380 = vmatprep.subr.mxu0 0.0
    %1381 = vmatpush1.msra.mxu0 0.0
    %1382 = vmatprep.subr.mxu0 0.0
    %1383 = vmatpush1.msra.mxu0 0.0
    %1384 = vmatprep.subr.mxu0 0.0
    %1385 = vmatpush1.msra.mxu0 0.0
    %1386 = vmatprep.subr.mxu0 0.0
    %1387 = vmatpush1.msra.mxu0 0.0
    %1388 = vmatprep.subr.mxu0 0.0
    %1389 = vmatpush1.msra.mxu0 0.0
    %1390 = vmatprep.subr.mxu0 0.0
    %1391 = vmatpush1.msra.mxu0 0.0
    %1392 = vmatprep.subr.mxu0 0.0
    %1393 = vmatpush1.msra.mxu0 0.0
    %1394 = vmatprep.mubr.f32.mxu0 0.0
    %1395 = vmatmul.mubr.f32.gmra.mrb[0].mxu0 %v1328
    %v1396 = vpop.f32.mrb[0].mxu0
    %v1397 = vadd.f32 %v807, %v1396
    %v1398 = vpop.f32.mrb[0].mxu0
    %1399 = vdwg.mxu0
    %v1400 = vld [vmem:[%s2] sm:$0xff]
    %v1401 = vld [vmem:[%s2 + $0x8] sm:$0xff]
    %v1402 = vld [vmem:[%s2 + $0x10] sm:$0xff]
    %v1403 = vld [vmem:[%s2 + $0x18] sm:$0xff]
    %v1404 = vld [vmem:[%s2 + $0x20] sm:$0xff]
    %v1405 = vld [vmem:[%s2 + $0x28] sm:$0xff]
    %v1406 = vld [vmem:[%s2 + $0x30] sm:$0xff]
    %v1407 = vld [vmem:[%s2 + $0x38] sm:$0xff]
    %v1408 = vld [vmem:[%s7] sm:$0xff]
    %v1409 = vld [vmem:[%s7 + $0x8] sm:$0xff]
    %v1410 = vld [vmem:[%s7 + $0x10] sm:$0xff]
    %v1411 = vld [vmem:[%s7 + $0x18] sm:$0xff]
    %v1412 = vld [vmem:[%s7 + $0x20] sm:$0xff]
    %v1413 = vld [vmem:[%s7 + $0x28] sm:$0xff]
    %v1414 = vld [vmem:[%s7 + $0x30] sm:$0xff]
    %v1415 = vld [vmem:[%s7 + $0x38] sm:$0xff]
    %v1416 = vld [vmem:[%s7 + $0x40] sm:$0xff]
    %v1417 = vld [vmem:[%s7 + $0x48] sm:$0xff]
    %v1418 = vld [vmem:[%s7 + $0x50] sm:$0xff]
    %v1419 = vld [vmem:[%s7 + $0x58] sm:$0xff]
    %v1420 = vld [vmem:[%s7 + $0x60] sm:$0xff]
    %v1421 = vld [vmem:[%s7 + $0x68] sm:$0xff]
    %v1422 = vld [vmem:[%s7 + $0x70] sm:$0xff]
    %v1423 = vld [vmem:[%s7 + $0x78] sm:$0xff]
    %v1424 = vld [vmem:[%s7 + $0x80] sm:$0xff]
    %v1425 = vld [vmem:[%s7 + $0x88] sm:$0xff]
    %v1426 = vld [vmem:[%s7 + $0x90] sm:$0xff]
    %v1427 = vld [vmem:[%s7 + $0x98] sm:$0xff]
    %v1428 = vld [vmem:[%s7 + $0xa0] sm:$0xff]
    %v1429 = vld [vmem:[%s7 + $0xa8] sm:$0xff]
    %v1430 = vld [vmem:[%s7 + $0xb0] sm:$0xff]
    %v1431 = vld [vmem:[%s7 + $0xb8] sm:$0xff]
    %v1432 = vld [vmem:[%s7 + $0xc0] sm:$0xff]
    %v1433 = vld [vmem:[%s7 + $0xc8] sm:$0xff]
    %v1434 = vld [vmem:[%s7 + $0xd0] sm:$0xff]
    %v1435 = vld [vmem:[%s7 + $0xd8] sm:$0xff]
    %v1436 = vld [vmem:[%s7 + $0xe0] sm:$0xff]
    %v1437 = vld [vmem:[%s7 + $0xe8] sm:$0xff]
    %v1438 = vld [vmem:[%s7 + $0xf0] sm:$0xff]
    %v1439 = vld [vmem:[%s7 + $0xf8] sm:$0xff]
    %v1440 = vld [vmem:[%s8] sm:$0x1]
    %v1441 = vld [vmem:[%s8 + $0x1] sm:$0x1]
    %v1442 = vld [vmem:[%s8 + $0x2] sm:$0x1]
    %v1443 = vld [vmem:[%s8 + $0x3] sm:$0x1]
    %v1444 = vld [vmem:[%s8 + $0x4] sm:$0x1]
    %v1445 = vld [vmem:[%s8 + $0x5] sm:$0x1]
    %v1446 = vld [vmem:[%s8 + $0x6] sm:$0x1]
    %v1447 = vld [vmem:[%s8 + $0x7] sm:$0x1]
    %v1456 = vlaneseq
    %v1457 = vshrl.u32 %v1456, 7
    %v1458 = vsub.s32 0, %v1457
    %v1459 = vrot.slane %v1440, %v1458
    %v1460 = vlaneseq
    %v1461 = vshrl.u32 %v1460, 7
    %v1462 = vsub.s32 0, %v1461
    %v1463 = vrot.slane %v1441, %v1462
    %v1464 = vlaneseq
    %v1465 = vshrl.u32 %v1464, 7
    %v1466 = vsub.s32 0, %v1465
    %v1467 = vrot.slane %v1442, %v1466
    %v1468 = vlaneseq
    %v1469 = vshrl.u32 %v1468, 7
    %v1470 = vsub.s32 0, %v1469
    %v1471 = vrot.slane %v1443, %v1470
    %v1472 = vlaneseq
    %v1473 = vshrl.u32 %v1472, 7
    %v1474 = vsub.s32 0, %v1473
    %v1475 = vrot.slane %v1444, %v1474
    %v1476 = vlaneseq
    %v1477 = vshrl.u32 %v1476, 7
    %v1478 = vsub.s32 0, %v1477
    %v1479 = vrot.slane %v1445, %v1478
    %v1480 = vlaneseq
    %v1481 = vshrl.u32 %v1480, 7
    %v1482 = vsub.s32 0, %v1481
    %v1483 = vrot.slane %v1446, %v1482
    %v1484 = vlaneseq
    %v1485 = vshrl.u32 %v1484, 7
    %v1486 = vsub.s32 0, %v1485
    %v1487 = vrot.slane %v1447, %v1486
    %v1497 = vsel %vm135, %v1400, 0
    %1499 = vmatprep.subr.mxu0 0.0
    %1500 = vmatpush1.msra.mxu0 %v1408
    %1501 = vmatprep.subr.mxu0 0.0
    %1502 = vmatpush1.msra.mxu0 %v1409
    %1503 = vmatprep.subr.mxu0 0.0
    %1504 = vmatpush1.msra.mxu0 %v1410
    %1505 = vmatprep.subr.mxu0 0.0
    %1506 = vmatpush1.msra.mxu0 %v1411
    %1507 = vmatprep.subr.mxu0 0.0
    %1508 = vmatpush1.msra.mxu0 0.0
    %1509 = vmatprep.subr.mxu0 0.0
    %1510 = vmatpush1.msra.mxu0 0.0
    %1511 = vmatprep.subr.mxu0 0.0
    %1512 = vmatpush1.msra.mxu0 0.0
    %1513 = vmatprep.subr.mxu0 0.0
    %1514 = vmatpush1.msra.mxu0 0.0
    %1515 = vmatprep.subr.mxu0 0.0
    %1516 = vmatpush1.msra.mxu0 0.0
    %1517 = vmatprep.subr.mxu0 0.0
    %1518 = vmatpush1.msra.mxu0 0.0
    %1519 = vmatprep.subr.mxu0 0.0
    %1520 = vmatpush1.msra.mxu0 0.0
    %1521 = vmatprep.subr.mxu0 0.0
    %1522 = vmatpush1.msra.mxu0 0.0
    %1523 = vmatprep.subr.mxu0 0.0
    %1524 = vmatpush1.msra.mxu0 0.0
    %1525 = vmatprep.subr.mxu0 0.0
    %1526 = vmatpush1.msra.mxu0 0.0
    %1527 = vmatprep.subr.mxu0 0.0
    %1528 = vmatpush1.msra.mxu0 0.0
    %1529 = vmatprep.subr.mxu0 0.0
    %1530 = vmatpush1.msra.mxu0 0.0
    %1531 = vmatprep.subr.mxu0 0.0
    %1532 = vmatpush1.msra.mxu0 0.0
    %1533 = vmatprep.subr.mxu0 0.0
    %1534 = vmatpush1.msra.mxu0 0.0
    %1535 = vmatprep.subr.mxu0 0.0
    %1536 = vmatpush1.msra.mxu0 0.0
    %1537 = vmatprep.subr.mxu0 0.0
    %1538 = vmatpush1.msra.mxu0 0.0
    %1539 = vmatprep.subr.mxu0 0.0
    %1540 = vmatpush1.msra.mxu0 0.0
    %1541 = vmatprep.subr.mxu0 0.0
    %1542 = vmatpush1.msra.mxu0 0.0
    %1543 = vmatprep.subr.mxu0 0.0
    %1544 = vmatpush1.msra.mxu0 0.0
    %1545 = vmatprep.subr.mxu0 0.0
    %1546 = vmatpush1.msra.mxu0 0.0
    %1547 = vmatprep.subr.mxu0 0.0
    %1548 = vmatpush1.msra.mxu0 0.0
    %1549 = vmatprep.subr.mxu0 0.0
    %1550 = vmatpush1.msra.mxu0 0.0
    %1551 = vmatprep.subr.mxu0 0.0
    %1552 = vmatpush1.msra.mxu0 0.0
    %1553 = vmatprep.subr.mxu0 0.0
    %1554 = vmatpush1.msra.mxu0 0.0
    %1555 = vmatprep.subr.mxu0 0.0
    %1556 = vmatpush1.msra.mxu0 0.0
    %1557 = vmatprep.subr.mxu0 0.0
    %1558 = vmatpush1.msra.mxu0 0.0
    %1559 = vmatprep.subr.mxu0 0.0
    %1560 = vmatpush1.msra.mxu0 0.0
    %1561 = vmatprep.subr.mxu0 0.0
    %1562 = vmatpush1.msra.mxu0 0.0
    %1563 = vmatprep.mubr.f32.mxu0 0.0
    %1564 = vmatmul.mubr.f32.gmra.mrb[0].mxu0 %v1497
    %v1565 = vpop.f32.mrb[0].mxu0
    %v1566 = vadd.f32 %v1459, %v1565
    %v1567 = vpop.f32.mrb[0].mxu0
    %1568 = vdwg.mxu0
    %v1570 = vsel %vm135, %v1401, 0
    %1572 = vmatprep.subr.mxu0 0.0
    %1573 = vmatpush1.msra.mxu0 %v1412
    %1574 = vmatprep.subr.mxu0 0.0
    %1575 = vmatpush1.msra.mxu0 %v1413
    %1576 = vmatprep.subr.mxu0 0.0
    %1577 = vmatpush1.msra.mxu0 %v1414
    %1578 = vmatprep.subr.mxu0 0.0
    %1579 = vmatpush1.msra.mxu0 %v1415
    %1580 = vmatprep.subr.mxu0 0.0
    %1581 = vmatpush1.msra.mxu0 0.0
    %1582 = vmatprep.subr.mxu0 0.0
    %1583 = vmatpush1.msra.mxu0 0.0
    %1584 = vmatprep.subr.mxu0 0.0
    %1585 = vmatpush1.msra.mxu0 0.0
    %1586 = vmatprep.subr.mxu0 0.0
    %1587 = vmatpush1.msra.mxu0 0.0
    %1588 = vmatprep.subr.mxu0 0.0
    %1589 = vmatpush1.msra.mxu0 0.0
    %1590 = vmatprep.subr.mxu0 0.0
    %1591 = vmatpush1.msra.mxu0 0.0
    %1592 = vmatprep.subr.mxu0 0.0
    %1593 = vmatpush1.msra.mxu0 0.0
    %1594 = vmatprep.subr.mxu0 0.0
    %1595 = vmatpush1.msra.mxu0 0.0
    %1596 = vmatprep.subr.mxu0 0.0
    %1597 = vmatpush1.msra.mxu0 0.0
    %1598 = vmatprep.subr.mxu0 0.0
    %1599 = vmatpush1.msra.mxu0 0.0
    %1600 = vmatprep.subr.mxu0 0.0
    %1601 = vmatpush1.msra.mxu0 0.0
    %1602 = vmatprep.subr.mxu0 0.0
    %1603 = vmatpush1.msra.mxu0 0.0
    %1604 = vmatprep.subr.mxu0 0.0
    %1605 = vmatpush1.msra.mxu0 0.0
    %1606 = vmatprep.subr.mxu0 0.0
    %1607 = vmatpush1.msra.mxu0 0.0
    %1608 = vmatprep.subr.mxu0 0.0
    %1609 = vmatpush1.msra.mxu0 0.0
    %1610 = vmatprep.subr.mxu0 0.0
    %1611 = vmatpush1.msra.mxu0 0.0
    %1612 = vmatprep.subr.mxu0 0.0
    %1613 = vmatpush1.msra.mxu0 0.0
    %1614 = vmatprep.subr.mxu0 0.0
    %1615 = vmatpush1.msra.mxu0 0.0
    %1616 = vmatprep.subr.mxu0 0.0
    %1617 = vmatpush1.msra.mxu0 0.0
    %1618 = vmatprep.subr.mxu0 0.0
    %1619 = vmatpush1.msra.mxu0 0.0
    %1620 = vmatprep.subr.mxu0 0.0
    %1621 = vmatpush1.msra.mxu0 0.0
    %1622 = vmatprep.subr.mxu0 0.0
    %1623 = vmatpush1.msra.mxu0 0.0
    %1624 = vmatprep.subr.mxu0 0.0
    %1625 = vmatpush1.msra.mxu0 0.0
    %1626 = vmatprep.subr.mxu0 0.0
    %1627 = vmatpush1.msra.mxu0 0.0
    %1628 = vmatprep.subr.mxu0 0.0
    %1629 = vmatpush1.msra.mxu0 0.0
    %1630 = vmatprep.subr.mxu0 0.0
    %1631 = vmatpush1.msra.mxu0 0.0
    %1632 = vmatprep.subr.mxu0 0.0
    %1633 = vmatpush1.msra.mxu0 0.0
    %1634 = vmatprep.subr.mxu0 0.0
    %1635 = vmatpush1.msra.mxu0 0.0
    %1636 = vmatprep.mubr.f32.mxu0 0.0
    %1637 = vmatmul.mubr.f32.gmra.mrb[0].mxu0 %v1570
    %v1638 = vpop.f32.mrb[0].mxu0
    %v1639 = vadd.f32 %v1463, %v1638
    %v1640 = vpop.f32.mrb[0].mxu0
    %1641 = vdwg.mxu0
    %v1643 = vsel %vm135, %v1402, 0
    %1645 = vmatprep.subr.mxu0 0.0
    %1646 = vmatpush1.msra.mxu0 %v1416
    %1647 = vmatprep.subr.mxu0 0.0
    %1648 = vmatpush1.msra.mxu0 %v1417
    %1649 = vmatprep.subr.mxu0 0.0
    %1650 = vmatpush1.msra.mxu0 %v1418
    %1651 = vmatprep.subr.mxu0 0.0
    %1652 = vmatpush1.msra.mxu0 %v1419
    %1653 = vmatprep.subr.mxu0 0.0
    %1654 = vmatpush1.msra.mxu0 0.0
    %1655 = vmatprep.subr.mxu0 0.0
    %1656 = vmatpush1.msra.mxu0 0.0
    %1657 = vmatprep.subr.mxu0 0.0
    %1658 = vmatpush1.msra.mxu0 0.0
    %1659 = vmatprep.subr.mxu0 0.0
    %1660 = vmatpush1.msra.mxu0 0.0
    %1661 = vmatprep.subr.mxu0 0.0
    %1662 = vmatpush1.msra.mxu0 0.0
    %1663 = vmatprep.subr.mxu0 0.0
    %1664 = vmatpush1.msra.mxu0 0.0
    %1665 = vmatprep.subr.mxu0 0.0
    %1666 = vmatpush1.msra.mxu0 0.0
    %1667 = vmatprep.subr.mxu0 0.0
    %1668 = vmatpush1.msra.mxu0 0.0
    %1669 = vmatprep.subr.mxu0 0.0
    %1670 = vmatpush1.msra.mxu0 0.0
    %1671 = vmatprep.subr.mxu0 0.0
    %1672 = vmatpush1.msra.mxu0 0.0
    %1673 = vmatprep.subr.mxu0 0.0
    %1674 = vmatpush1.msra.mxu0 0.0
    %1675 = vmatprep.subr.mxu0 0.0
    %1676 = vmatpush1.msra.mxu0 0.0
    %1677 = vmatprep.subr.mxu0 0.0
    %1678 = vmatpush1.msra.mxu0 0.0
    %1679 = vmatprep.subr.mxu0 0.0
    %1680 = vmatpush1.msra.mxu0 0.0
    %1681 = vmatprep.subr.mxu0 0.0
    %1682 = vmatpush1.msra.mxu0 0.0
    %1683 = vmatprep.subr.mxu0 0.0
    %1684 = vmatpush1.msra.mxu0 0.0
    %1685 = vmatprep.subr.mxu0 0.0
    %1686 = vmatpush1.msra.mxu0 0.0
    %1687 = vmatprep.subr.mxu0 0.0
    %1688 = vmatpush1.msra.mxu0 0.0
    %1689 = vmatprep.subr.mxu0 0.0
    %1690 = vmatpush1.msra.mxu0 0.0
    %1691 = vmatprep.subr.mxu0 0.0
    %1692 = vmatpush1.msra.mxu0 0.0
    %1693 = vmatprep.subr.mxu0 0.0
    %1694 = vmatpush1.msra.mxu0 0.0
    %1695 = vmatprep.subr.mxu0 0.0
    %1696 = vmatpush1.msra.mxu0 0.0
    %1697 = vmatprep.subr.mxu0 0.0
    %1698 = vmatpush1.msra.mxu0 0.0
    %1699 = vmatprep.subr.mxu0 0.0
    %1700 = vmatpush1.msra.mxu0 0.0
    %1701 = vmatprep.subr.mxu0 0.0
    %1702 = vmatpush1.msra.mxu0 0.0
    %1703 = vmatprep.subr.mxu0 0.0
    %1704 = vmatpush1.msra.mxu0 0.0
    %1705 = vmatprep.subr.mxu0 0.0
    %1706 = vmatpush1.msra.mxu0 0.0
    %1707 = vmatprep.subr.mxu0 0.0
    %1708 = vmatpush1.msra.mxu0 0.0
    %1709 = vmatprep.mubr.f32.mxu0 0.0
    %1710 = vmatmul.mubr.f32.gmra.mrb[0].mxu0 %v1643
    %v1711 = vpop.f32.mrb[0].mxu0
    %v1712 = vadd.f32 %v1467, %v1711
    %v1713 = vpop.f32.mrb[0].mxu0
    %1714 = vdwg.mxu0
    %v1716 = vsel %vm135, %v1403, 0
    %1718 = vmatprep.subr.mxu0 0.0
    %1719 = vmatpush1.msra.mxu0 %v1420
    %1720 = vmatprep.subr.mxu0 0.0
    %1721 = vmatpush1.msra.mxu0 %v1421
    %1722 = vmatprep.subr.mxu0 0.0
    %1723 = vmatpush1.msra.mxu0 %v1422
    %1724 = vmatprep.subr.mxu0 0.0
    %1725 = vmatpush1.msra.mxu0 %v1423
    %1726 = vmatprep.subr.mxu0 0.0
    %1727 = vmatpush1.msra.mxu0 0.0
    %1728 = vmatprep.subr.mxu0 0.0
    %1729 = vmatpush1.msra.mxu0 0.0
    %1730 = vmatprep.subr.mxu0 0.0
    %1731 = vmatpush1.msra.mxu0 0.0
    %1732 = vmatprep.subr.mxu0 0.0
    %1733 = vmatpush1.msra.mxu0 0.0
    %1734 = vmatprep.subr.mxu0 0.0
    %1735 = vmatpush1.msra.mxu0 0.0
    %1736 = vmatprep.subr.mxu0 0.0
    %1737 = vmatpush1.msra.mxu0 0.0
    %1738 = vmatprep.subr.mxu0 0.0
    %1739 = vmatpush1.msra.mxu0 0.0
    %1740 = vmatprep.subr.mxu0 0.0
    %1741 = vmatpush1.msra.mxu0 0.0
    %1742 = vmatprep.subr.mxu0 0.0
    %1743 = vmatpush1.msra.mxu0 0.0
    %1744 = vmatprep.subr.mxu0 0.0
    %1745 = vmatpush1.msra.mxu0 0.0
    %1746 = vmatprep.subr.mxu0 0.0
    %1747 = vmatpush1.msra.mxu0 0.0
    %1748 = vmatprep.subr.mxu0 0.0
    %1749 = vmatpush1.msra.mxu0 0.0
    %1750 = vmatprep.subr.mxu0 0.0
    %1751 = vmatpush1.msra.mxu0 0.0
    %1752 = vmatprep.subr.mxu0 0.0
    %1753 = vmatpush1.msra.mxu0 0.0
    %1754 = vmatprep.subr.mxu0 0.0
    %1755 = vmatpush1.msra.mxu0 0.0
    %1756 = vmatprep.subr.mxu0 0.0
    %1757 = vmatpush1.msra.mxu0 0.0
    %1758 = vmatprep.subr.mxu0 0.0
    %1759 = vmatpush1.msra.mxu0 0.0
    %1760 = vmatprep.subr.mxu0 0.0
    %1761 = vmatpush1.msra.mxu0 0.0
    %1762 = vmatprep.subr.mxu0 0.0
    %1763 = vmatpush1.msra.mxu0 0.0
    %1764 = vmatprep.subr.mxu0 0.0
    %1765 = vmatpush1.msra.mxu0 0.0
    %1766 = vmatprep.subr.mxu0 0.0
    %1767 = vmatpush1.msra.mxu0 0.0
    %1768 = vmatprep.subr.mxu0 0.0
    %1769 = vmatpush1.msra.mxu0 0.0
    %1770 = vmatprep.subr.mxu0 0.0
    %1771 = vmatpush1.msra.mxu0 0.0
    %1772 = vmatprep.subr.mxu0 0.0
    %1773 = vmatpush1.msra.mxu0 0.0
    %1774 = vmatprep.subr.mxu0 0.0
    %1775 = vmatpush1.msra.mxu0 0.0
    %1776 = vmatprep.subr.mxu0 0.0
    %1777 = vmatpush1.msra.mxu0 0.0
    %1778 = vmatprep.subr.mxu0 0.0
    %1779 = vmatpush1.msra.mxu0 0.0
    %1780 = vmatprep.subr.mxu0 0.0
    %1781 = vmatpush1.msra.mxu0 0.0
    %1782 = vmatprep.mubr.f32.mxu0 0.0
    %1783 = vmatmul.mubr.f32.gmra.mrb[0].mxu0 %v1716
    %v1784 = vpop.f32.mrb[0].mxu0
    %v1785 = vadd.f32 %v1471, %v1784
    %v1786 = vpop.f32.mrb[0].mxu0
    %1787 = vdwg.mxu0
    %v1789 = vsel %vm135, %v1404, 0
    %1791 = vmatprep.subr.mxu0 0.0
    %1792 = vmatpush1.msra.mxu0 %v1424
    %1793 = vmatprep.subr.mxu0 0.0
    %1794 = vmatpush1.msra.mxu0 %v1425
    %1795 = vmatprep.subr.mxu0 0.0
    %1796 = vmatpush1.msra.mxu0 %v1426
    %1797 = vmatprep.subr.mxu0 0.0
    %1798 = vmatpush1.msra.mxu0 %v1427
    %1799 = vmatprep.subr.mxu0 0.0
    %1800 = vmatpush1.msra.mxu0 0.0
    %1801 = vmatprep.subr.mxu0 0.0
    %1802 = vmatpush1.msra.mxu0 0.0
    %1803 = vmatprep.subr.mxu0 0.0
    %1804 = vmatpush1.msra.mxu0 0.0
    %1805 = vmatprep.subr.mxu0 0.0
    %1806 = vmatpush1.msra.mxu0 0.0
    %1807 = vmatprep.subr.mxu0 0.0
    %1808 = vmatpush1.msra.mxu0 0.0
    %1809 = vmatprep.subr.mxu0 0.0
    %1810 = vmatpush1.msra.mxu0 0.0
    %1811 = vmatprep.subr.mxu0 0.0
    %1812 = vmatpush1.msra.mxu0 0.0
    %1813 = vmatprep.subr.mxu0 0.0
    %1814 = vmatpush1.msra.mxu0 0.0
    %1815 = vmatprep.subr.mxu0 0.0
    %1816 = vmatpush1.msra.mxu0 0.0
    %1817 = vmatprep.subr.mxu0 0.0
    %1818 = vmatpush1.msra.mxu0 0.0
    %1819 = vmatprep.subr.mxu0 0.0
    %1820 = vmatpush1.msra.mxu0 0.0
    %1821 = vmatprep.subr.mxu0 0.0
    %1822 = vmatpush1.msra.mxu0 0.0
    %1823 = vmatprep.subr.mxu0 0.0
    %1824 = vmatpush1.msra.mxu0 0.0
    %1825 = vmatprep.subr.mxu0 0.0
    %1826 = vmatpush1.msra.mxu0 0.0
    %1827 = vmatprep.subr.mxu0 0.0
    %1828 = vmatpush1.msra.mxu0 0.0
    %1829 = vmatprep.subr.mxu0 0.0
    %1830 = vmatpush1.msra.mxu0 0.0
    %1831 = vmatprep.subr.mxu0 0.0
    %1832 = vmatpush1.msra.mxu0 0.0
    %1833 = vmatprep.subr.mxu0 0.0
    %1834 = vmatpush1.msra.mxu0 0.0
    %1835 = vmatprep.subr.mxu0 0.0
    %1836 = vmatpush1.msra.mxu0 0.0
    %1837 = vmatprep.subr.mxu0 0.0
    %1838 = vmatpush1.msra.mxu0 0.0
    %1839 = vmatprep.subr.mxu0 0.0
    %1840 = vmatpush1.msra.mxu0 0.0
    %1841 = vmatprep.subr.mxu0 0.0
    %1842 = vmatpush1.msra.mxu0 0.0
    %1843 = vmatprep.subr.mxu0 0.0
    %1844 = vmatpush1.msra.mxu0 0.0
    %1845 = vmatprep.subr.mxu0 0.0
    %1846 = vmatpush1.msra.mxu0 0.0
    %1847 = vmatprep.subr.mxu0 0.0
    %1848 = vmatpush1.msra.mxu0 0.0
    %1849 = vmatprep.subr.mxu0 0.0
    %1850 = vmatpush1.msra.mxu0 0.0
    %1851 = vmatprep.subr.mxu0 0.0
    %1852 = vmatpush1.msra.mxu0 0.0
    %1853 = vmatprep.subr.mxu0 0.0
    %1854 = vmatpush1.msra.mxu0 0.0
    %1855 = vmatprep.mubr.f32.mxu0 0.0
    %1856 = vmatmul.mubr.f32.gmra.mrb[0].mxu0 %v1789
    %v1857 = vpop.f32.mrb[0].mxu0
    %v1858 = vadd.f32 %v1475, %v1857
    %v1859 = vpop.f32.mrb[0].mxu0
    %1860 = vdwg.mxu0
    %v1862 = vsel %vm135, %v1405, 0
    %1864 = vmatprep.subr.mxu0 0.0
    %1865 = vmatpush1.msra.mxu0 %v1428
    %1866 = vmatprep.subr.mxu0 0.0
    %1867 = vmatpush1.msra.mxu0 %v1429
    %1868 = vmatprep.subr.mxu0 0.0
    %1869 = vmatpush1.msra.mxu0 %v1430
    %1870 = vmatprep.subr.mxu0 0.0
    %1871 = vmatpush1.msra.mxu0 %v1431
    %1872 = vmatprep.subr.mxu0 0.0
    %1873 = vmatpush1.msra.mxu0 0.0
    %1874 = vmatprep.subr.mxu0 0.0
    %1875 = vmatpush1.msra.mxu0 0.0
    %1876 = vmatprep.subr.mxu0 0.0
    %1877 = vmatpush1.msra.mxu0 0.0
    %1878 = vmatprep.subr.mxu0 0.0
    %1879 = vmatpush1.msra.mxu0 0.0
    %1880 = vmatprep.subr.mxu0 0.0
    %1881 = vmatpush1.msra.mxu0 0.0
    %1882 = vmatprep.subr.mxu0 0.0
    %1883 = vmatpush1.msra.mxu0 0.0
    %1884 = vmatprep.subr.mxu0 0.0
    %1885 = vmatpush1.msra.mxu0 0.0
    %1886 = vmatprep.subr.mxu0 0.0
    %1887 = vmatpush1.msra.mxu0 0.0
    %1888 = vmatprep.subr.mxu0 0.0
    %1889 = vmatpush1.msra.mxu0 0.0
    %1890 = vmatprep.subr.mxu0 0.0
    %1891 = vmatpush1.msra.mxu0 0.0
    %1892 = vmatprep.subr.mxu0 0.0
    %1893 = vmatpush1.msra.mxu0 0.0
    %1894 = vmatprep.subr.mxu0 0.0
    %1895 = vmatpush1.msra.mxu0 0.0
    %1896 = vmatprep.subr.mxu0 0.0
    %1897 = vmatpush1.msra.mxu0 0.0
    %1898 = vmatprep.subr.mxu0 0.0
    %1899 = vmatpush1.msra.mxu0 0.0
    %1900 = vmatprep.subr.mxu0 0.0
    %1901 = vmatpush1.msra.mxu0 0.0
    %1902 = vmatprep.subr.mxu0 0.0
    %1903 = vmatpush1.msra.mxu0 0.0
    %1904 = vmatprep.subr.mxu0 0.0
    %1905 = vmatpush1.msra.mxu0 0.0
    %1906 = vmatprep.subr.mxu0 0.0
    %1907 = vmatpush1.msra.mxu0 0.0
    %1908 = vmatprep.subr.mxu0 0.0
    %1909 = vmatpush1.msra.mxu0 0.0
    %1910 = vmatprep.subr.mxu0 0.0
    %1911 = vmatpush1.msra.mxu0 0.0
    %1912 = vmatprep.subr.mxu0 0.0
    %1913 = vmatpush1.msra.mxu0 0.0
    %1914 = vmatprep.subr.mxu0 0.0
    %1915 = vmatpush1.msra.mxu0 0.0
    %1916 = vmatprep.subr.mxu0 0.0
    %1917 = vmatpush1.msra.mxu0 0.0
    %1918 = vmatprep.subr.mxu0 0.0
    %1919 = vmatpush1.msra.mxu0 0.0
    %1920 = vmatprep.subr.mxu0 0.0
    %1921 = vmatpush1.msra.mxu0 0.0
    %1922 = vmatprep.subr.mxu0 0.0
    %1923 = vmatpush1.msra.mxu0 0.0
    %1924 = vmatprep.subr.mxu0 0.0
    %1925 = vmatpush1.msra.mxu0 0.0
    %1926 = vmatprep.subr.mxu0 0.0
    %1927 = vmatpush1.msra.mxu0 0.0
    %1928 = vmatprep.mubr.f32.mxu0 0.0
    %1929 = vmatmul.mubr.f32.gmra.mrb[0].mxu0 %v1862
    %v1930 = vpop.f32.mrb[0].mxu0
    %v1931 = vadd.f32 %v1479, %v1930
    %v1932 = vpop.f32.mrb[0].mxu0
    %1933 = vdwg.mxu0
    %v1935 = vsel %vm135, %v1406, 0
    %1937 = vmatprep.subr.mxu0 0.0
    %1938 = vmatpush1.msra.mxu0 %v1432
    %1939 = vmatprep.subr.mxu0 0.0
    %1940 = vmatpush1.msra.mxu0 %v1433
    %1941 = vmatprep.subr.mxu0 0.0
    %1942 = vmatpush1.msra.mxu0 %v1434
    %1943 = vmatprep.subr.mxu0 0.0
    %1944 = vmatpush1.msra.mxu0 %v1435
    %1945 = vmatprep.subr.mxu0 0.0
    %1946 = vmatpush1.msra.mxu0 0.0
    %1947 = vmatprep.subr.mxu0 0.0
    %1948 = vmatpush1.msra.mxu0 0.0
    %1949 = vmatprep.subr.mxu0 0.0
    %1950 = vmatpush1.msra.mxu0 0.0
    %1951 = vmatprep.subr.mxu0 0.0
    %1952 = vmatpush1.msra.mxu0 0.0
    %1953 = vmatprep.subr.mxu0 0.0
    %1954 = vmatpush1.msra.mxu0 0.0
    %1955 = vmatprep.subr.mxu0 0.0
    %1956 = vmatpush1.msra.mxu0 0.0
    %1957 = vmatprep.subr.mxu0 0.0
    %1958 = vmatpush1.msra.mxu0 0.0
    %1959 = vmatprep.subr.mxu0 0.0
    %1960 = vmatpush1.msra.mxu0 0.0
    %1961 = vmatprep.subr.mxu0 0.0
    %1962 = vmatpush1.msra.mxu0 0.0
    %1963 = vmatprep.subr.mxu0 0.0
    %1964 = vmatpush1.msra.mxu0 0.0
    %1965 = vmatprep.subr.mxu0 0.0
    %1966 = vmatpush1.msra.mxu0 0.0
    %1967 = vmatprep.subr.mxu0 0.0
    %1968 = vmatpush1.msra.mxu0 0.0
    %1969 = vmatprep.subr.mxu0 0.0
    %1970 = vmatpush1.msra.mxu0 0.0
    %1971 = vmatprep.subr.mxu0 0.0
    %1972 = vmatpush1.msra.mxu0 0.0
    %1973 = vmatprep.subr.mxu0 0.0
    %1974 = vmatpush1.msra.mxu0 0.0
    %1975 = vmatprep.subr.mxu0 0.0
    %1976 = vmatpush1.msra.mxu0 0.0
    %1977 = vmatprep.subr.mxu0 0.0
    %1978 = vmatpush1.msra.mxu0 0.0
    %1979 = vmatprep.subr.mxu0 0.0
    %1980 = vmatpush1.msra.mxu0 0.0
    %1981 = vmatprep.subr.mxu0 0.0
    %1982 = vmatpush1.msra.mxu0 0.0
    %1983 = vmatprep.subr.mxu0 0.0
    %1984 = vmatpush1.msra.mxu0 0.0
    %1985 = vmatprep.subr.mxu0 0.0
    %1986 = vmatpush1.msra.mxu0 0.0
    %1987 = vmatprep.subr.mxu0 0.0
    %1988 = vmatpush1.msra.mxu0 0.0
    %1989 = vmatprep.subr.mxu0 0.0
    %1990 = vmatpush1.msra.mxu0 0.0
    %1991 = vmatprep.subr.mxu0 0.0
    %1992 = vmatpush1.msra.mxu0 0.0
    %1993 = vmatprep.subr.mxu0 0.0
    %1994 = vmatpush1.msra.mxu0 0.0
    %1995 = vmatprep.subr.mxu0 0.0
    %1996 = vmatpush1.msra.mxu0 0.0
    %1997 = vmatprep.subr.mxu0 0.0
    %1998 = vmatpush1.msra.mxu0 0.0
    %1999 = vmatprep.subr.mxu0 0.0
    %2000 = vmatpush1.msra.mxu0 0.0
    %2001 = vmatprep.mubr.f32.mxu0 0.0
    %2002 = vmatmul.mubr.f32.gmra.mrb[0].mxu0 %v1935
    %v2003 = vpop.f32.mrb[0].mxu0
    %v2004 = vadd.f32 %v1483, %v2003
    %v2005 = vpop.f32.mrb[0].mxu0
    %2006 = vdwg.mxu0
    %v2008 = vsel %vm135, %v1407, 0
    %2010 = vmatprep.subr.mxu0 0.0
    %2011 = vmatpush1.msra.mxu0 %v1436
    %2012 = vmatprep.subr.mxu0 0.0
    %2013 = vmatpush1.msra.mxu0 %v1437
    %2014 = vmatprep.subr.mxu0 0.0
    %2015 = vmatpush1.msra.mxu0 %v1438
    %2016 = vmatprep.subr.mxu0 0.0
    %2017 = vmatpush1.msra.mxu0 %v1439
    %2018 = vmatprep.subr.mxu0 0.0
    %2019 = vmatpush1.msra.mxu0 0.0
    %2020 = vmatprep.subr.mxu0 0.0
    %2021 = vmatpush1.msra.mxu0 0.0
    %2022 = vmatprep.subr.mxu0 0.0
    %2023 = vmatpush1.msra.mxu0 0.0
    %2024 = vmatprep.subr.mxu0 0.0
    %2025 = vmatpush1.msra.mxu0 0.0
    %2026 = vmatprep.subr.mxu0 0.0
    %2027 = vmatpush1.msra.mxu0 0.0
    %2028 = vmatprep.subr.mxu0 0.0
    %2029 = vmatpush1.msra.mxu0 0.0
    %2030 = vmatprep.subr.mxu0 0.0
    %2031 = vmatpush1.msra.mxu0 0.0
    %2032 = vmatprep.subr.mxu0 0.0
    %2033 = vmatpush1.msra.mxu0 0.0
    %2034 = vmatprep.subr.mxu0 0.0
    %2035 = vmatpush1.msra.mxu0 0.0
    %2036 = vmatprep.subr.mxu0 0.0
    %2037 = vmatpush1.msra.mxu0 0.0
    %2038 = vmatprep.subr.mxu0 0.0
    %2039 = vmatpush1.msra.mxu0 0.0
    %2040 = vmatprep.subr.mxu0 0.0
    %2041 = vmatpush1.msra.mxu0 0.0
    %2042 = vmatprep.subr.mxu0 0.0
    %2043 = vmatpush1.msra.mxu0 0.0
    %2044 = vmatprep.subr.mxu0 0.0
    %2045 = vmatpush1.msra.mxu0 0.0
    %2046 = vmatprep.subr.mxu0 0.0
    %2047 = vmatpush1.msra.mxu0 0.0
    %2048 = vmatprep.subr.mxu0 0.0
    %2049 = vmatpush1.msra.mxu0 0.0
    %2050 = vmatprep.subr.mxu0 0.0
    %2051 = vmatpush1.msra.mxu0 0.0
    %2052 = vmatprep.subr.mxu0 0.0
    %2053 = vmatpush1.msra.mxu0 0.0
    %2054 = vmatprep.subr.mxu0 0.0
    %2055 = vmatpush1.msra.mxu0 0.0
    %2056 = vmatprep.subr.mxu0 0.0
    %2057 = vmatpush1.msra.mxu0 0.0
    %2058 = vmatprep.subr.mxu0 0.0
    %2059 = vmatpush1.msra.mxu0 0.0
    %2060 = vmatprep.subr.mxu0 0.0
    %2061 = vmatpush1.msra.mxu0 0.0
    %2062 = vmatprep.subr.mxu0 0.0
    %2063 = vmatpush1.msra.mxu0 0.0
    %2064 = vmatprep.subr.mxu0 0.0
    %2065 = vmatpush1.msra.mxu0 0.0
    %2066 = vmatprep.subr.mxu0 0.0
    %2067 = vmatpush1.msra.mxu0 0.0
    %2068 = vmatprep.subr.mxu0 0.0
    %2069 = vmatpush1.msra.mxu0 0.0
    %2070 = vmatprep.subr.mxu0 0.0
    %2071 = vmatpush1.msra.mxu0 0.0
    %2072 = vmatprep.subr.mxu0 0.0
    %2073 = vmatpush1.msra.mxu0 0.0
    %2074 = vmatprep.mubr.f32.mxu0 0.0
    %2075 = vmatmul.mubr.f32.gmra.mrb[0].mxu0 %v2008
    %v2076 = vpop.f32.mrb[0].mxu0
    %v2077 = vadd.f32 %v1487, %v2076
    %v2078 = vpop.f32.mrb[0].mxu0
    %2079 = vdwg.mxu0
    %vm2080 = vcmask 64512
    %v2082 = vsel %vm2080, %v206, 0
    %v2085 = vsel %vm2080, %v886, 0
    %2087 = vmatprep.subr.mxu0 0.0
    %2088 = vmatpush1.xpose.msra.mxu0 %v2085
    %2089 = vmatprep.subr.mxu0 0.0
    %2090 = vmatpush1.xpose.msra.mxu0 0.0
    %2091 = vmatprep.subr.mxu0 0.0
    %2092 = vmatpush1.xpose.msra.mxu0 0.0
    %2093 = vmatprep.subr.mxu0 0.0
    %2094 = vmatpush1.xpose.msra.mxu0 0.0
    %2095 = vmatprep.subr.mxu0 0.0
    %2096 = vmatpush1.xpose.msra.mxu0 0.0
    %2097 = vmatprep.subr.mxu0 0.0
    %2098 = vmatpush1.xpose.msra.mxu0 0.0
    %2099 = vmatprep.subr.mxu0 0.0
    %2100 = vmatpush1.xpose.msra.mxu0 0.0
    %2101 = vmatprep.subr.mxu0 0.0
    %2102 = vmatpush1.xpose.msra.mxu0 0.0
    %2103 = vmatprep.subr.mxu0 0.0
    %2104 = vmatpush1.xpose.msra.mxu0 0.0
    %2105 = vmatprep.subr.mxu0 0.0
    %2106 = vmatpush1.xpose.msra.mxu0 0.0
    %2107 = vmatprep.subr.mxu0 0.0
    %2108 = vmatpush1.xpose.msra.mxu0 0.0
    %2109 = vmatprep.subr.mxu0 0.0
    %2110 = vmatpush1.xpose.msra.mxu0 0.0
    %2111 = vmatprep.subr.mxu0 0.0
    %2112 = vmatpush1.xpose.msra.mxu0 0.0
    %2113 = vmatprep.subr.mxu0 0.0
    %2114 = vmatpush1.xpose.msra.mxu0 0.0
    %2115 = vmatprep.subr.mxu0 0.0
    %2116 = vmatpush1.xpose.msra.mxu0 0.0
    %2117 = vmatprep.subr.mxu0 0.0
    %2118 = vmatpush1.xpose.msra.mxu0 0.0
    %2119 = vmatprep.subr.mxu0 0.0
    %2120 = vmatpush1.xpose.msra.mxu0 0.0
    %2121 = vmatprep.subr.mxu0 0.0
    %2122 = vmatpush1.xpose.msra.mxu0 0.0
    %2123 = vmatprep.subr.mxu0 0.0
    %2124 = vmatpush1.xpose.msra.mxu0 0.0
    %2125 = vmatprep.subr.mxu0 0.0
    %2126 = vmatpush1.xpose.msra.mxu0 0.0
    %2127 = vmatprep.subr.mxu0 0.0
    %2128 = vmatpush1.xpose.msra.mxu0 0.0
    %2129 = vmatprep.subr.mxu0 0.0
    %2130 = vmatpush1.xpose.msra.mxu0 0.0
    %2131 = vmatprep.subr.mxu0 0.0
    %2132 = vmatpush1.xpose.msra.mxu0 0.0
    %2133 = vmatprep.subr.mxu0 0.0
    %2134 = vmatpush1.xpose.msra.mxu0 0.0
    %2135 = vmatprep.subr.mxu0 0.0
    %2136 = vmatpush1.xpose.msra.mxu0 0.0
    %2137 = vmatprep.subr.mxu0 0.0
    %2138 = vmatpush1.xpose.msra.mxu0 0.0
    %2139 = vmatprep.subr.mxu0 0.0
    %2140 = vmatpush1.xpose.msra.mxu0 0.0
    %2141 = vmatprep.subr.mxu0 0.0
    %2142 = vmatpush1.xpose.msra.mxu0 0.0
    %2143 = vmatprep.subr.mxu0 0.0
    %2144 = vmatpush1.xpose.msra.mxu0 0.0
    %2145 = vmatprep.subr.mxu0 0.0
    %2146 = vmatpush1.xpose.msra.mxu0 0.0
    %2147 = vmatprep.subr.mxu0 0.0
    %2148 = vmatpush1.xpose.msra.mxu0 0.0
    %2149 = vmatprep.subr.mxu0 0.0
    %2150 = vmatpush1.xpose.msra.mxu0 0.0
    %2151 = vmatprep.mubr.f32.mxu0 0.0
    %2152 = vmatmul.mubr.f32.gmra.mrb[0].mxu0 %v2082
    %v2153 = vpop.f32.mrb[0].mxu0
    %v2154 = vadd.f32 0.0, %v2153
    %v2155 = vpop.f32.mrb[0].mxu0
    %2156 = vdwg.mxu0
    %v2158 = vsel %vm2080, %v279, 0
    %v2161 = vsel %vm2080, %v959, 0
    %2163 = vmatprep.subr.mxu0 0.0
    %2164 = vmatpush1.xpose.msra.mxu0 %v2161
    %2165 = vmatprep.subr.mxu0 0.0
    %2166 = vmatpush1.xpose.msra.mxu0 0.0
    %2167 = vmatprep.subr.mxu0 0.0
    %2168 = vmatpush1.xpose.msra.mxu0 0.0
    %2169 = vmatprep.subr.mxu0 0.0
    %2170 = vmatpush1.xpose.msra.mxu0 0.0
    %2171 = vmatprep.subr.mxu0 0.0
    %2172 = vmatpush1.xpose.msra.mxu0 0.0
    %2173 = vmatprep.subr.mxu0 0.0
    %2174 = vmatpush1.xpose.msra.mxu0 0.0
    %2175 = vmatprep.subr.mxu0 0.0
    %2176 = vmatpush1.xpose.msra.mxu0 0.0
    %2177 = vmatprep.subr.mxu0 0.0
    %2178 = vmatpush1.xpose.msra.mxu0 0.0
    %2179 = vmatprep.subr.mxu0 0.0
    %2180 = vmatpush1.xpose.msra.mxu0 0.0
    %2181 = vmatprep.subr.mxu0 0.0
    %2182 = vmatpush1.xpose.msra.mxu0 0.0
    %2183 = vmatprep.subr.mxu0 0.0
    %2184 = vmatpush1.xpose.msra.mxu0 0.0
    %2185 = vmatprep.subr.mxu0 0.0
    %2186 = vmatpush1.xpose.msra.mxu0 0.0
    %2187 = vmatprep.subr.mxu0 0.0
    %2188 = vmatpush1.xpose.msra.mxu0 0.0
    %2189 = vmatprep.subr.mxu0 0.0
    %2190 = vmatpush1.xpose.msra.mxu0 0.0
    %2191 = vmatprep.subr.mxu0 0.0
    %2192 = vmatpush1.xpose.msra.mxu0 0.0
    %2193 = vmatprep.subr.mxu0 0.0
    %2194 = vmatpush1.xpose.msra.mxu0 0.0
    %2195 = vmatprep.subr.mxu0 0.0
    %2196 = vmatpush1.xpose.msra.mxu0 0.0
    %2197 = vmatprep.subr.mxu0 0.0
    %2198 = vmatpush1.xpose.msra.mxu0 0.0
    %2199 = vmatprep.subr.mxu0 0.0
    %2200 = vmatpush1.xpose.msra.mxu0 0.0
    %2201 = vmatprep.subr.mxu0 0.0
    %2202 = vmatpush1.xpose.msra.mxu0 0.0
    %2203 = vmatprep.subr.mxu0 0.0
    %2204 = vmatpush1.xpose.msra.mxu0 0.0
    %2205 = vmatprep.subr.mxu0 0.0
    %2206 = vmatpush1.xpose.msra.mxu0 0.0
    %2207 = vmatprep.subr.mxu0 0.0
    %2208 = vmatpush1.xpose.msra.mxu0 0.0
    %2209 = vmatprep.subr.mxu0 0.0
    %2210 = vmatpush1.xpose.msra.mxu0 0.0
    %2211 = vmatprep.subr.mxu0 0.0
    %2212 = vmatpush1.xpose.msra.mxu0 0.0
    %2213 = vmatprep.subr.mxu0 0.0
    %2214 = vmatpush1.xpose.msra.mxu0 0.0
    %2215 = vmatprep.subr.mxu0 0.0
    %2216 = vmatpush1.xpose.msra.mxu0 0.0
    %2217 = vmatprep.subr.mxu0 0.0
    %2218 = vmatpush1.xpose.msra.mxu0 0.0
    %2219 = vmatprep.subr.mxu0 0.0
    %2220 = vmatpush1.xpose.msra.mxu0 0.0
    %2221 = vmatprep.subr.mxu0 0.0
    %2222 = vmatpush1.xpose.msra.mxu0 0.0
    %2223 = vmatprep.subr.mxu0 0.0
    %2224 = vmatpush1.xpose.msra.mxu0 0.0
    %2225 = vmatprep.subr.mxu0 0.0
    %2226 = vmatpush1.xpose.msra.mxu0 0.0
    %2227 = vmatprep.mubr.f32.mxu0 0.0
    %2228 = vmatmul.mubr.f32.gmra.mrb[0].mxu0 %v2158
    %v2229 = vpop.f32.mrb[0].mxu0
    %v2230 = vadd.f32 0.0, %v2229
    %v2231 = vpop.f32.mrb[0].mxu0
    %2232 = vdwg.mxu0
    %v2234 = vsel %vm2080, %v352, 0
    %v2237 = vsel %vm2080, %v1032, 0
    %2239 = vmatprep.subr.mxu0 0.0
    %2240 = vmatpush1.xpose.msra.mxu0 %v2237
    %2241 = vmatprep.subr.mxu0 0.0
    %2242 = vmatpush1.xpose.msra.mxu0 0.0
    %2243 = vmatprep.subr.mxu0 0.0
    %2244 = vmatpush1.xpose.msra.mxu0 0.0
    %2245 = vmatprep.subr.mxu0 0.0
    %2246 = vmatpush1.xpose.msra.mxu0 0.0
    %2247 = vmatprep.subr.mxu0 0.0
    %2248 = vmatpush1.xpose.msra.mxu0 0.0
    %2249 = vmatprep.subr.mxu0 0.0
    %2250 = vmatpush1.xpose.msra.mxu0 0.0
    %2251 = vmatprep.subr.mxu0 0.0
    %2252 = vmatpush1.xpose.msra.mxu0 0.0
    %2253 = vmatprep.subr.mxu0 0.0
    %2254 = vmatpush1.xpose.msra.mxu0 0.0
    %2255 = vmatprep.subr.mxu0 0.0
    %2256 = vmatpush1.xpose.msra.mxu0 0.0
    %2257 = vmatprep.subr.mxu0 0.0
    %2258 = vmatpush1.xpose.msra.mxu0 0.0
    %2259 = vmatprep.subr.mxu0 0.0
    %2260 = vmatpush1.xpose.msra.mxu0 0.0
    %2261 = vmatprep.subr.mxu0 0.0
    %2262 = vmatpush1.xpose.msra.mxu0 0.0
    %2263 = vmatprep.subr.mxu0 0.0
    %2264 = vmatpush1.xpose.msra.mxu0 0.0
    %2265 = vmatprep.subr.mxu0 0.0
    %2266 = vmatpush1.xpose.msra.mxu0 0.0
    %2267 = vmatprep.subr.mxu0 0.0
    %2268 = vmatpush1.xpose.msra.mxu0 0.0
    %2269 = vmatprep.subr.mxu0 0.0
    %2270 = vmatpush1.xpose.msra.mxu0 0.0
    %2271 = vmatprep.subr.mxu0 0.0
    %2272 = vmatpush1.xpose.msra.mxu0 0.0
    %2273 = vmatprep.subr.mxu0 0.0
    %2274 = vmatpush1.xpose.msra.mxu0 0.0
    %2275 = vmatprep.subr.mxu0 0.0
    %2276 = vmatpush1.xpose.msra.mxu0 0.0
    %2277 = vmatprep.subr.mxu0 0.0
    %2278 = vmatpush1.xpose.msra.mxu0 0.0
    %2279 = vmatprep.subr.mxu0 0.0
    %2280 = vmatpush1.xpose.msra.mxu0 0.0
    %2281 = vmatprep.subr.mxu0 0.0
    %2282 = vmatpush1.xpose.msra.mxu0 0.0
    %2283 = vmatprep.subr.mxu0 0.0
    %2284 = vmatpush1.xpose.msra.mxu0 0.0
    %2285 = vmatprep.subr.mxu0 0.0
    %2286 = vmatpush1.xpose.msra.mxu0 0.0
    %2287 = vmatprep.subr.mxu0 0.0
    %2288 = vmatpush1.xpose.msra.mxu0 0.0
    %2289 = vmatprep.subr.mxu0 0.0
    %2290 = vmatpush1.xpose.msra.mxu0 0.0
    %2291 = vmatprep.subr.mxu0 0.0
    %2292 = vmatpush1.xpose.msra.mxu0 0.0
    %2293 = vmatprep.subr.mxu0 0.0
    %2294 = vmatpush1.xpose.msra.mxu0 0.0
    %2295 = vmatprep.subr.mxu0 0.0
    %2296 = vmatpush1.xpose.msra.mxu0 0.0
    %2297 = vmatprep.subr.mxu0 0.0
    %2298 = vmatpush1.xpose.msra.mxu0 0.0
    %2299 = vmatprep.subr.mxu0 0.0
    %2300 = vmatpush1.xpose.msra.mxu0 0.0
    %2301 = vmatprep.subr.mxu0 0.0
    %2302 = vmatpush1.xpose.msra.mxu0 0.0
    %2303 = vmatprep.mubr.f32.mxu0 0.0
    %2304 = vmatmul.mubr.f32.gmra.mrb[0].mxu0 %v2234
    %v2305 = vpop.f32.mrb[0].mxu0
    %v2306 = vadd.f32 0.0, %v2305
    %v2307 = vpop.f32.mrb[0].mxu0
    %2308 = vdwg.mxu0
    %v2310 = vsel %vm2080, %v425, 0
    %v2313 = vsel %vm2080, %v1105, 0
    %2315 = vmatprep.subr.mxu0 0.0
    %2316 = vmatpush1.xpose.msra.mxu0 %v2313
    %2317 = vmatprep.subr.mxu0 0.0
    %2318 = vmatpush1.xpose.msra.mxu0 0.0
    %2319 = vmatprep.subr.mxu0 0.0
    %2320 = vmatpush1.xpose.msra.mxu0 0.0
    %2321 = vmatprep.subr.mxu0 0.0
    %2322 = vmatpush1.xpose.msra.mxu0 0.0
    %2323 = vmatprep.subr.mxu0 0.0
    %2324 = vmatpush1.xpose.msra.mxu0 0.0
    %2325 = vmatprep.subr.mxu0 0.0
    %2326 = vmatpush1.xpose.msra.mxu0 0.0
    %2327 = vmatprep.subr.mxu0 0.0
    %2328 = vmatpush1.xpose.msra.mxu0 0.0
    %2329 = vmatprep.subr.mxu0 0.0
    %2330 = vmatpush1.xpose.msra.mxu0 0.0
    %2331 = vmatprep.subr.mxu0 0.0
    %2332 = vmatpush1.xpose.msra.mxu0 0.0
    %2333 = vmatprep.subr.mxu0 0.0
    %2334 = vmatpush1.xpose.msra.mxu0 0.0
    %2335 = vmatprep.subr.mxu0 0.0
    %2336 = vmatpush1.xpose.msra.mxu0 0.0
    %2337 = vmatprep.subr.mxu0 0.0
    %2338 = vmatpush1.xpose.msra.mxu0 0.0
    %2339 = vmatprep.subr.mxu0 0.0
    %2340 = vmatpush1.xpose.msra.mxu0 0.0
    %2341 = vmatprep.subr.mxu0 0.0
    %2342 = vmatpush1.xpose.msra.mxu0 0.0
    %2343 = vmatprep.subr.mxu0 0.0
    %2344 = vmatpush1.xpose.msra.mxu0 0.0
    %2345 = vmatprep.subr.mxu0 0.0
    %2346 = vmatpush1.xpose.msra.mxu0 0.0
    %2347 = vmatprep.subr.mxu0 0.0
    %2348 = vmatpush1.xpose.msra.mxu0 0.0
    %2349 = vmatprep.subr.mxu0 0.0
    %2350 = vmatpush1.xpose.msra.mxu0 0.0
    %2351 = vmatprep.subr.mxu0 0.0
    %2352 = vmatpush1.xpose.msra.mxu0 0.0
    %2353 = vmatprep.subr.mxu0 0.0
    %2354 = vmatpush1.xpose.msra.mxu0 0.0
    %2355 = vmatprep.subr.mxu0 0.0
    %2356 = vmatpush1.xpose.msra.mxu0 0.0
    %2357 = vmatprep.subr.mxu0 0.0
    %2358 = vmatpush1.xpose.msra.mxu0 0.0
    %2359 = vmatprep.subr.mxu0 0.0
    %2360 = vmatpush1.xpose.msra.mxu0 0.0
    %2361 = vmatprep.subr.mxu0 0.0
    %2362 = vmatpush1.xpose.msra.mxu0 0.0
    %2363 = vmatprep.subr.mxu0 0.0
    %2364 = vmatpush1.xpose.msra.mxu0 0.0
    %2365 = vmatprep.subr.mxu0 0.0
    %2366 = vmatpush1.xpose.msra.mxu0 0.0
    %2367 = vmatprep.subr.mxu0 0.0
    %2368 = vmatpush1.xpose.msra.mxu0 0.0
    %2369 = vmatprep.subr.mxu0 0.0
    %2370 = vmatpush1.xpose.msra.mxu0 0.0
    %2371 = vmatprep.subr.mxu0 0.0
    %2372 = vmatpush1.xpose.msra.mxu0 0.0
    %2373 = vmatprep.subr.mxu0 0.0
    %2374 = vmatpush1.xpose.msra.mxu0 0.0
    %2375 = vmatprep.subr.mxu0 0.0
    %2376 = vmatpush1.xpose.msra.mxu0 0.0
    %2377 = vmatprep.subr.mxu0 0.0
    %2378 = vmatpush1.xpose.msra.mxu0 0.0
    %2379 = vmatprep.mubr.f32.mxu0 0.0
    %2380 = vmatmul.mubr.f32.gmra.mrb[0].mxu0 %v2310
    %v2381 = vpop.f32.mrb[0].mxu0
    %v2382 = vadd.f32 0.0, %v2381
    %v2383 = vpop.f32.mrb[0].mxu0
    %2384 = vdwg.mxu0
    %v2386 = vsel %vm2080, %v498, 0
    %v2389 = vsel %vm2080, %v1178, 0
    %2391 = vmatprep.subr.mxu0 0.0
    %2392 = vmatpush1.xpose.msra.mxu0 %v2389
    %2393 = vmatprep.subr.mxu0 0.0
    %2394 = vmatpush1.xpose.msra.mxu0 0.0
    %2395 = vmatprep.subr.mxu0 0.0
    %2396 = vmatpush1.xpose.msra.mxu0 0.0
    %2397 = vmatprep.subr.mxu0 0.0
    %2398 = vmatpush1.xpose.msra.mxu0 0.0
    %2399 = vmatprep.subr.mxu0 0.0
    %2400 = vmatpush1.xpose.msra.mxu0 0.0
    %2401 = vmatprep.subr.mxu0 0.0
    %2402 = vmatpush1.xpose.msra.mxu0 0.0
    %2403 = vmatprep.subr.mxu0 0.0
    %2404 = vmatpush1.xpose.msra.mxu0 0.0
    %2405 = vmatprep.subr.mxu0 0.0
    %2406 = vmatpush1.xpose.msra.mxu0 0.0
    %2407 = vmatprep.subr.mxu0 0.0
    %2408 = vmatpush1.xpose.msra.mxu0 0.0
    %2409 = vmatprep.subr.mxu0 0.0
    %2410 = vmatpush1.xpose.msra.mxu0 0.0
    %2411 = vmatprep.subr.mxu0 0.0
    %2412 = vmatpush1.xpose.msra.mxu0 0.0
    %2413 = vmatprep.subr.mxu0 0.0
    %2414 = vmatpush1.xpose.msra.mxu0 0.0
    %2415 = vmatprep.subr.mxu0 0.0
    %2416 = vmatpush1.xpose.msra.mxu0 0.0
    %2417 = vmatprep.subr.mxu0 0.0
    %2418 = vmatpush1.xpose.msra.mxu0 0.0
    %2419 = vmatprep.subr.mxu0 0.0
    %2420 = vmatpush1.xpose.msra.mxu0 0.0
    %2421 = vmatprep.subr.mxu0 0.0
    %2422 = vmatpush1.xpose.msra.mxu0 0.0
    %2423 = vmatprep.subr.mxu0 0.0
    %2424 = vmatpush1.xpose.msra.mxu0 0.0
    %2425 = vmatprep.subr.mxu0 0.0
    %2426 = vmatpush1.xpose.msra.mxu0 0.0
    %2427 = vmatprep.subr.mxu0 0.0
    %2428 = vmatpush1.xpose.msra.mxu0 0.0
    %2429 = vmatprep.subr.mxu0 0.0
    %2430 = vmatpush1.xpose.msra.mxu0 0.0
    %2431 = vmatprep.subr.mxu0 0.0
    %2432 = vmatpush1.xpose.msra.mxu0 0.0
    %2433 = vmatprep.subr.mxu0 0.0
    %2434 = vmatpush1.xpose.msra.mxu0 0.0
    %2435 = vmatprep.subr.mxu0 0.0
    %2436 = vmatpush1.xpose.msra.mxu0 0.0
    %2437 = vmatprep.subr.mxu0 0.0
    %2438 = vmatpush1.xpose.msra.mxu0 0.0
    %2439 = vmatprep.subr.mxu0 0.0
    %2440 = vmatpush1.xpose.msra.mxu0 0.0
    %2441 = vmatprep.subr.mxu0 0.0
    %2442 = vmatpush1.xpose.msra.mxu0 0.0
    %2443 = vmatprep.subr.mxu0 0.0
    %2444 = vmatpush1.xpose.msra.mxu0 0.0
    %2445 = vmatprep.subr.mxu0 0.0
    %2446 = vmatpush1.xpose.msra.mxu0 0.0
    %2447 = vmatprep.subr.mxu0 0.0
    %2448 = vmatpush1.xpose.msra.mxu0 0.0
    %2449 = vmatprep.subr.mxu0 0.0
    %2450 = vmatpush1.xpose.msra.mxu0 0.0
    %2451 = vmatprep.subr.mxu0 0.0
    %2452 = vmatpush1.xpose.msra.mxu0 0.0
    %2453 = vmatprep.subr.mxu0 0.0
    %2454 = vmatpush1.xpose.msra.mxu0 0.0
    %2455 = vmatprep.mubr.f32.mxu0 0.0
    %2456 = vmatmul.mubr.f32.gmra.mrb[0].mxu0 %v2386
    %v2457 = vpop.f32.mrb[0].mxu0
    %v2458 = vadd.f32 0.0, %v2457
    %v2459 = vpop.f32.mrb[0].mxu0
    %2460 = vdwg.mxu0
    %v2462 = vsel %vm2080, %v571, 0
    %v2465 = vsel %vm2080, %v1251, 0
    %2467 = vmatprep.subr.mxu0 0.0
    %2468 = vmatpush1.xpose.msra.mxu0 %v2465
    %2469 = vmatprep.subr.mxu0 0.0
    %2470 = vmatpush1.xpose.msra.mxu0 0.0
    %2471 = vmatprep.subr.mxu0 0.0
    %2472 = vmatpush1.xpose.msra.mxu0 0.0
    %2473 = vmatprep.subr.mxu0 0.0
    %2474 = vmatpush1.xpose.msra.mxu0 0.0
    %2475 = vmatprep.subr.mxu0 0.0
    %2476 = vmatpush1.xpose.msra.mxu0 0.0
    %2477 = vmatprep.subr.mxu0 0.0
    %2478 = vmatpush1.xpose.msra.mxu0 0.0
    %2479 = vmatprep.subr.mxu0 0.0
    %2480 = vmatpush1.xpose.msra.mxu0 0.0
    %2481 = vmatprep.subr.mxu0 0.0
    %2482 = vmatpush1.xpose.msra.mxu0 0.0
    %2483 = vmatprep.subr.mxu0 0.0
    %2484 = vmatpush1.xpose.msra.mxu0 0.0
    %2485 = vmatprep.subr.mxu0 0.0
    %2486 = vmatpush1.xpose.msra.mxu0 0.0
    %2487 = vmatprep.subr.mxu0 0.0
    %2488 = vmatpush1.xpose.msra.mxu0 0.0
    %2489 = vmatprep.subr.mxu0 0.0
    %2490 = vmatpush1.xpose.msra.mxu0 0.0
    %2491 = vmatprep.subr.mxu0 0.0
    %2492 = vmatpush1.xpose.msra.mxu0 0.0
    %2493 = vmatprep.subr.mxu0 0.0
    %2494 = vmatpush1.xpose.msra.mxu0 0.0
    %2495 = vmatprep.subr.mxu0 0.0
    %2496 = vmatpush1.xpose.msra.mxu0 0.0
    %2497 = vmatprep.subr.mxu0 0.0
    %2498 = vmatpush1.xpose.msra.mxu0 0.0
    %2499 = vmatprep.subr.mxu0 0.0
    %2500 = vmatpush1.xpose.msra.mxu0 0.0
    %2501 = vmatprep.subr.mxu0 0.0
    %2502 = vmatpush1.xpose.msra.mxu0 0.0
    %2503 = vmatprep.subr.mxu0 0.0
    %2504 = vmatpush1.xpose.msra.mxu0 0.0
    %2505 = vmatprep.subr.mxu0 0.0
    %2506 = vmatpush1.xpose.msra.mxu0 0.0
    %2507 = vmatprep.subr.mxu0 0.0
    %2508 = vmatpush1.xpose.msra.mxu0 0.0
    %2509 = vmatprep.subr.mxu0 0.0
    %2510 = vmatpush1.xpose.msra.mxu0 0.0
    %2511 = vmatprep.subr.mxu0 0.0
    %2512 = vmatpush1.xpose.msra.mxu0 0.0
    %2513 = vmatprep.subr.mxu0 0.0
    %2514 = vmatpush1.xpose.msra.mxu0 0.0
    %2515 = vmatprep.subr.mxu0 0.0
    %2516 = vmatpush1.xpose.msra.mxu0 0.0
    %2517 = vmatprep.subr.mxu0 0.0
    %2518 = vmatpush1.xpose.msra.mxu0 0.0
    %2519 = vmatprep.subr.mxu0 0.0
    %2520 = vmatpush1.xpose.msra.mxu0 0.0
    %2521 = vmatprep.subr.mxu0 0.0
    %2522 = vmatpush1.xpose.msra.mxu0 0.0
    %2523 = vmatprep.subr.mxu0 0.0
    %2524 = vmatpush1.xpose.msra.mxu0 0.0
    %2525 = vmatprep.subr.mxu0 0.0
    %2526 = vmatpush1.xpose.msra.mxu0 0.0
    %2527 = vmatprep.subr.mxu0 0.0
    %2528 = vmatpush1.xpose.msra.mxu0 0.0
    %2529 = vmatprep.subr.mxu0 0.0
    %2530 = vmatpush1.xpose.msra.mxu0 0.0
    %2531 = vmatprep.mubr.f32.mxu0 0.0
    %2532 = vmatmul.mubr.f32.gmra.mrb[0].mxu0 %v2462
    %v2533 = vpop.f32.mrb[0].mxu0
    %v2534 = vadd.f32 0.0, %v2533
    %v2535 = vpop.f32.mrb[0].mxu0
    %2536 = vdwg.mxu0
    %v2538 = vsel %vm2080, %v644, 0
    %v2541 = vsel %vm2080, %v1324, 0
    %2543 = vmatprep.subr.mxu0 0.0
    %2544 = vmatpush1.xpose.msra.mxu0 %v2541
    %2545 = vmatprep.subr.mxu0 0.0
    %2546 = vmatpush1.xpose.msra.mxu0 0.0
    %2547 = vmatprep.subr.mxu0 0.0
    %2548 = vmatpush1.xpose.msra.mxu0 0.0
    %2549 = vmatprep.subr.mxu0 0.0
    %2550 = vmatpush1.xpose.msra.mxu0 0.0
    %2551 = vmatprep.subr.mxu0 0.0
    %2552 = vmatpush1.xpose.msra.mxu0 0.0
    %2553 = vmatprep.subr.mxu0 0.0
    %2554 = vmatpush1.xpose.msra.mxu0 0.0
    %2555 = vmatprep.subr.mxu0 0.0
    %2556 = vmatpush1.xpose.msra.mxu0 0.0
    %2557 = vmatprep.subr.mxu0 0.0
    %2558 = vmatpush1.xpose.msra.mxu0 0.0
    %2559 = vmatprep.subr.mxu0 0.0
    %2560 = vmatpush1.xpose.msra.mxu0 0.0
    %2561 = vmatprep.subr.mxu0 0.0
    %2562 = vmatpush1.xpose.msra.mxu0 0.0
    %2563 = vmatprep.subr.mxu0 0.0
    %2564 = vmatpush1.xpose.msra.mxu0 0.0
    %2565 = vmatprep.subr.mxu0 0.0
    %2566 = vmatpush1.xpose.msra.mxu0 0.0
    %2567 = vmatprep.subr.mxu0 0.0
    %2568 = vmatpush1.xpose.msra.mxu0 0.0
    %2569 = vmatprep.subr.mxu0 0.0
    %2570 = vmatpush1.xpose.msra.mxu0 0.0
    %2571 = vmatprep.subr.mxu0 0.0
    %2572 = vmatpush1.xpose.msra.mxu0 0.0
    %2573 = vmatprep.subr.mxu0 0.0
    %2574 = vmatpush1.xpose.msra.mxu0 0.0
    %2575 = vmatprep.subr.mxu0 0.0
    %2576 = vmatpush1.xpose.msra.mxu0 0.0
    %2577 = vmatprep.subr.mxu0 0.0
    %2578 = vmatpush1.xpose.msra.mxu0 0.0
    %2579 = vmatprep.subr.mxu0 0.0
    %2580 = vmatpush1.xpose.msra.mxu0 0.0
    %2581 = vmatprep.subr.mxu0 0.0
    %2582 = vmatpush1.xpose.msra.mxu0 0.0
    %2583 = vmatprep.subr.mxu0 0.0
    %2584 = vmatpush1.xpose.msra.mxu0 0.0
    %2585 = vmatprep.subr.mxu0 0.0
    %2586 = vmatpush1.xpose.msra.mxu0 0.0
    %2587 = vmatprep.subr.mxu0 0.0
    %2588 = vmatpush1.xpose.msra.mxu0 0.0
    %2589 = vmatprep.subr.mxu0 0.0
    %2590 = vmatpush1.xpose.msra.mxu0 0.0
    %2591 = vmatprep.subr.mxu0 0.0
    %2592 = vmatpush1.xpose.msra.mxu0 0.0
    %2593 = vmatprep.subr.mxu0 0.0
    %2594 = vmatpush1.xpose.msra.mxu0 0.0
    %2595 = vmatprep.subr.mxu0 0.0
    %2596 = vmatpush1.xpose.msra.mxu0 0.0
    %2597 = vmatprep.subr.mxu0 0.0
    %2598 = vmatpush1.xpose.msra.mxu0 0.0
    %2599 = vmatprep.subr.mxu0 0.0
    %2600 = vmatpush1.xpose.msra.mxu0 0.0
    %2601 = vmatprep.subr.mxu0 0.0
    %2602 = vmatpush1.xpose.msra.mxu0 0.0
    %2603 = vmatprep.subr.mxu0 0.0
    %2604 = vmatpush1.xpose.msra.mxu0 0.0
    %2605 = vmatprep.subr.mxu0 0.0
    %2606 = vmatpush1.xpose.msra.mxu0 0.0
    %2607 = vmatprep.mubr.f32.mxu0 0.0
    %2608 = vmatmul.mubr.f32.gmra.mrb[0].mxu0 %v2538
    %v2609 = vpop.f32.mrb[0].mxu0
    %v2610 = vadd.f32 0.0, %v2609
    %v2611 = vpop.f32.mrb[0].mxu0
    %2612 = vdwg.mxu0
    %v2614 = vsel %vm2080, %v717, 0
    %v2617 = vsel %vm2080, %v1397, 0
    %2619 = vmatprep.subr.mxu0 0.0
    %2620 = vmatpush1.xpose.msra.mxu0 %v2617
    %2621 = vmatprep.subr.mxu0 0.0
    %2622 = vmatpush1.xpose.msra.mxu0 0.0
    %2623 = vmatprep.subr.mxu0 0.0
    %2624 = vmatpush1.xpose.msra.mxu0 0.0
    %2625 = vmatprep.subr.mxu0 0.0
    %2626 = vmatpush1.xpose.msra.mxu0 0.0
    %2627 = vmatprep.subr.mxu0 0.0
    %2628 = vmatpush1.xpose.msra.mxu0 0.0
    %2629 = vmatprep.subr.mxu0 0.0
    %2630 = vmatpush1.xpose.msra.mxu0 0.0
    %2631 = vmatprep.subr.mxu0 0.0
    %2632 = vmatpush1.xpose.msra.mxu0 0.0
    %2633 = vmatprep.subr.mxu0 0.0
    %2634 = vmatpush1.xpose.msra.mxu0 0.0
    %2635 = vmatprep.subr.mxu0 0.0
    %2636 = vmatpush1.xpose.msra.mxu0 0.0
    %2637 = vmatprep.subr.mxu0 0.0
    %2638 = vmatpush1.xpose.msra.mxu0 0.0
    %2639 = vmatprep.subr.mxu0 0.0
    %2640 = vmatpush1.xpose.msra.mxu0 0.0
    %2641 = vmatprep.subr.mxu0 0.0
    %2642 = vmatpush1.xpose.msra.mxu0 0.0
    %2643 = vmatprep.subr.mxu0 0.0
    %2644 = vmatpush1.xpose.msra.mxu0 0.0
    %2645 = vmatprep.subr.mxu0 0.0
    %2646 = vmatpush1.xpose.msra.mxu0 0.0
    %2647 = vmatprep.subr.mxu0 0.0
    %2648 = vmatpush1.xpose.msra.mxu0 0.0
    %2649 = vmatprep.subr.mxu0 0.0
    %2650 = vmatpush1.xpose.msra.mxu0 0.0
    %2651 = vmatprep.subr.mxu0 0.0
    %2652 = vmatpush1.xpose.msra.mxu0 0.0
    %2653 = vmatprep.subr.mxu0 0.0
    %2654 = vmatpush1.xpose.msra.mxu0 0.0
    %2655 = vmatprep.subr.mxu0 0.0
    %2656 = vmatpush1.xpose.msra.mxu0 0.0
    %2657 = vmatprep.subr.mxu0 0.0
    %2658 = vmatpush1.xpose.msra.mxu0 0.0
    %2659 = vmatprep.subr.mxu0 0.0
    %2660 = vmatpush1.xpose.msra.mxu0 0.0
    %2661 = vmatprep.subr.mxu0 0.0
    %2662 = vmatpush1.xpose.msra.mxu0 0.0
    %2663 = vmatprep.subr.mxu0 0.0
    %2664 = vmatpush1.xpose.msra.mxu0 0.0
    %2665 = vmatprep.subr.mxu0 0.0
    %2666 = vmatpush1.xpose.msra.mxu0 0.0
    %2667 = vmatprep.subr.mxu0 0.0
    %2668 = vmatpush1.xpose.msra.mxu0 0.0
    %2669 = vmatprep.subr.mxu0 0.0
    %2670 = vmatpush1.xpose.msra.mxu0 0.0
    %2671 = vmatprep.subr.mxu0 0.0
    %2672 = vmatpush1.xpose.msra.mxu0 0.0
    %2673 = vmatprep.subr.mxu0 0.0
    %2674 = vmatpush1.xpose.msra.mxu0 0.0
    %2675 = vmatprep.subr.mxu0 0.0
    %2676 = vmatpush1.xpose.msra.mxu0 0.0
    %2677 = vmatprep.subr.mxu0 0.0
    %2678 = vmatpush1.xpose.msra.mxu0 0.0
    %2679 = vmatprep.subr.mxu0 0.0
    %2680 = vmatpush1.xpose.msra.mxu0 0.0
    %2681 = vmatprep.subr.mxu0 0.0
    %2682 = vmatpush1.xpose.msra.mxu0 0.0
    %2683 = vmatprep.mubr.f32.mxu0 0.0
    %2684 = vmatmul.mubr.f32.gmra.mrb[0].mxu0 %v2614
    %v2685 = vpop.f32.mrb[0].mxu0
    %v2686 = vadd.f32 0.0, %v2685
    %v2687 = vpop.f32.mrb[0].mxu0
    %2688 = vdwg.mxu0
    %v2689 = vsel %vm2080, %v2154, -inf
    %2690 = vmax.xlane.f32.xlu0 %v2689
    %v2691 = vpop.xlane.xlu0 %2690
    %v2692 = vsel %vm2080, %v2230, -inf
    %2693 = vmax.xlane.f32.xlu0 %v2692
    %v2694 = vpop.xlane.xlu0 %2693
    %v2695 = vsel %vm2080, %v2306, -inf
    %2696 = vmax.xlane.f32.xlu0 %v2695
    %v2697 = vpop.xlane.xlu0 %2696
    %v2698 = vsel %vm2080, %v2382, -inf
    %2699 = vmax.xlane.f32.xlu0 %v2698
    %v2700 = vpop.xlane.xlu0 %2699
    %v2701 = vsel %vm2080, %v2458, -inf
    %2702 = vmax.xlane.f32.xlu0 %v2701
    %v2703 = vpop.xlane.xlu0 %2702
    %v2704 = vsel %vm2080, %v2534, -inf
    %2705 = vmax.xlane.f32.xlu0 %v2704
    %v2706 = vpop.xlane.xlu0 %2705
    %v2707 = vsel %vm2080, %v2610, -inf
    %2708 = vmax.xlane.f32.xlu0 %v2707
    %v2709 = vpop.xlane.xlu0 %2708
    %v2710 = vsel %vm2080, %v2686, -inf
    %2711 = vmax.xlane.f32.xlu0 %v2710
    %v2712 = vpop.xlane.xlu0 %2711
    %v2713 = vsub.f32 %v2154, %v2691
    %v2714 = vsub.f32 %v2230, %v2694
    %v2715 = vsub.f32 %v2306, %v2697
    %v2716 = vsub.f32 %v2382, %v2700
    %v2717 = vsub.f32 %v2458, %v2703
    %v2718 = vsub.f32 %v2534, %v2706
    %v2719 = vsub.f32 %v2610, %v2709
    %v2720 = vsub.f32 %v2686, %v2712
    %v2721 = vmul.f32 %v2713, 1.442695
    %v2722 = vpow.pop %v2721
    %v2723 = vmul.f32 %v2714, 1.442695
    %v2724 = vpow.pop %v2723
    %v2725 = vmul.f32 %v2715, 1.442695
    %v2726 = vpow.pop %v2725
    %v2727 = vmul.f32 %v2716, 1.442695
    %v2728 = vpow.pop %v2727
    %v2729 = vmul.f32 %v2717, 1.442695
    %v2730 = vpow.pop %v2729
    %v2731 = vmul.f32 %v2718, 1.442695
    %v2732 = vpow.pop %v2731
    %v2733 = vmul.f32 %v2719, 1.442695
    %v2734 = vpow.pop %v2733
    %v2735 = vmul.f32 %v2720, 1.442695
    %v2736 = vpow.pop %v2735
    %v2737 = vsel %vm2080, %v2722, 0.0
    %2738 = vadd.xlane.f32.xlu0 %v2737
    %v2739 = vpop.xlane.xlu0 %2738
    %v2740 = vsel %vm2080, %v2724, 0.0
    %2741 = vadd.xlane.f32.xlu0 %v2740
    %v2742 = vpop.xlane.xlu0 %2741
    %v2743 = vsel %vm2080, %v2726, 0.0
    %2744 = vadd.xlane.f32.xlu0 %v2743
    %v2745 = vpop.xlane.xlu0 %2744
    %v2746 = vsel %vm2080, %v2728, 0.0
    %2747 = vadd.xlane.f32.xlu0 %v2746
    %v2748 = vpop.xlane.xlu0 %2747
    %v2749 = vsel %vm2080, %v2730, 0.0
    %2750 = vadd.xlane.f32.xlu0 %v2749
    %v2751 = vpop.xlane.xlu0 %2750
    %v2752 = vsel %vm2080, %v2732, 0.0
    %2753 = vadd.xlane.f32.xlu0 %v2752
    %v2754 = vpop.xlane.xlu0 %2753
    %v2755 = vsel %vm2080, %v2734, 0.0
    %2756 = vadd.xlane.f32.xlu0 %v2755
    %v2757 = vpop.xlane.xlu0 %2756
    %v2758 = vsel %vm2080, %v2736, 0.0
    %2759 = vadd.xlane.f32.xlu0 %v2758
    %v2760 = vpop.xlane.xlu0 %2759
    %v2761 = vrcp.pop %v2739
    %v2762 = vrcp.pop %v2742
    %v2763 = vrcp.pop %v2745
    %v2764 = vrcp.pop %v2748
    %v2765 = vrcp.pop %v2751
    %v2766 = vrcp.pop %v2754
    %v2767 = vrcp.pop %v2757
    %v2768 = vrcp.pop %v2760
    %v2769 = vmul.f32 %v2722, %v2761
    %v2770 = vmul.f32 %v2724, %v2762
    %v2771 = vmul.f32 %v2726, %v2763
    %v2772 = vmul.f32 %v2728, %v2764
    %v2773 = vmul.f32 %v2730, %v2765
    %v2774 = vmul.f32 %v2732, %v2766
    %v2775 = vmul.f32 %v2734, %v2767
    %v2776 = vmul.f32 %v2736, %v2768
    %v2778 = vsel %vm2080, %v2769, 0
    %2780 = vmatprep.subr.mxu0 0.0
    %2781 = vmatpush1.msra.mxu0 %v1566
    %2782 = vmatprep.subr.mxu0 0.0
    %2783 = vmatpush1.msra.mxu0 0.0
    %2784 = vmatprep.subr.mxu0 0.0
    %2785 = vmatpush1.msra.mxu0 0.0
    %2786 = vmatprep.subr.mxu0 0.0
    %2787 = vmatpush1.msra.mxu0 0.0
    %2788 = vmatprep.subr.mxu0 0.0
    %2789 = vmatpush1.msra.mxu0 0.0
    %2790 = vmatprep.subr.mxu0 0.0
    %2791 = vmatpush1.msra.mxu0 0.0
    %2792 = vmatprep.subr.mxu0 0.0
    %2793 = vmatpush1.msra.mxu0 0.0
    %2794 = vmatprep.subr.mxu0 0.0
    %2795 = vmatpush1.msra.mxu0 0.0
    %2796 = vmatprep.subr.mxu0 0.0
    %2797 = vmatpush1.msra.mxu0 0.0
    %2798 = vmatprep.subr.mxu0 0.0
    %2799 = vmatpush1.msra.mxu0 0.0
    %2800 = vmatprep.subr.mxu0 0.0
    %2801 = vmatpush1.msra.mxu0 0.0
    %2802 = vmatprep.subr.mxu0 0.0
    %2803 = vmatpush1.msra.mxu0 0.0
    %2804 = vmatprep.subr.mxu0 0.0
    %2805 = vmatpush1.msra.mxu0 0.0
    %2806 = vmatprep.subr.mxu0 0.0
    %2807 = vmatpush1.msra.mxu0 0.0
    %2808 = vmatprep.subr.mxu0 0.0
    %2809 = vmatpush1.msra.mxu0 0.0
    %2810 = vmatprep.subr.mxu0 0.0
    %2811 = vmatpush1.msra.mxu0 0.0
    %2812 = vmatprep.subr.mxu0 0.0
    %2813 = vmatpush1.msra.mxu0 0.0
    %2814 = vmatprep.subr.mxu0 0.0
    %2815 = vmatpush1.msra.mxu0 0.0
    %2816 = vmatprep.subr.mxu0 0.0
    %2817 = vmatpush1.msra.mxu0 0.0
    %2818 = vmatprep.subr.mxu0 0.0
    %2819 = vmatpush1.msra.mxu0 0.0
    %2820 = vmatprep.subr.mxu0 0.0
    %2821 = vmatpush1.msra.mxu0 0.0
    %2822 = vmatprep.subr.mxu0 0.0
    %2823 = vmatpush1.msra.mxu0 0.0
    %2824 = vmatprep.subr.mxu0 0.0
    %2825 = vmatpush1.msra.mxu0 0.0
    %2826 = vmatprep.subr.mxu0 0.0
    %2827 = vmatpush1.msra.mxu0 0.0
    %2828 = vmatprep.subr.mxu0 0.0
    %2829 = vmatpush1.msra.mxu0 0.0
    %2830 = vmatprep.subr.mxu0 0.0
    %2831 = vmatpush1.msra.mxu0 0.0
    %2832 = vmatprep.subr.mxu0 0.0
    %2833 = vmatpush1.msra.mxu0 0.0
    %2834 = vmatprep.subr.mxu0 0.0
    %2835 = vmatpush1.msra.mxu0 0.0
    %2836 = vmatprep.subr.mxu0 0.0
    %2837 = vmatpush1.msra.mxu0 0.0
    %2838 = vmatprep.subr.mxu0 0.0
    %2839 = vmatpush1.msra.mxu0 0.0
    %2840 = vmatprep.subr.mxu0 0.0
    %2841 = vmatpush1.msra.mxu0 0.0
    %2842 = vmatprep.subr.mxu0 0.0
    %2843 = vmatpush1.msra.mxu0 0.0
    %2844 = vmatprep.mubr.f32.mxu0 0.0
    %2845 = vmatmul.mubr.f32.gmra.mrb[0].mxu0 %v2778
    %v2846 = vpop.f32.mrb[0].mxu0
    %v2847 = vadd.f32 0.0, %v2846
    %v2848 = vpop.f32.mrb[0].mxu0
    %2849 = vdwg.mxu0
    %v2851 = vsel %vm2080, %v2770, 0
    %2853 = vmatprep.subr.mxu0 0.0
    %2854 = vmatpush1.msra.mxu0 %v1639
    %2855 = vmatprep.subr.mxu0 0.0
    %2856 = vmatpush1.msra.mxu0 0.0
    %2857 = vmatprep.subr.mxu0 0.0
    %2858 = vmatpush1.msra.mxu0 0.0
    %2859 = vmatprep.subr.mxu0 0.0
    %2860 = vmatpush1.msra.mxu0 0.0
    %2861 = vmatprep.subr.mxu0 0.0
    %2862 = vmatpush1.msra.mxu0 0.0
    %2863 = vmatprep.subr.mxu0 0.0
    %2864 = vmatpush1.msra.mxu0 0.0
    %2865 = vmatprep.subr.mxu0 0.0
    %2866 = vmatpush1.msra.mxu0 0.0
    %2867 = vmatprep.subr.mxu0 0.0
    %2868 = vmatpush1.msra.mxu0 0.0
    %2869 = vmatprep.subr.mxu0 0.0
    %2870 = vmatpush1.msra.mxu0 0.0
    %2871 = vmatprep.subr.mxu0 0.0
    %2872 = vmatpush1.msra.mxu0 0.0
    %2873 = vmatprep.subr.mxu0 0.0
    %2874 = vmatpush1.msra.mxu0 0.0
    %2875 = vmatprep.subr.mxu0 0.0
    %2876 = vmatpush1.msra.mxu0 0.0
    %2877 = vmatprep.subr.mxu0 0.0
    %2878 = vmatpush1.msra.mxu0 0.0
    %2879 = vmatprep.subr.mxu0 0.0
    %2880 = vmatpush1.msra.mxu0 0.0
    %2881 = vmatprep.subr.mxu0 0.0
    %2882 = vmatpush1.msra.mxu0 0.0
    %2883 = vmatprep.subr.mxu0 0.0
    %2884 = vmatpush1.msra.mxu0 0.0
    %2885 = vmatprep.subr.mxu0 0.0
    %2886 = vmatpush1.msra.mxu0 0.0
    %2887 = vmatprep.subr.mxu0 0.0
    %2888 = vmatpush1.msra.mxu0 0.0
    %2889 = vmatprep.subr.mxu0 0.0
    %2890 = vmatpush1.msra.mxu0 0.0
    %2891 = vmatprep.subr.mxu0 0.0
    %2892 = vmatpush1.msra.mxu0 0.0
    %2893 = vmatprep.subr.mxu0 0.0
    %2894 = vmatpush1.msra.mxu0 0.0
    %2895 = vmatprep.subr.mxu0 0.0
    %2896 = vmatpush1.msra.mxu0 0.0
    %2897 = vmatprep.subr.mxu0 0.0
    %2898 = vmatpush1.msra.mxu0 0.0
    %2899 = vmatprep.subr.mxu0 0.0
    %2900 = vmatpush1.msra.mxu0 0.0
    %2901 = vmatprep.subr.mxu0 0.0
    %2902 = vmatpush1.msra.mxu0 0.0
    %2903 = vmatprep.subr.mxu0 0.0
    %2904 = vmatpush1.msra.mxu0 0.0
    %2905 = vmatprep.subr.mxu0 0.0
    %2906 = vmatpush1.msra.mxu0 0.0
    %2907 = vmatprep.subr.mxu0 0.0
    %2908 = vmatpush1.msra.mxu0 0.0
    %2909 = vmatprep.subr.mxu0 0.0
    %2910 = vmatpush1.msra.mxu0 0.0
    %2911 = vmatprep.subr.mxu0 0.0
    %2912 = vmatpush1.msra.mxu0 0.0
    %2913 = vmatprep.subr.mxu0 0.0
    %2914 = vmatpush1.msra.mxu0 0.0
    %2915 = vmatprep.subr.mxu0 0.0
    %2916 = vmatpush1.msra.mxu0 0.0
    %2917 = vmatprep.mubr.f32.mxu0 0.0
    %2918 = vmatmul.mubr.f32.gmra.mrb[0].mxu0 %v2851
    %v2919 = vpop.f32.mrb[0].mxu0
    %v2920 = vadd.f32 0.0, %v2919
    %v2921 = vpop.f32.mrb[0].mxu0
    %2922 = vdwg.mxu0
    %v2924 = vsel %vm2080, %v2771, 0
    %2926 = vmatprep.subr.mxu0 0.0
    %2927 = vmatpush1.msra.mxu0 %v1712
    %2928 = vmatprep.subr.mxu0 0.0
    %2929 = vmatpush1.msra.mxu0 0.0
    %2930 = vmatprep.subr.mxu0 0.0
    %2931 = vmatpush1.msra.mxu0 0.0
    %2932 = vmatprep.subr.mxu0 0.0
    %2933 = vmatpush1.msra.mxu0 0.0
    %2934 = vmatprep.subr.mxu0 0.0
    %2935 = vmatpush1.msra.mxu0 0.0
    %2936 = vmatprep.subr.mxu0 0.0
    %2937 = vmatpush1.msra.mxu0 0.0
    %2938 = vmatprep.subr.mxu0 0.0
    %2939 = vmatpush1.msra.mxu0 0.0
    %2940 = vmatprep.subr.mxu0 0.0
    %2941 = vmatpush1.msra.mxu0 0.0
    %2942 = vmatprep.subr.mxu0 0.0
    %2943 = vmatpush1.msra.mxu0 0.0
    %2944 = vmatprep.subr.mxu0 0.0
    %2945 = vmatpush1.msra.mxu0 0.0
    %2946 = vmatprep.subr.mxu0 0.0
    %2947 = vmatpush1.msra.mxu0 0.0
    %2948 = vmatprep.subr.mxu0 0.0
    %2949 = vmatpush1.msra.mxu0 0.0
    %2950 = vmatprep.subr.mxu0 0.0
    %2951 = vmatpush1.msra.mxu0 0.0
    %2952 = vmatprep.subr.mxu0 0.0
    %2953 = vmatpush1.msra.mxu0 0.0
    %2954 = vmatprep.subr.mxu0 0.0
    %2955 = vmatpush1.msra.mxu0 0.0
    %2956 = vmatprep.subr.mxu0 0.0
    %2957 = vmatpush1.msra.mxu0 0.0
    %2958 = vmatprep.subr.mxu0 0.0
    %2959 = vmatpush1.msra.mxu0 0.0
    %2960 = vmatprep.subr.mxu0 0.0
    %2961 = vmatpush1.msra.mxu0 0.0
    %2962 = vmatprep.subr.mxu0 0.0
    %2963 = vmatpush1.msra.mxu0 0.0
    %2964 = vmatprep.subr.mxu0 0.0
    %2965 = vmatpush1.msra.mxu0 0.0
    %2966 = vmatprep.subr.mxu0 0.0
    %2967 = vmatpush1.msra.mxu0 0.0
    %2968 = vmatprep.subr.mxu0 0.0
    %2969 = vmatpush1.msra.mxu0 0.0
    %2970 = vmatprep.subr.mxu0 0.0
    %2971 = vmatpush1.msra.mxu0 0.0
    %2972 = vmatprep.subr.mxu0 0.0
    %2973 = vmatpush1.msra.mxu0 0.0
    %2974 = vmatprep.subr.mxu0 0.0
    %2975 = vmatpush1.msra.mxu0 0.0
    %2976 = vmatprep.subr.mxu0 0.0
    %2977 = vmatpush1.msra.mxu0 0.0
    %2978 = vmatprep.subr.mxu0 0.0
    %2979 = vmatpush1.msra.mxu0 0.0
    %2980 = vmatprep.subr.mxu0 0.0
    %2981 = vmatpush1.msra.mxu0 0.0
    %2982 = vmatprep.subr.mxu0 0.0
    %2983 = vmatpush1.msra.mxu0 0.0
    %2984 = vmatprep.subr.mxu0 0.0
    %2985 = vmatpush1.msra.mxu0 0.0
    %2986 = vmatprep.subr.mxu0 0.0
    %2987 = vmatpush1.msra.mxu0 0.0
    %2988 = vmatprep.subr.mxu0 0.0
    %2989 = vmatpush1.msra.mxu0 0.0
    %2990 = vmatprep.mubr.f32.mxu0 0.0
    %2991 = vmatmul.mubr.f32.gmra.mrb[0].mxu0 %v2924
    %v2992 = vpop.f32.mrb[0].mxu0
    %v2993 = vadd.f32 0.0, %v2992
    %v2994 = vpop.f32.mrb[0].mxu0
    %2995 = vdwg.mxu0
    %v2997 = vsel %vm2080, %v2772, 0
    %2999 = vmatprep.subr.mxu0 0.0
    %3000 = vmatpush1.msra.mxu0 %v1785
    %3001 = vmatprep.subr.mxu0 0.0
    %3002 = vmatpush1.msra.mxu0 0.0
    %3003 = vmatprep.subr.mxu0 0.0
    %3004 = vmatpush1.msra.mxu0 0.0
    %3005 = vmatprep.subr.mxu0 0.0
    %3006 = vmatpush1.msra.mxu0 0.0
    %3007 = vmatprep.subr.mxu0 0.0
    %3008 = vmatpush1.msra.mxu0 0.0
    %3009 = vmatprep.subr.mxu0 0.0
    %3010 = vmatpush1.msra.mxu0 0.0
    %3011 = vmatprep.subr.mxu0 0.0
    %3012 = vmatpush1.msra.mxu0 0.0
    %3013 = vmatprep.subr.mxu0 0.0
    %3014 = vmatpush1.msra.mxu0 0.0
    %3015 = vmatprep.subr.mxu0 0.0
    %3016 = vmatpush1.msra.mxu0 0.0
    %3017 = vmatprep.subr.mxu0 0.0
    %3018 = vmatpush1.msra.mxu0 0.0
    %3019 = vmatprep.subr.mxu0 0.0
    %3020 = vmatpush1.msra.mxu0 0.0
    %3021 = vmatprep.subr.mxu0 0.0
    %3022 = vmatpush1.msra.mxu0 0.0
    %3023 = vmatprep.subr.mxu0 0.0
    %3024 = vmatpush1.msra.mxu0 0.0
    %3025 = vmatprep.subr.mxu0 0.0
    %3026 = vmatpush1.msra.mxu0 0.0
    %3027 = vmatprep.subr.mxu0 0.0
    %3028 = vmatpush1.msra.mxu0 0.0
    %3029 = vmatprep.subr.mxu0 0.0
    %3030 = vmatpush1.msra.mxu0 0.0
    %3031 = vmatprep.subr.mxu0 0.0
    %3032 = vmatpush1.msra.mxu0 0.0
    %3033 = vmatprep.subr.mxu0 0.0
    %3034 = vmatpush1.msra.mxu0 0.0
    %3035 = vmatprep.subr.mxu0 0.0
    %3036 = vmatpush1.msra.mxu0 0.0
    %3037 = vmatprep.subr.mxu0 0.0
    %3038 = vmatpush1.msra.mxu0 0.0
    %3039 = vmatprep.subr.mxu0 0.0
    %3040 = vmatpush1.msra.mxu0 0.0
    %3041 = vmatprep.subr.mxu0 0.0
    %3042 = vmatpush1.msra.mxu0 0.0
    %3043 = vmatprep.subr.mxu0 0.0
    %3044 = vmatpush1.msra.mxu0 0.0
    %3045 = vmatprep.subr.mxu0 0.0
    %3046 = vmatpush1.msra.mxu0 0.0
    %3047 = vmatprep.subr.mxu0 0.0
    %3048 = vmatpush1.msra.mxu0 0.0
    %3049 = vmatprep.subr.mxu0 0.0
    %3050 = vmatpush1.msra.mxu0 0.0
    %3051 = vmatprep.subr.mxu0 0.0
    %3052 = vmatpush1.msra.mxu0 0.0
    %3053 = vmatprep.subr.mxu0 0.0
    %3054 = vmatpush1.msra.mxu0 0.0
    %3055 = vmatprep.subr.mxu0 0.0
    %3056 = vmatpush1.msra.mxu0 0.0
    %3057 = vmatprep.subr.mxu0 0.0
    %3058 = vmatpush1.msra.mxu0 0.0
    %3059 = vmatprep.subr.mxu0 0.0
    %3060 = vmatpush1.msra.mxu0 0.0
    %3061 = vmatprep.subr.mxu0 0.0
    %3062 = vmatpush1.msra.mxu0 0.0
    %3063 = vmatprep.mubr.f32.mxu0 0.0
    %3064 = vmatmul.mubr.f32.gmra.mrb[0].mxu0 %v2997
    %v3065 = vpop.f32.mrb[0].mxu0
    %v3066 = vadd.f32 0.0, %v3065
    %v3067 = vpop.f32.mrb[0].mxu0
    %3068 = vdwg.mxu0
    %v3070 = vsel %vm2080, %v2773, 0
    %3072 = vmatprep.subr.mxu0 0.0
    %3073 = vmatpush1.msra.mxu0 %v1858
    %3074 = vmatprep.subr.mxu0 0.0
    %3075 = vmatpush1.msra.mxu0 0.0
    %3076 = vmatprep.subr.mxu0 0.0
    %3077 = vmatpush1.msra.mxu0 0.0
    %3078 = vmatprep.subr.mxu0 0.0
    %3079 = vmatpush1.msra.mxu0 0.0
    %3080 = vmatprep.subr.mxu0 0.0
    %3081 = vmatpush1.msra.mxu0 0.0
    %3082 = vmatprep.subr.mxu0 0.0
    %3083 = vmatpush1.msra.mxu0 0.0
    %3084 = vmatprep.subr.mxu0 0.0
    %3085 = vmatpush1.msra.mxu0 0.0
    %3086 = vmatprep.subr.mxu0 0.0
    %3087 = vmatpush1.msra.mxu0 0.0
    %3088 = vmatprep.subr.mxu0 0.0
    %3089 = vmatpush1.msra.mxu0 0.0
    %3090 = vmatprep.subr.mxu0 0.0
    %3091 = vmatpush1.msra.mxu0 0.0
    %3092 = vmatprep.subr.mxu0 0.0
    %3093 = vmatpush1.msra.mxu0 0.0
    %3094 = vmatprep.subr.mxu0 0.0
    %3095 = vmatpush1.msra.mxu0 0.0
    %3096 = vmatprep.subr.mxu0 0.0
    %3097 = vmatpush1.msra.mxu0 0.0
    %3098 = vmatprep.subr.mxu0 0.0
    %3099 = vmatpush1.msra.mxu0 0.0
    %3100 = vmatprep.subr.mxu0 0.0
    %3101 = vmatpush1.msra.mxu0 0.0
    %3102 = vmatprep.subr.mxu0 0.0
    %3103 = vmatpush1.msra.mxu0 0.0
    %3104 = vmatprep.subr.mxu0 0.0
    %3105 = vmatpush1.msra.mxu0 0.0
    %3106 = vmatprep.subr.mxu0 0.0
    %3107 = vmatpush1.msra.mxu0 0.0
    %3108 = vmatprep.subr.mxu0 0.0
    %3109 = vmatpush1.msra.mxu0 0.0
    %3110 = vmatprep.subr.mxu0 0.0
    %3111 = vmatpush1.msra.mxu0 0.0
    %3112 = vmatprep.subr.mxu0 0.0
    %3113 = vmatpush1.msra.mxu0 0.0
    %3114 = vmatprep.subr.mxu0 0.0
    %3115 = vmatpush1.msra.mxu0 0.0
    %3116 = vmatprep.subr.mxu0 0.0
    %3117 = vmatpush1.msra.mxu0 0.0
    %3118 = vmatprep.subr.mxu0 0.0
    %3119 = vmatpush1.msra.mxu0 0.0
    %3120 = vmatprep.subr.mxu0 0.0
    %3121 = vmatpush1.msra.mxu0 0.0
    %3122 = vmatprep.subr.mxu0 0.0
    %3123 = vmatpush1.msra.mxu0 0.0
    %3124 = vmatprep.subr.mxu0 0.0
    %3125 = vmatpush1.msra.mxu0 0.0
    %3126 = vmatprep.subr.mxu0 0.0
    %3127 = vmatpush1.msra.mxu0 0.0
    %3128 = vmatprep.subr.mxu0 0.0
    %3129 = vmatpush1.msra.mxu0 0.0
    %3130 = vmatprep.subr.mxu0 0.0
    %3131 = vmatpush1.msra.mxu0 0.0
    %3132 = vmatprep.subr.mxu0 0.0
    %3133 = vmatpush1.msra.mxu0 0.0
    %3134 = vmatprep.subr.mxu0 0.0
    %3135 = vmatpush1.msra.mxu0 0.0
    %3136 = vmatprep.mubr.f32.mxu0 0.0
    %3137 = vmatmul.mubr.f32.gmra.mrb[0].mxu0 %v3070
    %v3138 = vpop.f32.mrb[0].mxu0
    %v3139 = vadd.f32 0.0, %v3138
    %v3140 = vpop.f32.mrb[0].mxu0
    %3141 = vdwg.mxu0
    %v3143 = vsel %vm2080, %v2774, 0
    %3145 = vmatprep.subr.mxu0 0.0
    %3146 = vmatpush1.msra.mxu0 %v1931
    %3147 = vmatprep.subr.mxu0 0.0
    %3148 = vmatpush1.msra.mxu0 0.0
    %3149 = vmatprep.subr.mxu0 0.0
    %3150 = vmatpush1.msra.mxu0 0.0
    %3151 = vmatprep.subr.mxu0 0.0
    %3152 = vmatpush1.msra.mxu0 0.0
    %3153 = vmatprep.subr.mxu0 0.0
    %3154 = vmatpush1.msra.mxu0 0.0
    %3155 = vmatprep.subr.mxu0 0.0
    %3156 = vmatpush1.msra.mxu0 0.0
    %3157 = vmatprep.subr.mxu0 0.0
    %3158 = vmatpush1.msra.mxu0 0.0
    %3159 = vmatprep.subr.mxu0 0.0
    %3160 = vmatpush1.msra.mxu0 0.0
    %3161 = vmatprep.subr.mxu0 0.0
    %3162 = vmatpush1.msra.mxu0 0.0
    %3163 = vmatprep.subr.mxu0 0.0
    %3164 = vmatpush1.msra.mxu0 0.0
    %3165 = vmatprep.subr.mxu0 0.0
    %3166 = vmatpush1.msra.mxu0 0.0
    %3167 = vmatprep.subr.mxu0 0.0
    %3168 = vmatpush1.msra.mxu0 0.0
    %3169 = vmatprep.subr.mxu0 0.0
    %3170 = vmatpush1.msra.mxu0 0.0
    %3171 = vmatprep.subr.mxu0 0.0
    %3172 = vmatpush1.msra.mxu0 0.0
    %3173 = vmatprep.subr.mxu0 0.0
    %3174 = vmatpush1.msra.mxu0 0.0
    %3175 = vmatprep.subr.mxu0 0.0
    %3176 = vmatpush1.msra.mxu0 0.0
    %3177 = vmatprep.subr.mxu0 0.0
    %3178 = vmatpush1.msra.mxu0 0.0
    %3179 = vmatprep.subr.mxu0 0.0
    %3180 = vmatpush1.msra.mxu0 0.0
    %3181 = vmatprep.subr.mxu0 0.0
    %3182 = vmatpush1.msra.mxu0 0.0
    %3183 = vmatprep.subr.mxu0 0.0
    %3184 = vmatpush1.msra.mxu0 0.0
    %3185 = vmatprep.subr.mxu0 0.0
    %3186 = vmatpush1.msra.mxu0 0.0
    %3187 = vmatprep.subr.mxu0 0.0
    %3188 = vmatpush1.msra.mxu0 0.0
    %3189 = vmatprep.subr.mxu0 0.0
    %3190 = vmatpush1.msra.mxu0 0.0
    %3191 = vmatprep.subr.mxu0 0.0
    %3192 = vmatpush1.msra.mxu0 0.0
    %3193 = vmatprep.subr.mxu0 0.0
    %3194 = vmatpush1.msra.mxu0 0.0
    %3195 = vmatprep.subr.mxu0 0.0
    %3196 = vmatpush1.msra.mxu0 0.0
    %3197 = vmatprep.subr.mxu0 0.0
    %3198 = vmatpush1.msra.mxu0 0.0
    %3199 = vmatprep.subr.mxu0 0.0
    %3200 = vmatpush1.msra.mxu0 0.0
    %3201 = vmatprep.subr.mxu0 0.0
    %3202 = vmatpush1.msra.mxu0 0.0
    %3203 = vmatprep.subr.mxu0 0.0
    %3204 = vmatpush1.msra.mxu0 0.0
    %3205 = vmatprep.subr.mxu0 0.0
    %3206 = vmatpush1.msra.mxu0 0.0
    %3207 = vmatprep.subr.mxu0 0.0
    %3208 = vmatpush1.msra.mxu0 0.0
    %3209 = vmatprep.mubr.f32.mxu0 0.0
    %3210 = vmatmul.mubr.f32.gmra.mrb[0].mxu0 %v3143
    %v3211 = vpop.f32.mrb[0].mxu0
    %v3212 = vadd.f32 0.0, %v3211
    %v3213 = vpop.f32.mrb[0].mxu0
    %3214 = vdwg.mxu0
    %v3216 = vsel %vm2080, %v2775, 0
    %3218 = vmatprep.subr.mxu0 0.0
    %3219 = vmatpush1.msra.mxu0 %v2004
    %3220 = vmatprep.subr.mxu0 0.0
    %3221 = vmatpush1.msra.mxu0 0.0
    %3222 = vmatprep.subr.mxu0 0.0
    %3223 = vmatpush1.msra.mxu0 0.0
    %3224 = vmatprep.subr.mxu0 0.0
    %3225 = vmatpush1.msra.mxu0 0.0
    %3226 = vmatprep.subr.mxu0 0.0
    %3227 = vmatpush1.msra.mxu0 0.0
    %3228 = vmatprep.subr.mxu0 0.0
    %3229 = vmatpush1.msra.mxu0 0.0
    %3230 = vmatprep.subr.mxu0 0.0
    %3231 = vmatpush1.msra.mxu0 0.0
    %3232 = vmatprep.subr.mxu0 0.0
    %3233 = vmatpush1.msra.mxu0 0.0
    %3234 = vmatprep.subr.mxu0 0.0
    %3235 = vmatpush1.msra.mxu0 0.0
    %3236 = vmatprep.subr.mxu0 0.0
    %3237 = vmatpush1.msra.mxu0 0.0
    %3238 = vmatprep.subr.mxu0 0.0
    %3239 = vmatpush1.msra.mxu0 0.0
    %3240 = vmatprep.subr.mxu0 0.0
    %3241 = vmatpush1.msra.mxu0 0.0
    %3242 = vmatprep.subr.mxu0 0.0
    %3243 = vmatpush1.msra.mxu0 0.0
    %3244 = vmatprep.subr.mxu0 0.0
    %3245 = vmatpush1.msra.mxu0 0.0
    %3246 = vmatprep.subr.mxu0 0.0
    %3247 = vmatpush1.msra.mxu0 0.0
    %3248 = vmatprep.subr.mxu0 0.0
    %3249 = vmatpush1.msra.mxu0 0.0
    %3250 = vmatprep.subr.mxu0 0.0
    %3251 = vmatpush1.msra.mxu0 0.0
    %3252 = vmatprep.subr.mxu0 0.0
    %3253 = vmatpush1.msra.mxu0 0.0
    %3254 = vmatprep.subr.mxu0 0.0
    %3255 = vmatpush1.msra.mxu0 0.0
    %3256 = vmatprep.subr.mxu0 0.0
    %3257 = vmatpush1.msra.mxu0 0.0
    %3258 = vmatprep.subr.mxu0 0.0
    %3259 = vmatpush1.msra.mxu0 0.0
    %3260 = vmatprep.subr.mxu0 0.0
    %3261 = vmatpush1.msra.mxu0 0.0
    %3262 = vmatprep.subr.mxu0 0.0
    %3263 = vmatpush1.msra.mxu0 0.0
    %3264 = vmatprep.subr.mxu0 0.0
    %3265 = vmatpush1.msra.mxu0 0.0
    %3266 = vmatprep.subr.mxu0 0.0
    %3267 = vmatpush1.msra.mxu0 0.0
    %3268 = vmatprep.subr.mxu0 0.0
    %3269 = vmatpush1.msra.mxu0 0.0
    %3270 = vmatprep.subr.mxu0 0.0
    %3271 = vmatpush1.msra.mxu0 0.0
    %3272 = vmatprep.subr.mxu0 0.0
    %3273 = vmatpush1.msra.mxu0 0.0
    %3274 = vmatprep.subr.mxu0 0.0
    %3275 = vmatpush1.msra.mxu0 0.0
    %3276 = vmatprep.subr.mxu0 0.0
    %3277 = vmatpush1.msra.mxu0 0.0
    %3278 = vmatprep.subr.mxu0 0.0
    %3279 = vmatpush1.msra.mxu0 0.0
    %3280 = vmatprep.subr.mxu0 0.0
    %3281 = vmatpush1.msra.mxu0 0.0
    %3282 = vmatprep.mubr.f32.mxu0 0.0
    %3283 = vmatmul.mubr.f32.gmra.mrb[0].mxu0 %v3216
    %v3284 = vpop.f32.mrb[0].mxu0
    %v3285 = vadd.f32 0.0, %v3284
    %v3286 = vpop.f32.mrb[0].mxu0
    %3287 = vdwg.mxu0
    %v3289 = vsel %vm2080, %v2776, 0
    %3291 = vmatprep.subr.mxu0 0.0
    %3292 = vmatpush1.msra.mxu0 %v2077
    %3293 = vmatprep.subr.mxu0 0.0
    %3294 = vmatpush1.msra.mxu0 0.0
    %3295 = vmatprep.subr.mxu0 0.0
    %3296 = vmatpush1.msra.mxu0 0.0
    %3297 = vmatprep.subr.mxu0 0.0
    %3298 = vmatpush1.msra.mxu0 0.0
    %3299 = vmatprep.subr.mxu0 0.0
    %3300 = vmatpush1.msra.mxu0 0.0
    %3301 = vmatprep.subr.mxu0 0.0
    %3302 = vmatpush1.msra.mxu0 0.0
    %3303 = vmatprep.subr.mxu0 0.0
    %3304 = vmatpush1.msra.mxu0 0.0
    %3305 = vmatprep.subr.mxu0 0.0
    %3306 = vmatpush1.msra.mxu0 0.0
    %3307 = vmatprep.subr.mxu0 0.0
    %3308 = vmatpush1.msra.mxu0 0.0
    %3309 = vmatprep.subr.mxu0 0.0
    %3310 = vmatpush1.msra.mxu0 0.0
    %3311 = vmatprep.subr.mxu0 0.0
    %3312 = vmatpush1.msra.mxu0 0.0
    %3313 = vmatprep.subr.mxu0 0.0
    %3314 = vmatpush1.msra.mxu0 0.0
    %3315 = vmatprep.subr.mxu0 0.0
    %3316 = vmatpush1.msra.mxu0 0.0
    %3317 = vmatprep.subr.mxu0 0.0
    %3318 = vmatpush1.msra.mxu0 0.0
    %3319 = vmatprep.subr.mxu0 0.0
    %3320 = vmatpush1.msra.mxu0 0.0
    %3321 = vmatprep.subr.mxu0 0.0
    %3322 = vmatpush1.msra.mxu0 0.0
    %3323 = vmatprep.subr.mxu0 0.0
    %3324 = vmatpush1.msra.mxu0 0.0
    %3325 = vmatprep.subr.mxu0 0.0
    %3326 = vmatpush1.msra.mxu0 0.0
    %3327 = vmatprep.subr.mxu0 0.0
    %3328 = vmatpush1.msra.mxu0 0.0
    %3329 = vmatprep.subr.mxu0 0.0
    %3330 = vmatpush1.msra.mxu0 0.0
    %3331 = vmatprep.subr.mxu0 0.0
    %3332 = vmatpush1.msra.mxu0 0.0
    %3333 = vmatprep.subr.mxu0 0.0
    %3334 = vmatpush1.msra.mxu0 0.0
    %3335 = vmatprep.subr.mxu0 0.0
    %3336 = vmatpush1.msra.mxu0 0.0
    %3337 = vmatprep.subr.mxu0 0.0
    %3338 = vmatpush1.msra.mxu0 0.0
    %3339 = vmatprep.subr.mxu0 0.0
    %3340 = vmatpush1.msra.mxu0 0.0
    %3341 = vmatprep.subr.mxu0 0.0
    %3342 = vmatpush1.msra.mxu0 0.0
    %3343 = vmatprep.subr.mxu0 0.0
    %3344 = vmatpush1.msra.mxu0 0.0
    %3345 = vmatprep.subr.mxu0 0.0
    %3346 = vmatpush1.msra.mxu0 0.0
    %3347 = vmatprep.subr.mxu0 0.0
    %3348 = vmatpush1.msra.mxu0 0.0
    %3349 = vmatprep.subr.mxu0 0.0
    %3350 = vmatpush1.msra.mxu0 0.0
    %3351 = vmatprep.subr.mxu0 0.0
    %3352 = vmatpush1.msra.mxu0 0.0
    %3353 = vmatprep.subr.mxu0 0.0
    %3354 = vmatpush1.msra.mxu0 0.0
    %3355 = vmatprep.mubr.f32.mxu0 0.0
    %3356 = vmatmul.mubr.f32.gmra.mrb[0].mxu0 %v3289
    %v3357 = vpop.f32.mrb[0].mxu0
    %v3358 = vadd.f32 0.0, %v3357
    %v3359 = vpop.f32.mrb[0].mxu0
    %3360 = vdwg.mxu0
    %v3361 = vld [vmem:[%s9] sm:$0xff]
    %v3362 = vld [vmem:[%s9 + $0x8] sm:$0xff]
    %v3363 = vld [vmem:[%s9 + $0x10] sm:$0xff]
    %v3364 = vld [vmem:[%s9 + $0x18] sm:$0xff]
    %v3365 = vld [vmem:[%s9 + $0x20] sm:$0xff]
    %v3366 = vld [vmem:[%s9 + $0x28] sm:$0xff]
    %v3367 = vld [vmem:[%s9 + $0x30] sm:$0xff]
    %v3368 = vld [vmem:[%s9 + $0x38] sm:$0xff]
    %v3370 = vsel %vm2080, %v2847, 0
    %3372 = vmatprep.subr.mxu0 0.0
    %3373 = vmatpush1.msra.mxu0 %v3361
    %3374 = vmatprep.subr.mxu0 0.0
    %3375 = vmatpush1.msra.mxu0 0.0
    %3376 = vmatprep.subr.mxu0 0.0
    %3377 = vmatpush1.msra.mxu0 0.0
    %3378 = vmatprep.subr.mxu0 0.0
    %3379 = vmatpush1.msra.mxu0 0.0
    %3380 = vmatprep.subr.mxu0 0.0
    %3381 = vmatpush1.msra.mxu0 0.0
    %3382 = vmatprep.subr.mxu0 0.0
    %3383 = vmatpush1.msra.mxu0 0.0
    %3384 = vmatprep.subr.mxu0 0.0
    %3385 = vmatpush1.msra.mxu0 0.0
    %3386 = vmatprep.subr.mxu0 0.0
    %3387 = vmatpush1.msra.mxu0 0.0
    %3388 = vmatprep.subr.mxu0 0.0
    %3389 = vmatpush1.msra.mxu0 0.0
    %3390 = vmatprep.subr.mxu0 0.0
    %3391 = vmatpush1.msra.mxu0 0.0
    %3392 = vmatprep.subr.mxu0 0.0
    %3393 = vmatpush1.msra.mxu0 0.0
    %3394 = vmatprep.subr.mxu0 0.0
    %3395 = vmatpush1.msra.mxu0 0.0
    %3396 = vmatprep.subr.mxu0 0.0
    %3397 = vmatpush1.msra.mxu0 0.0
    %3398 = vmatprep.subr.mxu0 0.0
    %3399 = vmatpush1.msra.mxu0 0.0
    %3400 = vmatprep.subr.mxu0 0.0
    %3401 = vmatpush1.msra.mxu0 0.0
    %3402 = vmatprep.subr.mxu0 0.0
    %3403 = vmatpush1.msra.mxu0 0.0
    %3404 = vmatprep.subr.mxu0 0.0
    %3405 = vmatpush1.msra.mxu0 0.0
    %3406 = vmatprep.subr.mxu0 0.0
    %3407 = vmatpush1.msra.mxu0 0.0
    %3408 = vmatprep.subr.mxu0 0.0
    %3409 = vmatpush1.msra.mxu0 0.0
    %3410 = vmatprep.subr.mxu0 0.0
    %3411 = vmatpush1.msra.mxu0 0.0
    %3412 = vmatprep.subr.mxu0 0.0
    %3413 = vmatpush1.msra.mxu0 0.0
    %3414 = vmatprep.subr.mxu0 0.0
    %3415 = vmatpush1.msra.mxu0 0.0
    %3416 = vmatprep.subr.mxu0 0.0
    %3417 = vmatpush1.msra.mxu0 0.0
    %3418 = vmatprep.subr.mxu0 0.0
    %3419 = vmatpush1.msra.mxu0 0.0
    %3420 = vmatprep.subr.mxu0 0.0
    %3421 = vmatpush1.msra.mxu0 0.0
    %3422 = vmatprep.subr.mxu0 0.0
    %3423 = vmatpush1.msra.mxu0 0.0
    %3424 = vmatprep.subr.mxu0 0.0
    %3425 = vmatpush1.msra.mxu0 0.0
    %3426 = vmatprep.subr.mxu0 0.0
    %3427 = vmatpush1.msra.mxu0 0.0
    %3428 = vmatprep.subr.mxu0 0.0
    %3429 = vmatpush1.msra.mxu0 0.0
    %3430 = vmatprep.subr.mxu0 0.0
    %3431 = vmatpush1.msra.mxu0 0.0
    %3432 = vmatprep.subr.mxu0 0.0
    %3433 = vmatpush1.msra.mxu0 0.0
    %3434 = vmatprep.subr.mxu0 0.0
    %3435 = vmatpush1.msra.mxu0 0.0
    %3436 = vmatprep.mubr.f32.mxu0 0.0
    %3437 = vmatmul.mubr.f32.gmra.mrb[0].mxu0 %v3370
    %v3438 = vpop.f32.mrb[0].mxu0
    %v3439 = vadd.f32 0.0, %v3438
    %v3440 = vpop.f32.mrb[0].mxu0
    %3441 = vdwg.mxu0
    %v3443 = vsel %vm2080, %v2920, 0
    %3445 = vmatprep.subr.mxu0 0.0
    %3446 = vmatpush1.msra.mxu0 %v3362
    %3447 = vmatprep.subr.mxu0 0.0
    %3448 = vmatpush1.msra.mxu0 0.0
    %3449 = vmatprep.subr.mxu0 0.0
    %3450 = vmatpush1.msra.mxu0 0.0
    %3451 = vmatprep.subr.mxu0 0.0
    %3452 = vmatpush1.msra.mxu0 0.0
    %3453 = vmatprep.subr.mxu0 0.0
    %3454 = vmatpush1.msra.mxu0 0.0
    %3455 = vmatprep.subr.mxu0 0.0
    %3456 = vmatpush1.msra.mxu0 0.0
    %3457 = vmatprep.subr.mxu0 0.0
    %3458 = vmatpush1.msra.mxu0 0.0
    %3459 = vmatprep.subr.mxu0 0.0
    %3460 = vmatpush1.msra.mxu0 0.0
    %3461 = vmatprep.subr.mxu0 0.0
    %3462 = vmatpush1.msra.mxu0 0.0
    %3463 = vmatprep.subr.mxu0 0.0
    %3464 = vmatpush1.msra.mxu0 0.0
    %3465 = vmatprep.subr.mxu0 0.0
    %3466 = vmatpush1.msra.mxu0 0.0
    %3467 = vmatprep.subr.mxu0 0.0
    %3468 = vmatpush1.msra.mxu0 0.0
    %3469 = vmatprep.subr.mxu0 0.0
    %3470 = vmatpush1.msra.mxu0 0.0
    %3471 = vmatprep.subr.mxu0 0.0
    %3472 = vmatpush1.msra.mxu0 0.0
    %3473 = vmatprep.subr.mxu0 0.0
    %3474 = vmatpush1.msra.mxu0 0.0
    %3475 = vmatprep.subr.mxu0 0.0
    %3476 = vmatpush1.msra.mxu0 0.0
    %3477 = vmatprep.subr.mxu0 0.0
    %3478 = vmatpush1.msra.mxu0 0.0
    %3479 = vmatprep.subr.mxu0 0.0
    %3480 = vmatpush1.msra.mxu0 0.0
    %3481 = vmatprep.subr.mxu0 0.0
    %3482 = vmatpush1.msra.mxu0 0.0
    %3483 = vmatprep.subr.mxu0 0.0
    %3484 = vmatpush1.msra.mxu0 0.0
    %3485 = vmatprep.subr.mxu0 0.0
    %3486 = vmatpush1.msra.mxu0 0.0
    %3487 = vmatprep.subr.mxu0 0.0
    %3488 = vmatpush1.msra.mxu0 0.0
    %3489 = vmatprep.subr.mxu0 0.0
    %3490 = vmatpush1.msra.mxu0 0.0
    %3491 = vmatprep.subr.mxu0 0.0
    %3492 = vmatpush1.msra.mxu0 0.0
    %3493 = vmatprep.subr.mxu0 0.0
    %3494 = vmatpush1.msra.mxu0 0.0
    %3495 = vmatprep.subr.mxu0 0.0
    %3496 = vmatpush1.msra.mxu0 0.0
    %3497 = vmatprep.subr.mxu0 0.0
    %3498 = vmatpush1.msra.mxu0 0.0
    %3499 = vmatprep.subr.mxu0 0.0
    %3500 = vmatpush1.msra.mxu0 0.0
    %3501 = vmatprep.subr.mxu0 0.0
    %3502 = vmatpush1.msra.mxu0 0.0
    %3503 = vmatprep.subr.mxu0 0.0
    %3504 = vmatpush1.msra.mxu0 0.0
    %3505 = vmatprep.subr.mxu0 0.0
    %3506 = vmatpush1.msra.mxu0 0.0
    %3507 = vmatprep.subr.mxu0 0.0
    %3508 = vmatpush1.msra.mxu0 0.0
    %3509 = vmatprep.mubr.f32.mxu0 0.0
    %3510 = vmatmul.mubr.f32.gmra.mrb[0].mxu0 %v3443
    %v3511 = vpop.f32.mrb[0].mxu0
    %v3512 = vadd.f32 0.0, %v3511
    %v3513 = vpop.f32.mrb[0].mxu0
    %3514 = vdwg.mxu0
    %v3516 = vsel %vm2080, %v2993, 0
    %3518 = vmatprep.subr.mxu0 0.0
    %3519 = vmatpush1.msra.mxu0 %v3363
    %3520 = vmatprep.subr.mxu0 0.0
    %3521 = vmatpush1.msra.mxu0 0.0
    %3522 = vmatprep.subr.mxu0 0.0
    %3523 = vmatpush1.msra.mxu0 0.0
    %3524 = vmatprep.subr.mxu0 0.0
    %3525 = vmatpush1.msra.mxu0 0.0
    %3526 = vmatprep.subr.mxu0 0.0
    %3527 = vmatpush1.msra.mxu0 0.0
    %3528 = vmatprep.subr.mxu0 0.0
    %3529 = vmatpush1.msra.mxu0 0.0
    %3530 = vmatprep.subr.mxu0 0.0
    %3531 = vmatpush1.msra.mxu0 0.0
    %3532 = vmatprep.subr.mxu0 0.0
    %3533 = vmatpush1.msra.mxu0 0.0
    %3534 = vmatprep.subr.mxu0 0.0
    %3535 = vmatpush1.msra.mxu0 0.0
    %3536 = vmatprep.subr.mxu0 0.0
    %3537 = vmatpush1.msra.mxu0 0.0
    %3538 = vmatprep.subr.mxu0 0.0
    %3539 = vmatpush1.msra.mxu0 0.0
    %3540 = vmatprep.subr.mxu0 0.0
    %3541 = vmatpush1.msra.mxu0 0.0
    %3542 = vmatprep.subr.mxu0 0.0
    %3543 = vmatpush1.msra.mxu0 0.0
    %3544 = vmatprep.subr.mxu0 0.0
    %3545 = vmatpush1.msra.mxu0 0.0
    %3546 = vmatprep.subr.mxu0 0.0
    %3547 = vmatpush1.msra.mxu0 0.0
    %3548 = vmatprep.subr.mxu0 0.0
    %3549 = vmatpush1.msra.mxu0 0.0
    %3550 = vmatprep.subr.mxu0 0.0
    %3551 = vmatpush1.msra.mxu0 0.0
    %3552 = vmatprep.subr.mxu0 0.0
    %3553 = vmatpush1.msra.mxu0 0.0
    %3554 = vmatprep.subr.mxu0 0.0
    %3555 = vmatpush1.msra.mxu0 0.0
    %3556 = vmatprep.subr.mxu0 0.0
    %3557 = vmatpush1.msra.mxu0 0.0
    %3558 = vmatprep.subr.mxu0 0.0
    %3559 = vmatpush1.msra.mxu0 0.0
    %3560 = vmatprep.subr.mxu0 0.0
    %3561 = vmatpush1.msra.mxu0 0.0
    %3562 = vmatprep.subr.mxu0 0.0
    %3563 = vmatpush1.msra.mxu0 0.0
    %3564 = vmatprep.subr.mxu0 0.0
    %3565 = vmatpush1.msra.mxu0 0.0
    %3566 = vmatprep.subr.mxu0 0.0
    %3567 = vmatpush1.msra.mxu0 0.0
    %3568 = vmatprep.subr.mxu0 0.0
    %3569 = vmatpush1.msra.mxu0 0.0
    %3570 = vmatprep.subr.mxu0 0.0
    %3571 = vmatpush1.msra.mxu0 0.0
    %3572 = vmatprep.subr.mxu0 0.0
    %3573 = vmatpush1.msra.mxu0 0.0
    %3574 = vmatprep.subr.mxu0 0.0
    %3575 = vmatpush1.msra.mxu0 0.0
    %3576 = vmatprep.subr.mxu0 0.0
    %3577 = vmatpush1.msra.mxu0 0.0
    %3578 = vmatprep.subr.mxu0 0.0
    %3579 = vmatpush1.msra.mxu0 0.0
    %3580 = vmatprep.subr.mxu0 0.0
    %3581 = vmatpush1.msra.mxu0 0.0
    %3582 = vmatprep.mubr.f32.mxu0 0.0
    %3583 = vmatmul.mubr.f32.gmra.mrb[0].mxu0 %v3516
    %v3584 = vpop.f32.mrb[0].mxu0
    %v3585 = vadd.f32 0.0, %v3584
    %v3586 = vpop.f32.mrb[0].mxu0
    %3587 = vdwg.mxu0
    %v3589 = vsel %vm2080, %v3066, 0
    %3591 = vmatprep.subr.mxu0 0.0
    %3592 = vmatpush1.msra.mxu0 %v3364
    %3593 = vmatprep.subr.mxu0 0.0
    %3594 = vmatpush1.msra.mxu0 0.0
    %3595 = vmatprep.subr.mxu0 0.0
    %3596 = vmatpush1.msra.mxu0 0.0
    %3597 = vmatprep.subr.mxu0 0.0
    %3598 = vmatpush1.msra.mxu0 0.0
    %3599 = vmatprep.subr.mxu0 0.0
    %3600 = vmatpush1.msra.mxu0 0.0
    %3601 = vmatprep.subr.mxu0 0.0
    %3602 = vmatpush1.msra.mxu0 0.0
    %3603 = vmatprep.subr.mxu0 0.0
    %3604 = vmatpush1.msra.mxu0 0.0
    %3605 = vmatprep.subr.mxu0 0.0
    %3606 = vmatpush1.msra.mxu0 0.0
    %3607 = vmatprep.subr.mxu0 0.0
    %3608 = vmatpush1.msra.mxu0 0.0
    %3609 = vmatprep.subr.mxu0 0.0
    %3610 = vmatpush1.msra.mxu0 0.0
    %3611 = vmatprep.subr.mxu0 0.0
    %3612 = vmatpush1.msra.mxu0 0.0
    %3613 = vmatprep.subr.mxu0 0.0
    %3614 = vmatpush1.msra.mxu0 0.0
    %3615 = vmatprep.subr.mxu0 0.0
    %3616 = vmatpush1.msra.mxu0 0.0
    %3617 = vmatprep.subr.mxu0 0.0
    %3618 = vmatpush1.msra.mxu0 0.0
    %3619 = vmatprep.subr.mxu0 0.0
    %3620 = vmatpush1.msra.mxu0 0.0
    %3621 = vmatprep.subr.mxu0 0.0
    %3622 = vmatpush1.msra.mxu0 0.0
    %3623 = vmatprep.subr.mxu0 0.0
    %3624 = vmatpush1.msra.mxu0 0.0
    %3625 = vmatprep.subr.mxu0 0.0
    %3626 = vmatpush1.msra.mxu0 0.0
    %3627 = vmatprep.subr.mxu0 0.0
    %3628 = vmatpush1.msra.mxu0 0.0
    %3629 = vmatprep.subr.mxu0 0.0
    %3630 = vmatpush1.msra.mxu0 0.0
    %3631 = vmatprep.subr.mxu0 0.0
    %3632 = vmatpush1.msra.mxu0 0.0
    %3633 = vmatprep.subr.mxu0 0.0
    %3634 = vmatpush1.msra.mxu0 0.0
    %3635 = vmatprep.subr.mxu0 0.0
    %3636 = vmatpush1.msra.mxu0 0.0
    %3637 = vmatprep.subr.mxu0 0.0
    %3638 = vmatpush1.msra.mxu0 0.0
    %3639 = vmatprep.subr.mxu0 0.0
    %3640 = vmatpush1.msra.mxu0 0.0
    %3641 = vmatprep.subr.mxu0 0.0
    %3642 = vmatpush1.msra.mxu0 0.0
    %3643 = vmatprep.subr.mxu0 0.0
    %3644 = vmatpush1.msra.mxu0 0.0
    %3645 = vmatprep.subr.mxu0 0.0
    %3646 = vmatpush1.msra.mxu0 0.0
    %3647 = vmatprep.subr.mxu0 0.0
    %3648 = vmatpush1.msra.mxu0 0.0
    %3649 = vmatprep.subr.mxu0 0.0
    %3650 = vmatpush1.msra.mxu0 0.0
    %3651 = vmatprep.subr.mxu0 0.0
    %3652 = vmatpush1.msra.mxu0 0.0
    %3653 = vmatprep.subr.mxu0 0.0
    %3654 = vmatpush1.msra.mxu0 0.0
    %3655 = vmatprep.mubr.f32.mxu0 0.0
    %3656 = vmatmul.mubr.f32.gmra.mrb[0].mxu0 %v3589
    %v3657 = vpop.f32.mrb[0].mxu0
    %v3658 = vadd.f32 0.0, %v3657
    %v3659 = vpop.f32.mrb[0].mxu0
    %3660 = vdwg.mxu0
    %v3662 = vsel %vm2080, %v3139, 0
    %3664 = vmatprep.subr.mxu0 0.0
    %3665 = vmatpush1.msra.mxu0 %v3365
    %3666 = vmatprep.subr.mxu0 0.0
    %3667 = vmatpush1.msra.mxu0 0.0
    %3668 = vmatprep.subr.mxu0 0.0
    %3669 = vmatpush1.msra.mxu0 0.0
    %3670 = vmatprep.subr.mxu0 0.0
    %3671 = vmatpush1.msra.mxu0 0.0
    %3672 = vmatprep.subr.mxu0 0.0
    %3673 = vmatpush1.msra.mxu0 0.0
    %3674 = vmatprep.subr.mxu0 0.0
    %3675 = vmatpush1.msra.mxu0 0.0
    %3676 = vmatprep.subr.mxu0 0.0
    %3677 = vmatpush1.msra.mxu0 0.0
    %3678 = vmatprep.subr.mxu0 0.0
    %3679 = vmatpush1.msra.mxu0 0.0
    %3680 = vmatprep.subr.mxu0 0.0
    %3681 = vmatpush1.msra.mxu0 0.0
    %3682 = vmatprep.subr.mxu0 0.0
    %3683 = vmatpush1.msra.mxu0 0.0
    %3684 = vmatprep.subr.mxu0 0.0
    %3685 = vmatpush1.msra.mxu0 0.0
    %3686 = vmatprep.subr.mxu0 0.0
    %3687 = vmatpush1.msra.mxu0 0.0
    %3688 = vmatprep.subr.mxu0 0.0
    %3689 = vmatpush1.msra.mxu0 0.0
    %3690 = vmatprep.subr.mxu0 0.0
    %3691 = vmatpush1.msra.mxu0 0.0
    %3692 = vmatprep.subr.mxu0 0.0
    %3693 = vmatpush1.msra.mxu0 0.0
    %3694 = vmatprep.subr.mxu0 0.0
    %3695 = vmatpush1.msra.mxu0 0.0
    %3696 = vmatprep.subr.mxu0 0.0
    %3697 = vmatpush1.msra.mxu0 0.0
    %3698 = vmatprep.subr.mxu0 0.0
    %3699 = vmatpush1.msra.mxu0 0.0
    %3700 = vmatprep.subr.mxu0 0.0
    %3701 = vmatpush1.msra.mxu0 0.0
    %3702 = vmatprep.subr.mxu0 0.0
    %3703 = vmatpush1.msra.mxu0 0.0
    %3704 = vmatprep.subr.mxu0 0.0
    %3705 = vmatpush1.msra.mxu0 0.0
    %3706 = vmatprep.subr.mxu0 0.0
    %3707 = vmatpush1.msra.mxu0 0.0
    %3708 = vmatprep.subr.mxu0 0.0
    %3709 = vmatpush1.msra.mxu0 0.0
    %3710 = vmatprep.subr.mxu0 0.0
    %3711 = vmatpush1.msra.mxu0 0.0
    %3712 = vmatprep.subr.mxu0 0.0
    %3713 = vmatpush1.msra.mxu0 0.0
    %3714 = vmatprep.subr.mxu0 0.0
    %3715 = vmatpush1.msra.mxu0 0.0
    %3716 = vmatprep.subr.mxu0 0.0
    %3717 = vmatpush1.msra.mxu0 0.0
    %3718 = vmatprep.subr.mxu0 0.0
    %3719 = vmatpush1.msra.mxu0 0.0
    %3720 = vmatprep.subr.mxu0 0.0
    %3721 = vmatpush1.msra.mxu0 0.0
    %3722 = vmatprep.subr.mxu0 0.0
    %3723 = vmatpush1.msra.mxu0 0.0
    %3724 = vmatprep.subr.mxu0 0.0
    %3725 = vmatpush1.msra.mxu0 0.0
    %3726 = vmatprep.subr.mxu0 0.0
    %3727 = vmatpush1.msra.mxu0 0.0
    %3728 = vmatprep.mubr.f32.mxu0 0.0
    %3729 = vmatmul.mubr.f32.gmra.mrb[0].mxu0 %v3662
    %v3730 = vpop.f32.mrb[0].mxu0
    %v3731 = vadd.f32 0.0, %v3730
    %v3732 = vpop.f32.mrb[0].mxu0
    %3733 = vdwg.mxu0
    %v3735 = vsel %vm2080, %v3212, 0
    %3737 = vmatprep.subr.mxu0 0.0
    %3738 = vmatpush1.msra.mxu0 %v3366
    %3739 = vmatprep.subr.mxu0 0.0
    %3740 = vmatpush1.msra.mxu0 0.0
    %3741 = vmatprep.subr.mxu0 0.0
    %3742 = vmatpush1.msra.mxu0 0.0
    %3743 = vmatprep.subr.mxu0 0.0
    %3744 = vmatpush1.msra.mxu0 0.0
    %3745 = vmatprep.subr.mxu0 0.0
    %3746 = vmatpush1.msra.mxu0 0.0
    %3747 = vmatprep.subr.mxu0 0.0
    %3748 = vmatpush1.msra.mxu0 0.0
    %3749 = vmatprep.subr.mxu0 0.0
    %3750 = vmatpush1.msra.mxu0 0.0
    %3751 = vmatprep.subr.mxu0 0.0
    %3752 = vmatpush1.msra.mxu0 0.0
    %3753 = vmatprep.subr.mxu0 0.0
    %3754 = vmatpush1.msra.mxu0 0.0
    %3755 = vmatprep.subr.mxu0 0.0
    %3756 = vmatpush1.msra.mxu0 0.0
    %3757 = vmatprep.subr.mxu0 0.0
    %3758 = vmatpush1.msra.mxu0 0.0
    %3759 = vmatprep.subr.mxu0 0.0
    %3760 = vmatpush1.msra.mxu0 0.0
    %3761 = vmatprep.subr.mxu0 0.0
    %3762 = vmatpush1.msra.mxu0 0.0
    %3763 = vmatprep.subr.mxu0 0.0
    %3764 = vmatpush1.msra.mxu0 0.0
    %3765 = vmatprep.subr.mxu0 0.0
    %3766 = vmatpush1.msra.mxu0 0.0
    %3767 = vmatprep.subr.mxu0 0.0
    %3768 = vmatpush1.msra.mxu0 0.0
    %3769 = vmatprep.subr.mxu0 0.0
    %3770 = vmatpush1.msra.mxu0 0.0
    %3771 = vmatprep.subr.mxu0 0.0
    %3772 = vmatpush1.msra.mxu0 0.0
    %3773 = vmatprep.subr.mxu0 0.0
    %3774 = vmatpush1.msra.mxu0 0.0
    %3775 = vmatprep.subr.mxu0 0.0
    %3776 = vmatpush1.msra.mxu0 0.0
    %3777 = vmatprep.subr.mxu0 0.0
    %3778 = vmatpush1.msra.mxu0 0.0
    %3779 = vmatprep.subr.mxu0 0.0
    %3780 = vmatpush1.msra.mxu0 0.0
    %3781 = vmatprep.subr.mxu0 0.0
    %3782 = vmatpush1.msra.mxu0 0.0
    %3783 = vmatprep.subr.mxu0 0.0
    %3784 = vmatpush1.msra.mxu0 0.0
    %3785 = vmatprep.subr.mxu0 0.0
    %3786 = vmatpush1.msra.mxu0 0.0
    %3787 = vmatprep.subr.mxu0 0.0
    %3788 = vmatpush1.msra.mxu0 0.0
    %3789 = vmatprep.subr.mxu0 0.0
    %3790 = vmatpush1.msra.mxu0 0.0
    %3791 = vmatprep.subr.mxu0 0.0
    %3792 = vmatpush1.msra.mxu0 0.0
    %3793 = vmatprep.subr.mxu0 0.0
    %3794 = vmatpush1.msra.mxu0 0.0
    %3795 = vmatprep.subr.mxu0 0.0
    %3796 = vmatpush1.msra.mxu0 0.0
    %3797 = vmatprep.subr.mxu0 0.0
    %3798 = vmatpush1.msra.mxu0 0.0
    %3799 = vmatprep.subr.mxu0 0.0
    %3800 = vmatpush1.msra.mxu0 0.0
    %3801 = vmatprep.mubr.f32.mxu0 0.0
    %3802 = vmatmul.mubr.f32.gmra.mrb[0].mxu0 %v3735
    %v3803 = vpop.f32.mrb[0].mxu0
    %v3804 = vadd.f32 0.0, %v3803
    %v3805 = vpop.f32.mrb[0].mxu0
    %3806 = vdwg.mxu0
    %v3808 = vsel %vm2080, %v3285, 0
    %3810 = vmatprep.subr.mxu0 0.0
    %3811 = vmatpush1.msra.mxu0 %v3367
    %3812 = vmatprep.subr.mxu0 0.0
    %3813 = vmatpush1.msra.mxu0 0.0
    %3814 = vmatprep.subr.mxu0 0.0
    %3815 = vmatpush1.msra.mxu0 0.0
    %3816 = vmatprep.subr.mxu0 0.0
    %3817 = vmatpush1.msra.mxu0 0.0
    %3818 = vmatprep.subr.mxu0 0.0
    %3819 = vmatpush1.msra.mxu0 0.0
    %3820 = vmatprep.subr.mxu0 0.0
    %3821 = vmatpush1.msra.mxu0 0.0
    %3822 = vmatprep.subr.mxu0 0.0
    %3823 = vmatpush1.msra.mxu0 0.0
    %3824 = vmatprep.subr.mxu0 0.0
    %3825 = vmatpush1.msra.mxu0 0.0
    %3826 = vmatprep.subr.mxu0 0.0
    %3827 = vmatpush1.msra.mxu0 0.0
    %3828 = vmatprep.subr.mxu0 0.0
    %3829 = vmatpush1.msra.mxu0 0.0
    %3830 = vmatprep.subr.mxu0 0.0
    %3831 = vmatpush1.msra.mxu0 0.0
    %3832 = vmatprep.subr.mxu0 0.0
    %3833 = vmatpush1.msra.mxu0 0.0
    %3834 = vmatprep.subr.mxu0 0.0
    %3835 = vmatpush1.msra.mxu0 0.0
    %3836 = vmatprep.subr.mxu0 0.0
    %3837 = vmatpush1.msra.mxu0 0.0
    %3838 = vmatprep.subr.mxu0 0.0
    %3839 = vmatpush1.msra.mxu0 0.0
    %3840 = vmatprep.subr.mxu0 0.0
    %3841 = vmatpush1.msra.mxu0 0.0
    %3842 = vmatprep.subr.mxu0 0.0
    %3843 = vmatpush1.msra.mxu0 0.0
    %3844 = vmatprep.subr.mxu0 0.0
    %3845 = vmatpush1.msra.mxu0 0.0
    %3846 = vmatprep.subr.mxu0 0.0
    %3847 = vmatpush1.msra.mxu0 0.0
    %3848 = vmatprep.subr.mxu0 0.0
    %3849 = vmatpush1.msra.mxu0 0.0
    %3850 = vmatprep.subr.mxu0 0.0
    %3851 = vmatpush1.msra.mxu0 0.0
    %3852 = vmatprep.subr.mxu0 0.0
    %3853 = vmatpush1.msra.mxu0 0.0
    %3854 = vmatprep.subr.mxu0 0.0
    %3855 = vmatpush1.msra.mxu0 0.0
    %3856 = vmatprep.subr.mxu0 0.0
    %3857 = vmatpush1.msra.mxu0 0.0
    %3858 = vmatprep.subr.mxu0 0.0
    %3859 = vmatpush1.msra.mxu0 0.0
    %3860 = vmatprep.subr.mxu0 0.0
    %3861 = vmatpush1.msra.mxu0 0.0
    %3862 = vmatprep.subr.mxu0 0.0
    %3863 = vmatpush1.msra.mxu0 0.0
    %3864 = vmatprep.subr.mxu0 0.0
    %3865 = vmatpush1.msra.mxu0 0.0
    %3866 = vmatprep.subr.mxu0 0.0
    %3867 = vmatpush1.msra.mxu0 0.0
    %3868 = vmatprep.subr.mxu0 0.0
    %3869 = vmatpush1.msra.mxu0 0.0
    %3870 = vmatprep.subr.mxu0 0.0
    %3871 = vmatpush1.msra.mxu0 0.0
    %3872 = vmatprep.subr.mxu0 0.0
    %3873 = vmatpush1.msra.mxu0 0.0
    %3874 = vmatprep.mubr.f32.mxu0 0.0
    %3875 = vmatmul.mubr.f32.gmra.mrb[0].mxu0 %v3808
    %v3876 = vpop.f32.mrb[0].mxu0
    %v3877 = vadd.f32 0.0, %v3876
    %v3878 = vpop.f32.mrb[0].mxu0
    %3879 = vdwg.mxu0
    %v3881 = vsel %vm2080, %v3358, 0
    %3883 = vmatprep.subr.mxu0 0.0
    %3884 = vmatpush1.msra.mxu0 %v3368
    %3885 = vmatprep.subr.mxu0 0.0
    %3886 = vmatpush1.msra.mxu0 0.0
    %3887 = vmatprep.subr.mxu0 0.0
    %3888 = vmatpush1.msra.mxu0 0.0
    %3889 = vmatprep.subr.mxu0 0.0
    %3890 = vmatpush1.msra.mxu0 0.0
    %3891 = vmatprep.subr.mxu0 0.0
    %3892 = vmatpush1.msra.mxu0 0.0
    %3893 = vmatprep.subr.mxu0 0.0
    %3894 = vmatpush1.msra.mxu0 0.0
    %3895 = vmatprep.subr.mxu0 0.0
    %3896 = vmatpush1.msra.mxu0 0.0
    %3897 = vmatprep.subr.mxu0 0.0
    %3898 = vmatpush1.msra.mxu0 0.0
    %3899 = vmatprep.subr.mxu0 0.0
    %3900 = vmatpush1.msra.mxu0 0.0
    %3901 = vmatprep.subr.mxu0 0.0
    %3902 = vmatpush1.msra.mxu0 0.0
    %3903 = vmatprep.subr.mxu0 0.0
    %3904 = vmatpush1.msra.mxu0 0.0
    %3905 = vmatprep.subr.mxu0 0.0
    %3906 = vmatpush1.msra.mxu0 0.0
    %3907 = vmatprep.subr.mxu0 0.0
    %3908 = vmatpush1.msra.mxu0 0.0
    %3909 = vmatprep.subr.mxu0 0.0
    %3910 = vmatpush1.msra.mxu0 0.0
    %3911 = vmatprep.subr.mxu0 0.0
    %3912 = vmatpush1.msra.mxu0 0.0
    %3913 = vmatprep.subr.mxu0 0.0
    %3914 = vmatpush1.msra.mxu0 0.0
    %3915 = vmatprep.subr.mxu0 0.0
    %3916 = vmatpush1.msra.mxu0 0.0
    %3917 = vmatprep.subr.mxu0 0.0
    %3918 = vmatpush1.msra.mxu0 0.0
    %3919 = vmatprep.subr.mxu0 0.0
    %3920 = vmatpush1.msra.mxu0 0.0
    %3921 = vmatprep.subr.mxu0 0.0
    %3922 = vmatpush1.msra.mxu0 0.0
    %3923 = vmatprep.subr.mxu0 0.0
    %3924 = vmatpush1.msra.mxu0 0.0
    %3925 = vmatprep.subr.mxu0 0.0
    %3926 = vmatpush1.msra.mxu0 0.0
    %3927 = vmatprep.subr.mxu0 0.0
    %3928 = vmatpush1.msra.mxu0 0.0
    %3929 = vmatprep.subr.mxu0 0.0
    %3930 = vmatpush1.msra.mxu0 0.0
    %3931 = vmatprep.subr.mxu0 0.0
    %3932 = vmatpush1.msra.mxu0 0.0
    %3933 = vmatprep.subr.mxu0 0.0
    %3934 = vmatpush1.msra.mxu0 0.0
    %3935 = vmatprep.subr.mxu0 0.0
    %3936 = vmatpush1.msra.mxu0 0.0
    %3937 = vmatprep.subr.mxu0 0.0
    %3938 = vmatpush1.msra.mxu0 0.0
    %3939 = vmatprep.subr.mxu0 0.0
    %3940 = vmatpush1.msra.mxu0 0.0
    %3941 = vmatprep.subr.mxu0 0.0
    %3942 = vmatpush1.msra.mxu0 0.0
    %3943 = vmatprep.subr.mxu0 0.0
    %3944 = vmatpush1.msra.mxu0 0.0
    %3945 = vmatprep.subr.mxu0 0.0
    %3946 = vmatpush1.msra.mxu0 0.0
    %3947 = vmatprep.mubr.f32.mxu0 0.0
    %3948 = vmatmul.mubr.f32.gmra.mrb[0].mxu0 %v3881
    %v3949 = vpop.f32.mrb[0].mxu0
    %v3950 = vadd.f32 0.0, %v3949
    %v3951 = vpop.f32.mrb[0].mxu0
    %3952 = vdwg.mxu0
    %v3953 = vld [vmem:[%s10] sm:$0x1]
    %v3954 = vadd.f32 %v3439, %v3512
    %v3955 = vadd.f32 %v3954, %v3585
    %v3956 = vadd.f32 %v3955, %v3658
    %v3958 = vlaneseq
    %v3959 = vshrl.u32 %v3958, 7
    %v3960 = vsub.s32 0, %v3959
    %v3961 = vrot.slane %v3953, %v3960
    %v3963 = vadd.f32 %v3956, %v3961
    %3964 = vst.msk [vmem:[#allocation2] sm:$0xff] %vm135, %v3963
    %v3965 = vadd.f32 %v3731, %v3804
    %v3966 = vadd.f32 %v3965, %v3877
    %v3967 = vadd.f32 %v3966, %v3950
    %v3968 = vadd.f32 %v3967, %v3961
    %3969 = vst.msk [vmem:[#allocation2 + $0x8] sm:$0xff] %vm135, %v3968
    // Predicated region
    $region46: #{tpu_custom_call.1} parent=1 // pred_check
      _
    $region47: #{tpu_custom_call.1} parent=1 // pred_check_branch
      %3971 = sbr.rel (0) target = $region49
    $region48: #{tpu_custom_call.1} parent=1 // pred_region
      %s3973 = ssub.s32 256, 256
      %3974 = vsyncadd [#allocation3], %s3973
      %s3975 = sshll.u32 [#allocation2], 4
      %s3976 = int_to_ptr.vmem [resolvable:$true] %s3975
      %3981 = dma.vmem_to_hbm [thread:$0]  %s3976, 256, %s11, [#allocation3], 128, 128, 8
    $region49: #{tpu_custom_call.1} parent=1 // pred_fallthru
      _
    // Predicated region
    $region50: #{tpu_custom_call.1} parent=1 // pred_check
      _
    $region51: #{tpu_custom_call.1} parent=1 // pred_check_branch
      %3983 = sbr.rel (0) target = $region53
    $region52: #{tpu_custom_call.1} parent=1 // pred_region
      %3984 = dma.done [#allocation3], 256
    $region53: #{tpu_custom_call.1} parent=1 // pred_fallthru
      _
    %3985 = vsyncpa [#allocation3], 1

</llo_original>
